<compile_context>
chip_gen: v7x
topology: tpu7x:2x2x1
jax: 0.10.0
libtpu: 0.0.40
codegen_flags: <defaults>
</compile_context>

<pallas_src>
import jax
import jax.numpy as jnp
from jax.experimental import pallas as pl
from jax.experimental.pallas import tpu as pltpu

# nn.RReLU eval-mode negative slope = (lower + upper) / 2 = (1/8 + 1/3) / 2
RRELU_SLOPE = (1.0 / 8.0 + 1.0 / 3.0) / 2.0
# TODO(synk): training-mode RReLU samples a random slope per element; the
# deterministic eval-mode slope is implemented here.

LANE = 128          # TPU lane width; lever head / state segments padded to this
NEG_BIG = -1e30     # bias pad value -> softmax prob on pad lanes is exactly 0


def _rrelu(x):
    return jnp.where(x >= 0, x, x * RRELU_SLOPE)


def _make_fused_kernel(n, n_modules):
    """Build the fused forward kernel (n levers, n_modules = pulls - 1)."""

    def kernel(x0_ref, rt_ref, w1s_ref, b1s_ref, w2s_ref, b2s_ref,
               w3s_ref, b3s_ref, w4s_ref, b4s_ref,
               probs_ref, levers_ref, rewards_ref, state_ref):
        B = x0_ref.shape[0]

        # Hoisted lane helpers (computed once, reused by every pull).
        lane = jax.lax.broadcasted_iota(jnp.int32, (B, LANE), 1)
        valid = lane < n
        is_reward_lane = lane == n
        rt = rt_ref[...]                           # [B, 128] f32, zero past lane n

        def argmax_reward(vals):
            """First-max lever index + its reward.  vals: [B, 128] f32."""
            masked = jnp.where(valid, vals, -jnp.inf)
            m = jnp.max(masked, axis=-1, keepdims=True)
            is_max = (masked == m) & valid
            # TODO(synk): PyTorch breaks ties with np.random.choice; ties are
            # measure zero for continuous inputs, first index is used here.
            idx = jnp.min(jnp.where(is_max, lane, LANE),
                          axis=-1, keepdims=True)                 # [B, 1] i32
            rw = jnp.sum(jnp.where(lane == idx, rt, 0.0),
                         axis=-1, keepdims=True)                  # [B, 1] f32
            return idx, rw

        # ---- initial random pull ----
        x0 = x0_ref[...]                                          # [B, 128] f32
        idx0, rw0 = argmax_reward(x0)
        # segment 0 = [x0 (lanes 0..n-1) | reward0 (lane n) | exact zeros]
        state_ref[:, 0:LANE] = jnp.where(is_reward_lane, rw0,
                                         x0).astype(jnp.bfloat16)
        levers = jnp.where(lane == 0, idx0, 0)                    # [B, 128] i32
        rewards = jnp.where(lane == 0, rw0, 0.0)                  # [B, 128] f32

        # ---- unrolled inception modules (4x Linear+RReLU, then softmax) ----
        for p in range(n_modules):
            k = (p + 1) * LANE                    # live state width (static)
            x = state_ref[:, :k]                  # bf16, only live segments
            h = _rrelu(jnp.dot(x, w1s_ref[p, :k, :],
                               preferred_element_type=jnp.float32) + b1s_ref[p])
            h = _rrelu(jnp.dot(h.astype(jnp.bfloat16), w2s_ref[p],
                               preferred_element_type=jnp.float32) + b2s_ref[p])
            h = _rrelu(jnp.dot(h.astype(jnp.bfloat16), w3s_ref[p],
                               preferred_element_type=jnp.float32) + b3s_ref[p])
            logits = _rrelu(jnp.dot(h.astype(jnp.bfloat16), w4s_ref[p],
                                    preferred_element_type=jnp.float32)
                            + b4s_ref[p])          # pad lanes ~ -2.3e29
            # softmax over the (padded) lever dim; pad lanes underflow to 0
            m = jnp.max(logits, axis=-1, keepdims=True)
            e = jnp.exp(logits - m)
            denom = jnp.sum(e, axis=-1, keepdims=True)
            probs = e * pl.reciprocal(denom, approx=True)         # [B, 128] f32
            probs_ref[:, p * LANE:(p + 1) * LANE] = probs         # lane-dense

            idx, rw = argmax_reward(probs)
            levers = jnp.where(lane == (p + 1), idx, levers)
            rewards = jnp.where(lane == (p + 1), rw, rewards)
            if p + 1 < n_modules:
                # segment p+1 = [module_output | reward | exact zeros], bf16
                state_ref[:, (p + 1) * LANE:(p + 2) * LANE] = jnp.where(
                    is_reward_lane, rw, probs).astype(jnp.bfloat16)

        # single unmasked 128-lane store each (no column concatenates)
        levers_ref[...] = levers
        rewards_ref[...] = rewards

    return kernel


def init_params(key, n, pulls, width):
    """Deterministic nn.Linear-style init, stacked over the (pulls-1) modules."""
    P = pulls - 1
    w1s, b1s, w2s, b2s, w3s, b3s, w4s, b4s = ([] for _ in range(8))
    for i in range(1, pulls):
        in_dim = i * (n + 1)
        k = jax.random.fold_in(key, i)
        ks = jax.random.split(k, 8)

        def lin(kw, kb, fin, fout):
            bound = 1.0 / float(fin) ** 0.5
            w = jax.random.uniform(kw, (fin, fout), jnp.float32, -bound, bound)
            b = jax.random.uniform(kb, (1, fout), jnp.float32, -bound, bound)
            return w, b

        w1, b1 = lin(ks[0], ks[1], in_dim, width)
        # Re-layout W1 rows into 128-lane segments matching the in-kernel state
        # (segment s = [out_s | reward_s | zero pad]).  Rows past segment i are
        # never read (the kernel slices the contraction to live segments); they
        # are zero-padded only to keep the stacked array rectangular.
        w1 = w1.reshape(i, n + 1, width)
        w1 = jnp.pad(w1, ((0, P - i), (0, LANE - (n + 1)), (0, 0)))
        w1 = w1.reshape(P * LANE, width)
        w2, b2 = lin(ks[2], ks[3], width, width)
        w3, b3 = lin(ks[4], ks[5], width, width)
        w4, b4 = lin(ks[6], ks[7], width, n)
        # Lane-pad the lever head to 128: zero weights, -1e30 bias.
        w4 = jnp.pad(w4, ((0, 0), (0, LANE - n)))
        b4 = jnp.pad(b4, ((0, 0), (0, LANE - n)), constant_values=NEG_BIG)
        w1s.append(w1); b1s.append(b1)
        w2s.append(w2); b2s.append(b2)
        w3s.append(w3); b3s.append(b3)
        w4s.append(w4); b4s.append(b4)

    stack_w = lambda ws: jnp.stack(ws).astype(jnp.bfloat16)   # MXU operands
    stack_b = lambda bs: jnp.stack(bs).astype(jnp.float32)    # f32 bias/RReLU
    return dict(w1=stack_w(w1s), b1=stack_b(b1s),
                w2=stack_w(w2s), b2=stack_b(b2s),
                w3=stack_w(w3s), b3=stack_b(b3s),
                w4=stack_w(w4s), b4=stack_b(b4s))


def mab_inception_forward(x0, reward_table, params, n, pulls, *, block_b=None):
    """Mirrors MABInceptionModel.forward (eval mode, no dropout).

    x0:           [B, n] initial random module input (torch.rand equivalent)
    reward_table: [B, n] -- reward_generators[i].get_reward(l) == reward_table[i, l]
    Returns (module_outputs [B, 1, (pulls-1)*n], levers [B, pulls], rewards [B, pulls]).
    """
    B = x0.shape[0]
    P = pulls - 1
    assert pulls <= LANE, "lane-dense lever/reward outputs assume pulls <= 128"

    # Batch tiling: weights stay resident (constant index_maps); batch rows are
    # gridded with parallel semantics.  Per-step VMEM (probs block + bf16 state
    # + ~1 MiB weights) stays far below v7x's 32 MiB scoped-VMEM default.
    if block_b is None:
        block_b = min(max(B, 8), 256)
    block_b = ((block_b + 7) // 8) * 8
    Bp = ((B + block_b - 1) // block_b) * block_b

    x0_pad = jnp.pad(x0.astype(jnp.float32), ((0, Bp - B), (0, LANE - n)))
    rt_pad = jnp.pad(reward_table.astype(jnp.float32), ((0, Bp - B), (0, LANE - n)))

    batched = lambda w: pl.BlockSpec((block_b, w), lambda b: (b, 0))

    def resident(arr):           # whole array in VMEM, DMA'd once
        nd = arr.ndim
        return pl.BlockSpec(arr.shape, lambda b, nd=nd: (0,) * nd)

    weight_args = (params["w1"], params["b1"], params["w2"], params["b2"],
                   params["w3"], params["b3"], params["w4"], params["b4"])

    probs, levers, rewards = pl.pallas_call(
        _make_fused_kernel(n, P),
        grid=(Bp // block_b,),
        out_shape=(
            jax.ShapeDtypeStruct((Bp, P * LANE), jnp.float32),   # padded softmax
            jax.ShapeDtypeStruct((Bp, LANE), jnp.int32),         # lane-dense levers
            jax.ShapeDtypeStruct((Bp, LANE), jnp.float32),       # lane-dense rewards
        ),
        in_specs=[batched(LANE), batched(LANE)] + [resident(w) for w in weight_args],
        out_specs=(batched(P * LANE), batched(LANE), batched(LANE)),
        scratch_shapes=[pltpu.VMEM((block_b, P * LANE), jnp.bfloat16)],  # growing state
        compiler_params=pltpu.CompilerParams(dimension_semantics=("parallel",)),
    )(x0_pad, rt_pad, *weight_args)

    probs = probs[:B]
    module_outputs = probs.reshape(B, P, LANE)[:, :, :n].reshape(B, 1, P * n)
    return module_outputs, levers[:B, :pulls], rewards[:B, :pulls]


if __name__ == "__main__":
    # Small-shape instantiation of MABInceptionModel(n=7, pulls=5, module_width=128)
    n = 7
    pulls = 5
    module_width = 128
    batch = 8                     # number of reward generators

    root = jax.random.PRNGKey(0)
    k_params, k_input, k_rewards = jax.random.split(root, 3)

    params = init_params(k_params, n, pulls, module_width)
    # Deterministic stand-in for the list of RewardGenerator objects.
    reward_table = jax.random.uniform(k_rewards, (batch, n), dtype=jnp.float32)
    # torch.rand((B, n)) equivalent initial module input.
    x0 = jax.random.uniform(k_input, (batch, n), dtype=jnp.float32)

    module_outputs, levers, rewards = mab_inception_forward(
        x0, reward_table, params, n, pulls)
    jax.block_until_ready((module_outputs, levers, rewards))

    assert module_outputs.shape == (batch, 1, (pulls - 1) * n)
    assert levers.shape == (batch, pulls)
    assert rewards.shape == (batch, pulls)
    assert bool(jnp.all(jnp.isfinite(module_outputs)))
    assert bool(jnp.all((levers >= 0) & (levers < n)))
    assert bool(jnp.all(jnp.isfinite(rewards)))
    # Each module's softmax over the n real levers should sum to ~1.
    sums = module_outputs.reshape(batch, pulls - 1, n).sum(-1)
    assert bool(jnp.all(jnp.abs(sums - 1.0) < 1e-2))
    print("KERNEL_OK")
</pallas_src>

<mosaic_0001>
module attributes {stable_mosaic.version = 11 : i64} {
  func.func @kernel(%arg0: i32, %arg1: memref<8x128xf32, #tpu.memory_space<vmem>>, %arg2: memref<8x128xf32, #tpu.memory_space<vmem>>, %arg3: memref<4x512x128xbf16, #tpu.memory_space<vmem>>, %arg4: memref<4x1x128xf32, #tpu.memory_space<vmem>>, %arg5: memref<4x128x128xbf16, #tpu.memory_space<vmem>>, %arg6: memref<4x1x128xf32, #tpu.memory_space<vmem>>, %arg7: memref<4x128x128xbf16, #tpu.memory_space<vmem>>, %arg8: memref<4x1x128xf32, #tpu.memory_space<vmem>>, %arg9: memref<4x128x128xbf16, #tpu.memory_space<vmem>>, %arg10: memref<4x1x128xf32, #tpu.memory_space<vmem>>, %arg11: memref<8x512xf32, #tpu.memory_space<vmem>>, %arg12: memref<8x128xi32, #tpu.memory_space<vmem>>, %arg13: memref<8x128xf32, #tpu.memory_space<vmem>>, %arg14: memref<8x512xbf16, #tpu.memory_space<vmem>>) attributes {dimension_semantics = [#tpu.dimension_semantics<parallel>], iteration_bounds = array<i64: 1>, scalar_prefetch = 0 : i64, scratch_operands = 1 : i64, tpu.core_type = #tpu.core_type<tc>, window_params = [{transform_indices = @transform_0, window_bounds = array<i64: 8, 128>}, {transform_indices = @transform_1, window_bounds = array<i64: 8, 128>}, {pipeline_mode = #tpu.pipeline_mode<synchronous>, transform_indices = @transform_2, window_bounds = array<i64: 4, 512, 128>}, {pipeline_mode = #tpu.pipeline_mode<synchronous>, transform_indices = @transform_3, window_bounds = array<i64: 4, 1, 128>}, {pipeline_mode = #tpu.pipeline_mode<synchronous>, transform_indices = @transform_4, window_bounds = array<i64: 4, 128, 128>}, {pipeline_mode = #tpu.pipeline_mode<synchronous>, transform_indices = @transform_5, window_bounds = array<i64: 4, 1, 128>}, {pipeline_mode = #tpu.pipeline_mode<synchronous>, transform_indices = @transform_6, window_bounds = array<i64: 4, 128, 128>}, {pipeline_mode = #tpu.pipeline_mode<synchronous>, transform_indices = @transform_7, window_bounds = array<i64: 4, 1, 128>}, {pipeline_mode = #tpu.pipeline_mode<synchronous>, transform_indices = @transform_8, window_bounds = array<i64: 4, 128, 128>}, {pipeline_mode = #tpu.pipeline_mode<synchronous>, transform_indices = @transform_9, window_bounds = array<i64: 4, 1, 128>}, {transform_indices = @transform_10, window_bounds = array<i64: 8, 512>}, {transform_indices = @transform_11, window_bounds = array<i64: 8, 128>}, {transform_indices = @transform_12, window_bounds = array<i64: 8, 128>}]} {
    %0 = tpu.iota {dimensions = array<i32: 1>} : vector<8x128xi32>
    %c7_i32 = arith.constant 7 : i32
    %1 = vector.broadcast %c7_i32 : i32 to vector<8x128xi32>
    %2 = arith.cmpi slt, %0, %1 : vector<8x128xi32>
    %c7_i32_0 = arith.constant 7 : i32
    %3 = vector.broadcast %c7_i32_0 : i32 to vector<8x128xi32>
    %4 = arith.cmpi eq, %0, %3 : vector<8x128xi32>
    %c0 = arith.constant 0 : index
    %c0_1 = arith.constant 0 : index
    %5 = vector.load %arg2[%c0, %c0_1] : memref<8x128xf32, #tpu.memory_space<vmem>>, vector<8x128xf32>
    %c0_2 = arith.constant 0 : index
    %c0_3 = arith.constant 0 : index
    %6 = vector.load %arg1[%c0_2, %c0_3] : memref<8x128xf32, #tpu.memory_space<vmem>>, vector<8x128xf32>
    %cst = arith.constant 0xFF800000 : f32
    %7 = vector.broadcast %cst : f32 to vector<8x128xf32>
    %8 = arith.select %2, %6, %7 : vector<8x128xi1>, vector<8x128xf32>
    %cst_4 = arith.constant dense<0xFF800000> : vector<8xf32>
    %9 = vector.multi_reduction <maximumf>, %8, %cst_4 [1] : vector<8x128xf32> to vector<8xf32>
    %10 = vector.shape_cast %9 : vector<8xf32> to vector<8x1xf32>
    %11 = vector.broadcast %10 : vector<8x1xf32> to vector<8x128xf32>
    %12 = arith.cmpf oeq, %8, %11 : vector<8x128xf32>
    %13 = arith.andi %12, %2 : vector<8x128xi1>
    %c128_i32 = arith.constant 128 : i32
    %14 = vector.broadcast %c128_i32 : i32 to vector<8x128xi32>
    %15 = arith.select %13, %0, %14 : vector<8x128xi1>, vector<8x128xi32>
    %cst_5 = arith.constant dense<2147483647> : vector<8xi32>
    %16 = vector.multi_reduction <minsi>, %15, %cst_5 [1] : vector<8x128xi32> to vector<8xi32>
    %17 = vector.shape_cast %16 : vector<8xi32> to vector<8x1xi32>
    %18 = vector.broadcast %17 : vector<8x1xi32> to vector<8x128xi32>
    %19 = arith.cmpi eq, %0, %18 : vector<8x128xi32>
    %cst_6 = arith.constant 0.000000e+00 : f32
    %20 = vector.broadcast %cst_6 : f32 to vector<8x128xf32>
    %21 = arith.select %19, %5, %20 : vector<8x128xi1>, vector<8x128xf32>
    %cst_7 = arith.constant dense<0.000000e+00> : vector<8xf32>
    %22 = vector.multi_reduction <add>, %21, %cst_7 [1] : vector<8x128xf32> to vector<8xf32>
    %23 = vector.shape_cast %22 : vector<8xf32> to vector<8x1xf32>
    %24 = vector.shape_cast %23 : vector<8x1xf32> to vector<8x1xf32>
    %25 = vector.broadcast %24 : vector<8x1xf32> to vector<8x128xf32>
    %26 = arith.select %4, %25, %6 : vector<8x128xi1>, vector<8x128xf32>
    %27 = arith.truncf %26 : vector<8x128xf32> to vector<8x128xbf16>
    %c0_8 = arith.constant 0 : index
    %c0_9 = arith.constant 0 : index
    %28 = vector.load %arg14[%c0_8, %c0_9] : memref<8x512xbf16, #tpu.memory_space<vmem>>, vector<8x128xbf16>
    tpu.vector_store %arg14[%c0_8, %c0_9], %27 {strides = array<i32>} : memref<8x512xbf16, #tpu.memory_space<vmem>>, vector<8x128xbf16>,
    %c0_i32 = arith.constant 0 : i32
    %29 = vector.broadcast %c0_i32 : i32 to vector<8x128xi32>
    %30 = arith.cmpi eq, %0, %29 : vector<8x128xi32>
    %c0_i32_10 = arith.constant 0 : i32
    %31 = vector.shape_cast %17 : vector<8x1xi32> to vector<8x1xi32>
    %32 = vector.broadcast %31 : vector<8x1xi32> to vector<8x128xi32>
    %33 = vector.broadcast %c0_i32_10 : i32 to vector<8x128xi32>
    %34 = arith.select %30, %32, %33 : vector<8x128xi1>, vector<8x128xi32>
    %c0_i32_11 = arith.constant 0 : i32
    %35 = vector.broadcast %c0_i32_11 : i32 to vector<8x128xi32>
    %36 = arith.cmpi eq, %0, %35 : vector<8x128xi32>
    %cst_12 = arith.constant 0.000000e+00 : f32
    %37 = vector.shape_cast %23 : vector<8x1xf32> to vector<8x1xf32>
    %38 = vector.broadcast %37 : vector<8x1xf32> to vector<8x128xf32>
    %39 = vector.broadcast %cst_12 : f32 to vector<8x128xf32>
    %40 = arith.select %36, %38, %39 : vector<8x128xi1>, vector<8x128xf32>
    %c0_13 = arith.constant 0 : index
    %c0_14 = arith.constant 0 : index
    %41 = vector.load %arg14[%c0_13, %c0_14] : memref<8x512xbf16, #tpu.memory_space<vmem>>, vector<8x128xbf16>
    %c0_15 = arith.constant 0 : index
    %c0_16 = arith.constant 0 : index
    %c0_17 = arith.constant 0 : index
    %42 = vector.load %arg3[%c0_15, %c0_16, %c0_17] : memref<4x512x128xbf16, #tpu.memory_space<vmem>>, vector<1x128x128xbf16>
    %43 = vector.shape_cast %42 : vector<1x128x128xbf16> to vector<128x128xbf16>
    %cst_18 = arith.constant dense<0.000000e+00> : vector<8x128xf32>
    %44 = tpu.matmul %41, %43, %cst_18 {dimension_numbers = #tpu.dot_dimension_numbers<[1], [0], [0], [1], [0, 0, 1, 1], [], []>} : vector<8x128xbf16>, vector<128x128xbf16>, vector<8x128xf32> -> vector<8x128xf32>
    %c0_19 = arith.constant 0 : index
    %c0_20 = arith.constant 0 : index
    %c0_21 = arith.constant 0 : index
    %45 = vector.load %arg4[%c0_19, %c0_20, %c0_21] : memref<4x1x128xf32, #tpu.memory_space<vmem>>, vector<1x1x128xf32>
    %46 = vector.shape_cast %45 : vector<1x1x128xf32> to vector<1x128xf32>
    %47 = vector.broadcast %46 : vector<1x128xf32> to vector<8x128xf32>
    %48 = arith.addf %44, %47 : vector<8x128xf32>
    %cst_22 = arith.constant 0.000000e+00 : f32
    %49 = vector.broadcast %cst_22 : f32 to vector<8x128xf32>
    %50 = arith.cmpf oge, %48, %49 : vector<8x128xf32>
    %cst_23 = arith.constant 0.229166672 : f32
    %51 = vector.broadcast %cst_23 : f32 to vector<8x128xf32>
    %52 = arith.mulf %48, %51 : vector<8x128xf32>
    %53 = arith.select %50, %48, %52 : vector<8x128xi1>, vector<8x128xf32>
    %54 = arith.truncf %53 : vector<8x128xf32> to vector<8x128xbf16>
    %c0_24 = arith.constant 0 : index
    %c0_25 = arith.constant 0 : index
    %c0_26 = arith.constant 0 : index
    %55 = vector.load %arg5[%c0_24, %c0_25, %c0_26] : memref<4x128x128xbf16, #tpu.memory_space<vmem>>, vector<1x128x128xbf16>
    %56 = vector.shape_cast %55 : vector<1x128x128xbf16> to vector<128x128xbf16>
    %cst_27 = arith.constant dense<0.000000e+00> : vector<8x128xf32>
    %57 = tpu.matmul %54, %56, %cst_27 {dimension_numbers = #tpu.dot_dimension_numbers<[1], [0], [0], [1], [0, 0, 1, 1], [], []>} : vector<8x128xbf16>, vector<128x128xbf16>, vector<8x128xf32> -> vector<8x128xf32>
    %c0_28 = arith.constant 0 : index
    %c0_29 = arith.constant 0 : index
    %c0_30 = arith.constant 0 : index
    %58 = vector.load %arg6[%c0_28, %c0_29, %c0_30] : memref<4x1x128xf32, #tpu.memory_space<vmem>>, vector<1x1x128xf32>
    %59 = vector.shape_cast %58 : vector<1x1x128xf32> to vector<1x128xf32>
    %60 = vector.broadcast %59 : vector<1x128xf32> to vector<8x128xf32>
    %61 = arith.addf %57, %60 : vector<8x128xf32>
    %cst_31 = arith.constant 0.000000e+00 : f32
    %62 = vector.broadcast %cst_31 : f32 to vector<8x128xf32>
    %63 = arith.cmpf oge, %61, %62 : vector<8x128xf32>
    %cst_32 = arith.constant 0.229166672 : f32
    %64 = vector.broadcast %cst_32 : f32 to vector<8x128xf32>
    %65 = arith.mulf %61, %64 : vector<8x128xf32>
    %66 = arith.select %63, %61, %65 : vector<8x128xi1>, vector<8x128xf32>
    %67 = arith.truncf %66 : vector<8x128xf32> to vector<8x128xbf16>
    %c0_33 = arith.constant 0 : index
    %c0_34 = arith.constant 0 : index
    %c0_35 = arith.constant 0 : index
    %68 = vector.load %arg7[%c0_33, %c0_34, %c0_35] : memref<4x128x128xbf16, #tpu.memory_space<vmem>>, vector<1x128x128xbf16>
    %69 = vector.shape_cast %68 : vector<1x128x128xbf16> to vector<128x128xbf16>
    %cst_36 = arith.constant dense<0.000000e+00> : vector<8x128xf32>
    %70 = tpu.matmul %67, %69, %cst_36 {dimension_numbers = #tpu.dot_dimension_numbers<[1], [0], [0], [1], [0, 0, 1, 1], [], []>} : vector<8x128xbf16>, vector<128x128xbf16>, vector<8x128xf32> -> vector<8x128xf32>
    %c0_37 = arith.constant 0 : index
    %c0_38 = arith.constant 0 : index
    %c0_39 = arith.constant 0 : index
    %71 = vector.load %arg8[%c0_37, %c0_38, %c0_39] : memref<4x1x128xf32, #tpu.memory_space<vmem>>, vector<1x1x128xf32>
    %72 = vector.shape_cast %71 : vector<1x1x128xf32> to vector<1x128xf32>
    %73 = vector.broadcast %72 : vector<1x128xf32> to vector<8x128xf32>
    %74 = arith.addf %70, %73 : vector<8x128xf32>
    %cst_40 = arith.constant 0.000000e+00 : f32
    %75 = vector.broadcast %cst_40 : f32 to vector<8x128xf32>
    %76 = arith.cmpf oge, %74, %75 : vector<8x128xf32>
    %cst_41 = arith.constant 0.229166672 : f32
    %77 = vector.broadcast %cst_41 : f32 to vector<8x128xf32>
    %78 = arith.mulf %74, %77 : vector<8x128xf32>
    %79 = arith.select %76, %74, %78 : vector<8x128xi1>, vector<8x128xf32>
    %80 = arith.truncf %79 : vector<8x128xf32> to vector<8x128xbf16>
    %c0_42 = arith.constant 0 : index
    %c0_43 = arith.constant 0 : index
    %c0_44 = arith.constant 0 : index
    %81 = vector.load %arg9[%c0_42, %c0_43, %c0_44] : memref<4x128x128xbf16, #tpu.memory_space<vmem>>, vector<1x128x128xbf16>
    %82 = vector.shape_cast %81 : vector<1x128x128xbf16> to vector<128x128xbf16>
    %cst_45 = arith.constant dense<0.000000e+00> : vector<8x128xf32>
    %83 = tpu.matmul %80, %82, %cst_45 {dimension_numbers = #tpu.dot_dimension_numbers<[1], [0], [0], [1], [0, 0, 1, 1], [], []>} : vector<8x128xbf16>, vector<128x128xbf16>, vector<8x128xf32> -> vector<8x128xf32>
    %c0_46 = arith.constant 0 : index
    %c0_47 = arith.constant 0 : index
    %c0_48 = arith.constant 0 : index
    %84 = vector.load %arg10[%c0_46, %c0_47, %c0_48] : memref<4x1x128xf32, #tpu.memory_space<vmem>>, vector<1x1x128xf32>
    %85 = vector.shape_cast %84 : vector<1x1x128xf32> to vector<1x128xf32>
    %86 = vector.broadcast %85 : vector<1x128xf32> to vector<8x128xf32>
    %87 = arith.addf %83, %86 : vector<8x128xf32>
    %cst_49 = arith.constant 0.000000e+00 : f32
    %88 = vector.broadcast %cst_49 : f32 to vector<8x128xf32>
    %89 = arith.cmpf oge, %87, %88 : vector<8x128xf32>
    %cst_50 = arith.constant 0.229166672 : f32
    %90 = vector.broadcast %cst_50 : f32 to vector<8x128xf32>
    %91 = arith.mulf %87, %90 : vector<8x128xf32>
    %92 = arith.select %89, %87, %91 : vector<8x128xi1>, vector<8x128xf32>
    %cst_51 = arith.constant dense<0xFF800000> : vector<8xf32>
    %93 = vector.multi_reduction <maximumf>, %92, %cst_51 [1] : vector<8x128xf32> to vector<8xf32>
    %94 = vector.shape_cast %93 : vector<8xf32> to vector<8x1xf32>
    %95 = vector.broadcast %94 : vector<8x1xf32> to vector<8x128xf32>
    %96 = arith.subf %92, %95 : vector<8x128xf32>
    %97 = math.exp %96 : vector<8x128xf32>
    %cst_52 = arith.constant dense<0.000000e+00> : vector<8xf32>
    %98 = vector.multi_reduction <add>, %97, %cst_52 [1] : vector<8x128xf32> to vector<8xf32>
    %99 = vector.shape_cast %98 : vector<8xf32> to vector<8x1xf32>
    %100 = tpu.reciprocal %99 {approx = true} : vector<8x1xf32> -> vector<8x1xf32>
    %101 = vector.broadcast %100 : vector<8x1xf32> to vector<8x128xf32>
    %102 = arith.mulf %97, %101 : vector<8x128xf32>
    %c0_53 = arith.constant 0 : index
    %c0_54 = arith.constant 0 : index
    %103 = vector.load %arg11[%c0_53, %c0_54] : memref<8x512xf32, #tpu.memory_space<vmem>>, vector<8x128xf32>
    tpu.vector_store %arg11[%c0_53, %c0_54], %102 {strides = array<i32>} : memref<8x512xf32, #tpu.memory_space<vmem>>, vector<8x128xf32>,
    %cst_55 = arith.constant 0xFF800000 : f32
    %104 = vector.broadcast %cst_55 : f32 to vector<8x128xf32>
    %105 = arith.select %2, %102, %104 : vector<8x128xi1>, vector<8x128xf32>
    %cst_56 = arith.constant dense<0xFF800000> : vector<8xf32>
    %106 = vector.multi_reduction <maximumf>, %105, %cst_56 [1] : vector<8x128xf32> to vector<8xf32>
    %107 = vector.shape_cast %106 : vector<8xf32> to vector<8x1xf32>
    %108 = vector.broadcast %107 : vector<8x1xf32> to vector<8x128xf32>
    %109 = arith.cmpf oeq, %105, %108 : vector<8x128xf32>
    %110 = arith.andi %109, %2 : vector<8x128xi1>
    %c128_i32_57 = arith.constant 128 : i32
    %111 = vector.broadcast %c128_i32_57 : i32 to vector<8x128xi32>
    %112 = arith.select %110, %0, %111 : vector<8x128xi1>, vector<8x128xi32>
    %cst_58 = arith.constant dense<2147483647> : vector<8xi32>
    %113 = vector.multi_reduction <minsi>, %112, %cst_58 [1] : vector<8x128xi32> to vector<8xi32>
    %114 = vector.shape_cast %113 : vector<8xi32> to vector<8x1xi32>
    %115 = vector.broadcast %114 : vector<8x1xi32> to vector<8x128xi32>
    %116 = arith.cmpi eq, %0, %115 : vector<8x128xi32>
    %cst_59 = arith.constant 0.000000e+00 : f32
    %117 = vector.broadcast %cst_59 : f32 to vector<8x128xf32>
    %118 = arith.select %116, %5, %117 : vector<8x128xi1>, vector<8x128xf32>
    %cst_60 = arith.constant dense<0.000000e+00> : vector<8xf32>
    %119 = vector.multi_reduction <add>, %118, %cst_60 [1] : vector<8x128xf32> to vector<8xf32>
    %120 = vector.shape_cast %119 : vector<8xf32> to vector<8x1xf32>
    %c1_i32 = arith.constant 1 : i32
    %121 = vector.broadcast %c1_i32 : i32 to vector<8x128xi32>
    %122 = arith.cmpi eq, %0, %121 : vector<8x128xi32>
    %123 = vector.shape_cast %114 : vector<8x1xi32> to vector<8x1xi32>
    %124 = vector.broadcast %123 : vector<8x1xi32> to vector<8x128xi32>
    %125 = arith.select %122, %124, %34 : vector<8x128xi1>, vector<8x128xi32>
    %c1_i32_61 = arith.constant 1 : i32
    %126 = vector.broadcast %c1_i32_61 : i32 to vector<8x128xi32>
    %127 = arith.cmpi eq, %0, %126 : vector<8x128xi32>
    %128 = vector.shape_cast %120 : vector<8x1xf32> to vector<8x1xf32>
    %129 = vector.broadcast %128 : vector<8x1xf32> to vector<8x128xf32>
    %130 = arith.select %127, %129, %40 : vector<8x128xi1>, vector<8x128xf32>
    %131 = vector.shape_cast %120 : vector<8x1xf32> to vector<8x1xf32>
    %132 = vector.broadcast %131 : vector<8x1xf32> to vector<8x128xf32>
    %133 = arith.select %4, %132, %102 : vector<8x128xi1>, vector<8x128xf32>
    %134 = arith.truncf %133 : vector<8x128xf32> to vector<8x128xbf16>
    %c0_62 = arith.constant 0 : index
    %c128 = arith.constant 128 : index
    %135 = vector.load %arg14[%c0_62, %c128] : memref<8x512xbf16, #tpu.memory_space<vmem>>, vector<8x128xbf16>
    tpu.vector_store %arg14[%c0_62, %c128], %134 {strides = array<i32>} : memref<8x512xbf16, #tpu.memory_space<vmem>>, vector<8x128xbf16>,
    %c0_63 = arith.constant 0 : index
    %c0_64 = arith.constant 0 : index
    %136 = vector.load %arg14[%c0_63, %c0_64] : memref<8x512xbf16, #tpu.memory_space<vmem>>, vector<8x256xbf16>
    %c1 = arith.constant 1 : index
    %c0_65 = arith.constant 0 : index
    %c0_66 = arith.constant 0 : index
    %137 = vector.load %arg3[%c1, %c0_65, %c0_66] : memref<4x512x128xbf16, #tpu.memory_space<vmem>>, vector<1x256x128xbf16>
    %138 = vector.shape_cast %137 : vector<1x256x128xbf16> to vector<256x128xbf16>
    %cst_67 = arith.constant dense<0.000000e+00> : vector<8x128xf32>
    %139 = tpu.matmul %136, %138, %cst_67 {dimension_numbers = #tpu.dot_dimension_numbers<[1], [0], [0], [1], [0, 0, 1, 1], [], []>} : vector<8x256xbf16>, vector<256x128xbf16>, vector<8x128xf32> -> vector<8x128xf32>
    %c1_68 = arith.constant 1 : index
    %c0_69 = arith.constant 0 : index
    %c0_70 = arith.constant 0 : index
    %140 = vector.load %arg4[%c1_68, %c0_69, %c0_70] : memref<4x1x128xf32, #tpu.memory_space<vmem>>, vector<1x1x128xf32>
    %141 = vector.shape_cast %140 : vector<1x1x128xf32> to vector<1x128xf32>
    %142 = vector.broadcast %141 : vector<1x128xf32> to vector<8x128xf32>
    %143 = arith.addf %139, %142 : vector<8x128xf32>
    %cst_71 = arith.constant 0.000000e+00 : f32
    %144 = vector.broadcast %cst_71 : f32 to vector<8x128xf32>
    %145 = arith.cmpf oge, %143, %144 : vector<8x128xf32>
    %cst_72 = arith.constant 0.229166672 : f32
    %146 = vector.broadcast %cst_72 : f32 to vector<8x128xf32>
    %147 = arith.mulf %143, %146 : vector<8x128xf32>
    %148 = arith.select %145, %143, %147 : vector<8x128xi1>, vector<8x128xf32>
    %149 = arith.truncf %148 : vector<8x128xf32> to vector<8x128xbf16>
    %c1_73 = arith.constant 1 : index
    %c0_74 = arith.constant 0 : index
    %c0_75 = arith.constant 0 : index
    %150 = vector.load %arg5[%c1_73, %c0_74, %c0_75] : memref<4x128x128xbf16, #tpu.memory_space<vmem>>, vector<1x128x128xbf16>
    %151 = vector.shape_cast %150 : vector<1x128x128xbf16> to vector<128x128xbf16>
    %cst_76 = arith.constant dense<0.000000e+00> : vector<8x128xf32>
    %152 = tpu.matmul %149, %151, %cst_76 {dimension_numbers = #tpu.dot_dimension_numbers<[1], [0], [0], [1], [0, 0, 1, 1], [], []>} : vector<8x128xbf16>, vector<128x128xbf16>, vector<8x128xf32> -> vector<8x128xf32>
    %c1_77 = arith.constant 1 : index
    %c0_78 = arith.constant 0 : index
    %c0_79 = arith.constant 0 : index
    %153 = vector.load %arg6[%c1_77, %c0_78, %c0_79] : memref<4x1x128xf32, #tpu.memory_space<vmem>>, vector<1x1x128xf32>
    %154 = vector.shape_cast %153 : vector<1x1x128xf32> to vector<1x128xf32>
    %155 = vector.broadcast %154 : vector<1x128xf32> to vector<8x128xf32>
    %156 = arith.addf %152, %155 : vector<8x128xf32>
    %cst_80 = arith.constant 0.000000e+00 : f32
    %157 = vector.broadcast %cst_80 : f32 to vector<8x128xf32>
    %158 = arith.cmpf oge, %156, %157 : vector<8x128xf32>
    %cst_81 = arith.constant 0.229166672 : f32
    %159 = vector.broadcast %cst_81 : f32 to vector<8x128xf32>
    %160 = arith.mulf %156, %159 : vector<8x128xf32>
    %161 = arith.select %158, %156, %160 : vector<8x128xi1>, vector<8x128xf32>
    %162 = arith.truncf %161 : vector<8x128xf32> to vector<8x128xbf16>
    %c1_82 = arith.constant 1 : index
    %c0_83 = arith.constant 0 : index
    %c0_84 = arith.constant 0 : index
    %163 = vector.load %arg7[%c1_82, %c0_83, %c0_84] : memref<4x128x128xbf16, #tpu.memory_space<vmem>>, vector<1x128x128xbf16>
    %164 = vector.shape_cast %163 : vector<1x128x128xbf16> to vector<128x128xbf16>
    %cst_85 = arith.constant dense<0.000000e+00> : vector<8x128xf32>
    %165 = tpu.matmul %162, %164, %cst_85 {dimension_numbers = #tpu.dot_dimension_numbers<[1], [0], [0], [1], [0, 0, 1, 1], [], []>} : vector<8x128xbf16>, vector<128x128xbf16>, vector<8x128xf32> -> vector<8x128xf32>
    %c1_86 = arith.constant 1 : index
    %c0_87 = arith.constant 0 : index
    %c0_88 = arith.constant 0 : index
    %166 = vector.load %arg8[%c1_86, %c0_87, %c0_88] : memref<4x1x128xf32, #tpu.memory_space<vmem>>, vector<1x1x128xf32>
    %167 = vector.shape_cast %166 : vector<1x1x128xf32> to vector<1x128xf32>
    %168 = vector.broadcast %167 : vector<1x128xf32> to vector<8x128xf32>
    %169 = arith.addf %165, %168 : vector<8x128xf32>
    %cst_89 = arith.constant 0.000000e+00 : f32
    %170 = vector.broadcast %cst_89 : f32 to vector<8x128xf32>
    %171 = arith.cmpf oge, %169, %170 : vector<8x128xf32>
    %cst_90 = arith.constant 0.229166672 : f32
    %172 = vector.broadcast %cst_90 : f32 to vector<8x128xf32>
    %173 = arith.mulf %169, %172 : vector<8x128xf32>
    %174 = arith.select %171, %169, %173 : vector<8x128xi1>, vector<8x128xf32>
    %175 = arith.truncf %174 : vector<8x128xf32> to vector<8x128xbf16>
    %c1_91 = arith.constant 1 : index
    %c0_92 = arith.constant 0 : index
    %c0_93 = arith.constant 0 : index
    %176 = vector.load %arg9[%c1_91, %c0_92, %c0_93] : memref<4x128x128xbf16, #tpu.memory_space<vmem>>, vector<1x128x128xbf16>
    %177 = vector.shape_cast %176 : vector<1x128x128xbf16> to vector<128x128xbf16>
    %cst_94 = arith.constant dense<0.000000e+00> : vector<8x128xf32>
    %178 = tpu.matmul %175, %177, %cst_94 {dimension_numbers = #tpu.dot_dimension_numbers<[1], [0], [0], [1], [0, 0, 1, 1], [], []>} : vector<8x128xbf16>, vector<128x128xbf16>, vector<8x128xf32> -> vector<8x128xf32>
    %c1_95 = arith.constant 1 : index
    %c0_96 = arith.constant 0 : index
    %c0_97 = arith.constant 0 : index
    %179 = vector.load %arg10[%c1_95, %c0_96, %c0_97] : memref<4x1x128xf32, #tpu.memory_space<vmem>>, vector<1x1x128xf32>
    %180 = vector.shape_cast %179 : vector<1x1x128xf32> to vector<1x128xf32>
    %181 = vector.broadcast %180 : vector<1x128xf32> to vector<8x128xf32>
    %182 = arith.addf %178, %181 : vector<8x128xf32>
    %cst_98 = arith.constant 0.000000e+00 : f32
    %183 = vector.broadcast %cst_98 : f32 to vector<8x128xf32>
    %184 = arith.cmpf oge, %182, %183 : vector<8x128xf32>
    %cst_99 = arith.constant 0.229166672 : f32
    %185 = vector.broadcast %cst_99 : f32 to vector<8x128xf32>
    %186 = arith.mulf %182, %185 : vector<8x128xf32>
    %187 = arith.select %184, %182, %186 : vector<8x128xi1>, vector<8x128xf32>
    %cst_100 = arith.constant dense<0xFF800000> : vector<8xf32>
    %188 = vector.multi_reduction <maximumf>, %187, %cst_100 [1] : vector<8x128xf32> to vector<8xf32>
    %189 = vector.shape_cast %188 : vector<8xf32> to vector<8x1xf32>
    %190 = vector.broadcast %189 : vector<8x1xf32> to vector<8x128xf32>
    %191 = arith.subf %187, %190 : vector<8x128xf32>
    %192 = math.exp %191 : vector<8x128xf32>
    %cst_101 = arith.constant dense<0.000000e+00> : vector<8xf32>
    %193 = vector.multi_reduction <add>, %192, %cst_101 [1] : vector<8x128xf32> to vector<8xf32>
    %194 = vector.shape_cast %193 : vector<8xf32> to vector<8x1xf32>
    %195 = tpu.reciprocal %194 {approx = true} : vector<8x1xf32> -> vector<8x1xf32>
    %196 = vector.broadcast %195 : vector<8x1xf32> to vector<8x128xf32>
    %197 = arith.mulf %192, %196 : vector<8x128xf32>
    %c0_102 = arith.constant 0 : index
    %c128_103 = arith.constant 128 : index
    %198 = vector.load %arg11[%c0_102, %c128_103] : memref<8x512xf32, #tpu.memory_space<vmem>>, vector<8x128xf32>
    tpu.vector_store %arg11[%c0_102, %c128_103], %197 {strides = array<i32>} : memref<8x512xf32, #tpu.memory_space<vmem>>, vector<8x128xf32>,
    %cst_104 = arith.constant 0xFF800000 : f32
    %199 = vector.broadcast %cst_104 : f32 to vector<8x128xf32>
    %200 = arith.select %2, %197, %199 : vector<8x128xi1>, vector<8x128xf32>
    %cst_105 = arith.constant dense<0xFF800000> : vector<8xf32>
    %201 = vector.multi_reduction <maximumf>, %200, %cst_105 [1] : vector<8x128xf32> to vector<8xf32>
    %202 = vector.shape_cast %201 : vector<8xf32> to vector<8x1xf32>
    %203 = vector.broadcast %202 : vector<8x1xf32> to vector<8x128xf32>
    %204 = arith.cmpf oeq, %200, %203 : vector<8x128xf32>
    %205 = arith.andi %204, %2 : vector<8x128xi1>
    %c128_i32_106 = arith.constant 128 : i32
    %206 = vector.broadcast %c128_i32_106 : i32 to vector<8x128xi32>
    %207 = arith.select %205, %0, %206 : vector<8x128xi1>, vector<8x128xi32>
    %cst_107 = arith.constant dense<2147483647> : vector<8xi32>
    %208 = vector.multi_reduction <minsi>, %207, %cst_107 [1] : vector<8x128xi32> to vector<8xi32>
    %209 = vector.shape_cast %208 : vector<8xi32> to vector<8x1xi32>
    %210 = vector.broadcast %209 : vector<8x1xi32> to vector<8x128xi32>
    %211 = arith.cmpi eq, %0, %210 : vector<8x128xi32>
    %cst_108 = arith.constant 0.000000e+00 : f32
    %212 = vector.broadcast %cst_108 : f32 to vector<8x128xf32>
    %213 = arith.select %211, %5, %212 : vector<8x128xi1>, vector<8x128xf32>
    %cst_109 = arith.constant dense<0.000000e+00> : vector<8xf32>
    %214 = vector.multi_reduction <add>, %213, %cst_109 [1] : vector<8x128xf32> to vector<8xf32>
    %215 = vector.shape_cast %214 : vector<8xf32> to vector<8x1xf32>
    %c2_i32 = arith.constant 2 : i32
    %216 = vector.broadcast %c2_i32 : i32 to vector<8x128xi32>
    %217 = arith.cmpi eq, %0, %216 : vector<8x128xi32>
    %218 = vector.shape_cast %209 : vector<8x1xi32> to vector<8x1xi32>
    %219 = vector.broadcast %218 : vector<8x1xi32> to vector<8x128xi32>
    %220 = arith.select %217, %219, %125 : vector<8x128xi1>, vector<8x128xi32>
    %c2_i32_110 = arith.constant 2 : i32
    %221 = vector.broadcast %c2_i32_110 : i32 to vector<8x128xi32>
    %222 = arith.cmpi eq, %0, %221 : vector<8x128xi32>
    %223 = vector.shape_cast %215 : vector<8x1xf32> to vector<8x1xf32>
    %224 = vector.broadcast %223 : vector<8x1xf32> to vector<8x128xf32>
    %225 = arith.select %222, %224, %130 : vector<8x128xi1>, vector<8x128xf32>
    %226 = vector.shape_cast %215 : vector<8x1xf32> to vector<8x1xf32>
    %227 = vector.broadcast %226 : vector<8x1xf32> to vector<8x128xf32>
    %228 = arith.select %4, %227, %197 : vector<8x128xi1>, vector<8x128xf32>
    %229 = arith.truncf %228 : vector<8x128xf32> to vector<8x128xbf16>
    %c0_111 = arith.constant 0 : index
    %c256 = arith.constant 256 : index
    %230 = vector.load %arg14[%c0_111, %c256] : memref<8x512xbf16, #tpu.memory_space<vmem>>, vector<8x128xbf16>
    tpu.vector_store %arg14[%c0_111, %c256], %229 {strides = array<i32>} : memref<8x512xbf16, #tpu.memory_space<vmem>>, vector<8x128xbf16>,
    %c0_112 = arith.constant 0 : index
    %c0_113 = arith.constant 0 : index
    %231 = vector.load %arg14[%c0_112, %c0_113] : memref<8x512xbf16, #tpu.memory_space<vmem>>, vector<8x384xbf16>
    %c2 = arith.constant 2 : index
    %c0_114 = arith.constant 0 : index
    %c0_115 = arith.constant 0 : index
    %232 = vector.load %arg3[%c2, %c0_114, %c0_115] : memref<4x512x128xbf16, #tpu.memory_space<vmem>>, vector<1x384x128xbf16>
    %233 = vector.shape_cast %232 : vector<1x384x128xbf16> to vector<384x128xbf16>
    %cst_116 = arith.constant dense<0.000000e+00> : vector<8x128xf32>
    %234 = tpu.matmul %231, %233, %cst_116 {dimension_numbers = #tpu.dot_dimension_numbers<[1], [0], [0], [1], [0, 0, 1, 1], [], []>} : vector<8x384xbf16>, vector<384x128xbf16>, vector<8x128xf32> -> vector<8x128xf32>
    %c2_117 = arith.constant 2 : index
    %c0_118 = arith.constant 0 : index
    %c0_119 = arith.constant 0 : index
    %235 = vector.load %arg4[%c2_117, %c0_118, %c0_119] : memref<4x1x128xf32, #tpu.memory_space<vmem>>, vector<1x1x128xf32>
    %236 = vector.shape_cast %235 : vector<1x1x128xf32> to vector<1x128xf32>
    %237 = vector.broadcast %236 : vector<1x128xf32> to vector<8x128xf32>
    %238 = arith.addf %234, %237 : vector<8x128xf32>
    %cst_120 = arith.constant 0.000000e+00 : f32
    %239 = vector.broadcast %cst_120 : f32 to vector<8x128xf32>
    %240 = arith.cmpf oge, %238, %239 : vector<8x128xf32>
    %cst_121 = arith.constant 0.229166672 : f32
    %241 = vector.broadcast %cst_121 : f32 to vector<8x128xf32>
    %242 = arith.mulf %238, %241 : vector<8x128xf32>
    %243 = arith.select %240, %238, %242 : vector<8x128xi1>, vector<8x128xf32>
    %244 = arith.truncf %243 : vector<8x128xf32> to vector<8x128xbf16>
    %c2_122 = arith.constant 2 : index
    %c0_123 = arith.constant 0 : index
    %c0_124 = arith.constant 0 : index
    %245 = vector.load %arg5[%c2_122, %c0_123, %c0_124] : memref<4x128x128xbf16, #tpu.memory_space<vmem>>, vector<1x128x128xbf16>
    %246 = vector.shape_cast %245 : vector<1x128x128xbf16> to vector<128x128xbf16>
    %cst_125 = arith.constant dense<0.000000e+00> : vector<8x128xf32>
    %247 = tpu.matmul %244, %246, %cst_125 {dimension_numbers = #tpu.dot_dimension_numbers<[1], [0], [0], [1], [0, 0, 1, 1], [], []>} : vector<8x128xbf16>, vector<128x128xbf16>, vector<8x128xf32> -> vector<8x128xf32>
    %c2_126 = arith.constant 2 : index
    %c0_127 = arith.constant 0 : index
    %c0_128 = arith.constant 0 : index
    %248 = vector.load %arg6[%c2_126, %c0_127, %c0_128] : memref<4x1x128xf32, #tpu.memory_space<vmem>>, vector<1x1x128xf32>
    %249 = vector.shape_cast %248 : vector<1x1x128xf32> to vector<1x128xf32>
    %250 = vector.broadcast %249 : vector<1x128xf32> to vector<8x128xf32>
    %251 = arith.addf %247, %250 : vector<8x128xf32>
    %cst_129 = arith.constant 0.000000e+00 : f32
    %252 = vector.broadcast %cst_129 : f32 to vector<8x128xf32>
    %253 = arith.cmpf oge, %251, %252 : vector<8x128xf32>
    %cst_130 = arith.constant 0.229166672 : f32
    %254 = vector.broadcast %cst_130 : f32 to vector<8x128xf32>
    %255 = arith.mulf %251, %254 : vector<8x128xf32>
    %256 = arith.select %253, %251, %255 : vector<8x128xi1>, vector<8x128xf32>
    %257 = arith.truncf %256 : vector<8x128xf32> to vector<8x128xbf16>
    %c2_131 = arith.constant 2 : index
    %c0_132 = arith.constant 0 : index
    %c0_133 = arith.constant 0 : index
    %258 = vector.load %arg7[%c2_131, %c0_132, %c0_133] : memref<4x128x128xbf16, #tpu.memory_space<vmem>>, vector<1x128x128xbf16>
    %259 = vector.shape_cast %258 : vector<1x128x128xbf16> to vector<128x128xbf16>
    %cst_134 = arith.constant dense<0.000000e+00> : vector<8x128xf32>
    %260 = tpu.matmul %257, %259, %cst_134 {dimension_numbers = #tpu.dot_dimension_numbers<[1], [0], [0], [1], [0, 0, 1, 1], [], []>} : vector<8x128xbf16>, vector<128x128xbf16>, vector<8x128xf32> -> vector<8x128xf32>
    %c2_135 = arith.constant 2 : index
    %c0_136 = arith.constant 0 : index
    %c0_137 = arith.constant 0 : index
    %261 = vector.load %arg8[%c2_135, %c0_136, %c0_137] : memref<4x1x128xf32, #tpu.memory_space<vmem>>, vector<1x1x128xf32>
    %262 = vector.shape_cast %261 : vector<1x1x128xf32> to vector<1x128xf32>
    %263 = vector.broadcast %262 : vector<1x128xf32> to vector<8x128xf32>
    %264 = arith.addf %260, %263 : vector<8x128xf32>
    %cst_138 = arith.constant 0.000000e+00 : f32
    %265 = vector.broadcast %cst_138 : f32 to vector<8x128xf32>
    %266 = arith.cmpf oge, %264, %265 : vector<8x128xf32>
    %cst_139 = arith.constant 0.229166672 : f32
    %267 = vector.broadcast %cst_139 : f32 to vector<8x128xf32>
    %268 = arith.mulf %264, %267 : vector<8x128xf32>
    %269 = arith.select %266, %264, %268 : vector<8x128xi1>, vector<8x128xf32>
    %270 = arith.truncf %269 : vector<8x128xf32> to vector<8x128xbf16>
    %c2_140 = arith.constant 2 : index
    %c0_141 = arith.constant 0 : index
    %c0_142 = arith.constant 0 : index
    %271 = vector.load %arg9[%c2_140, %c0_141, %c0_142] : memref<4x128x128xbf16, #tpu.memory_space<vmem>>, vector<1x128x128xbf16>
    %272 = vector.shape_cast %271 : vector<1x128x128xbf16> to vector<128x128xbf16>
    %cst_143 = arith.constant dense<0.000000e+00> : vector<8x128xf32>
    %273 = tpu.matmul %270, %272, %cst_143 {dimension_numbers = #tpu.dot_dimension_numbers<[1], [0], [0], [1], [0, 0, 1, 1], [], []>} : vector<8x128xbf16>, vector<128x128xbf16>, vector<8x128xf32> -> vector<8x128xf32>
    %c2_144 = arith.constant 2 : index
    %c0_145 = arith.constant 0 : index
    %c0_146 = arith.constant 0 : index
    %274 = vector.load %arg10[%c2_144, %c0_145, %c0_146] : memref<4x1x128xf32, #tpu.memory_space<vmem>>, vector<1x1x128xf32>
    %275 = vector.shape_cast %274 : vector<1x1x128xf32> to vector<1x128xf32>
    %276 = vector.broadcast %275 : vector<1x128xf32> to vector<8x128xf32>
    %277 = arith.addf %273, %276 : vector<8x128xf32>
    %cst_147 = arith.constant 0.000000e+00 : f32
    %278 = vector.broadcast %cst_147 : f32 to vector<8x128xf32>
    %279 = arith.cmpf oge, %277, %278 : vector<8x128xf32>
    %cst_148 = arith.constant 0.229166672 : f32
    %280 = vector.broadcast %cst_148 : f32 to vector<8x128xf32>
    %281 = arith.mulf %277, %280 : vector<8x128xf32>
    %282 = arith.select %279, %277, %281 : vector<8x128xi1>, vector<8x128xf32>
    %cst_149 = arith.constant dense<0xFF800000> : vector<8xf32>
    %283 = vector.multi_reduction <maximumf>, %282, %cst_149 [1] : vector<8x128xf32> to vector<8xf32>
    %284 = vector.shape_cast %283 : vector<8xf32> to vector<8x1xf32>
    %285 = vector.broadcast %284 : vector<8x1xf32> to vector<8x128xf32>
    %286 = arith.subf %282, %285 : vector<8x128xf32>
    %287 = math.exp %286 : vector<8x128xf32>
    %cst_150 = arith.constant dense<0.000000e+00> : vector<8xf32>
    %288 = vector.multi_reduction <add>, %287, %cst_150 [1] : vector<8x128xf32> to vector<8xf32>
    %289 = vector.shape_cast %288 : vector<8xf32> to vector<8x1xf32>
    %290 = tpu.reciprocal %289 {approx = true} : vector<8x1xf32> -> vector<8x1xf32>
    %291 = vector.broadcast %290 : vector<8x1xf32> to vector<8x128xf32>
    %292 = arith.mulf %287, %291 : vector<8x128xf32>
    %c0_151 = arith.constant 0 : index
    %c256_152 = arith.constant 256 : index
    %293 = vector.load %arg11[%c0_151, %c256_152] : memref<8x512xf32, #tpu.memory_space<vmem>>, vector<8x128xf32>
    tpu.vector_store %arg11[%c0_151, %c256_152], %292 {strides = array<i32>} : memref<8x512xf32, #tpu.memory_space<vmem>>, vector<8x128xf32>,
    %cst_153 = arith.constant 0xFF800000 : f32
    %294 = vector.broadcast %cst_153 : f32 to vector<8x128xf32>
    %295 = arith.select %2, %292, %294 : vector<8x128xi1>, vector<8x128xf32>
    %cst_154 = arith.constant dense<0xFF800000> : vector<8xf32>
    %296 = vector.multi_reduction <maximumf>, %295, %cst_154 [1] : vector<8x128xf32> to vector<8xf32>
    %297 = vector.shape_cast %296 : vector<8xf32> to vector<8x1xf32>
    %298 = vector.broadcast %297 : vector<8x1xf32> to vector<8x128xf32>
    %299 = arith.cmpf oeq, %295, %298 : vector<8x128xf32>
    %300 = arith.andi %299, %2 : vector<8x128xi1>
    %c128_i32_155 = arith.constant 128 : i32
    %301 = vector.broadcast %c128_i32_155 : i32 to vector<8x128xi32>
    %302 = arith.select %300, %0, %301 : vector<8x128xi1>, vector<8x128xi32>
    %cst_156 = arith.constant dense<2147483647> : vector<8xi32>
    %303 = vector.multi_reduction <minsi>, %302, %cst_156 [1] : vector<8x128xi32> to vector<8xi32>
    %304 = vector.shape_cast %303 : vector<8xi32> to vector<8x1xi32>
    %305 = vector.broadcast %304 : vector<8x1xi32> to vector<8x128xi32>
    %306 = arith.cmpi eq, %0, %305 : vector<8x128xi32>
    %cst_157 = arith.constant 0.000000e+00 : f32
    %307 = vector.broadcast %cst_157 : f32 to vector<8x128xf32>
    %308 = arith.select %306, %5, %307 : vector<8x128xi1>, vector<8x128xf32>
    %cst_158 = arith.constant dense<0.000000e+00> : vector<8xf32>
    %309 = vector.multi_reduction <add>, %308, %cst_158 [1] : vector<8x128xf32> to vector<8xf32>
    %310 = vector.shape_cast %309 : vector<8xf32> to vector<8x1xf32>
    %c3_i32 = arith.constant 3 : i32
    %311 = vector.broadcast %c3_i32 : i32 to vector<8x128xi32>
    %312 = arith.cmpi eq, %0, %311 : vector<8x128xi32>
    %313 = vector.shape_cast %304 : vector<8x1xi32> to vector<8x1xi32>
    %314 = vector.broadcast %313 : vector<8x1xi32> to vector<8x128xi32>
    %315 = arith.select %312, %314, %220 : vector<8x128xi1>, vector<8x128xi32>
    %c3_i32_159 = arith.constant 3 : i32
    %316 = vector.broadcast %c3_i32_159 : i32 to vector<8x128xi32>
    %317 = arith.cmpi eq, %0, %316 : vector<8x128xi32>
    %318 = vector.shape_cast %310 : vector<8x1xf32> to vector<8x1xf32>
    %319 = vector.broadcast %318 : vector<8x1xf32> to vector<8x128xf32>
    %320 = arith.select %317, %319, %225 : vector<8x128xi1>, vector<8x128xf32>
    %321 = vector.shape_cast %310 : vector<8x1xf32> to vector<8x1xf32>
    %322 = vector.broadcast %321 : vector<8x1xf32> to vector<8x128xf32>
    %323 = arith.select %4, %322, %292 : vector<8x128xi1>, vector<8x128xf32>
    %324 = arith.truncf %323 : vector<8x128xf32> to vector<8x128xbf16>
    %c0_160 = arith.constant 0 : index
    %c384 = arith.constant 384 : index
    %325 = vector.load %arg14[%c0_160, %c384] : memref<8x512xbf16, #tpu.memory_space<vmem>>, vector<8x128xbf16>
    tpu.vector_store %arg14[%c0_160, %c384], %324 {strides = array<i32>} : memref<8x512xbf16, #tpu.memory_space<vmem>>, vector<8x128xbf16>,
    %c0_161 = arith.constant 0 : index
    %c0_162 = arith.constant 0 : index
    %326 = vector.load %arg14[%c0_161, %c0_162] : memref<8x512xbf16, #tpu.memory_space<vmem>>, vector<8x512xbf16>
    %c3 = arith.constant 3 : index
    %c0_163 = arith.constant 0 : index
    %c0_164 = arith.constant 0 : index
    %327 = vector.load %arg3[%c3, %c0_163, %c0_164] : memref<4x512x128xbf16, #tpu.memory_space<vmem>>, vector<1x512x128xbf16>
    %328 = vector.shape_cast %327 : vector<1x512x128xbf16> to vector<512x128xbf16>
    %cst_165 = arith.constant dense<0.000000e+00> : vector<8x128xf32>
    %329 = tpu.matmul %326, %328, %cst_165 {dimension_numbers = #tpu.dot_dimension_numbers<[1], [0], [0], [1], [0, 0, 1, 1], [], []>} : vector<8x512xbf16>, vector<512x128xbf16>, vector<8x128xf32> -> vector<8x128xf32>
    %c3_166 = arith.constant 3 : index
    %c0_167 = arith.constant 0 : index
    %c0_168 = arith.constant 0 : index
    %330 = vector.load %arg4[%c3_166, %c0_167, %c0_168] : memref<4x1x128xf32, #tpu.memory_space<vmem>>, vector<1x1x128xf32>
    %331 = vector.shape_cast %330 : vector<1x1x128xf32> to vector<1x128xf32>
    %332 = vector.broadcast %331 : vector<1x128xf32> to vector<8x128xf32>
    %333 = arith.addf %329, %332 : vector<8x128xf32>
    %cst_169 = arith.constant 0.000000e+00 : f32
    %334 = vector.broadcast %cst_169 : f32 to vector<8x128xf32>
    %335 = arith.cmpf oge, %333, %334 : vector<8x128xf32>
    %cst_170 = arith.constant 0.229166672 : f32
    %336 = vector.broadcast %cst_170 : f32 to vector<8x128xf32>
    %337 = arith.mulf %333, %336 : vector<8x128xf32>
    %338 = arith.select %335, %333, %337 : vector<8x128xi1>, vector<8x128xf32>
    %339 = arith.truncf %338 : vector<8x128xf32> to vector<8x128xbf16>
    %c3_171 = arith.constant 3 : index
    %c0_172 = arith.constant 0 : index
    %c0_173 = arith.constant 0 : index
    %340 = vector.load %arg5[%c3_171, %c0_172, %c0_173] : memref<4x128x128xbf16, #tpu.memory_space<vmem>>, vector<1x128x128xbf16>
    %341 = vector.shape_cast %340 : vector<1x128x128xbf16> to vector<128x128xbf16>
    %cst_174 = arith.constant dense<0.000000e+00> : vector<8x128xf32>
    %342 = tpu.matmul %339, %341, %cst_174 {dimension_numbers = #tpu.dot_dimension_numbers<[1], [0], [0], [1], [0, 0, 1, 1], [], []>} : vector<8x128xbf16>, vector<128x128xbf16>, vector<8x128xf32> -> vector<8x128xf32>
    %c3_175 = arith.constant 3 : index
    %c0_176 = arith.constant 0 : index
    %c0_177 = arith.constant 0 : index
    %343 = vector.load %arg6[%c3_175, %c0_176, %c0_177] : memref<4x1x128xf32, #tpu.memory_space<vmem>>, vector<1x1x128xf32>
    %344 = vector.shape_cast %343 : vector<1x1x128xf32> to vector<1x128xf32>
    %345 = vector.broadcast %344 : vector<1x128xf32> to vector<8x128xf32>
    %346 = arith.addf %342, %345 : vector<8x128xf32>
    %cst_178 = arith.constant 0.000000e+00 : f32
    %347 = vector.broadcast %cst_178 : f32 to vector<8x128xf32>
    %348 = arith.cmpf oge, %346, %347 : vector<8x128xf32>
    %cst_179 = arith.constant 0.229166672 : f32
    %349 = vector.broadcast %cst_179 : f32 to vector<8x128xf32>
    %350 = arith.mulf %346, %349 : vector<8x128xf32>
    %351 = arith.select %348, %346, %350 : vector<8x128xi1>, vector<8x128xf32>
    %352 = arith.truncf %351 : vector<8x128xf32> to vector<8x128xbf16>
    %c3_180 = arith.constant 3 : index
    %c0_181 = arith.constant 0 : index
    %c0_182 = arith.constant 0 : index
    %353 = vector.load %arg7[%c3_180, %c0_181, %c0_182] : memref<4x128x128xbf16, #tpu.memory_space<vmem>>, vector<1x128x128xbf16>
    %354 = vector.shape_cast %353 : vector<1x128x128xbf16> to vector<128x128xbf16>
    %cst_183 = arith.constant dense<0.000000e+00> : vector<8x128xf32>
    %355 = tpu.matmul %352, %354, %cst_183 {dimension_numbers = #tpu.dot_dimension_numbers<[1], [0], [0], [1], [0, 0, 1, 1], [], []>} : vector<8x128xbf16>, vector<128x128xbf16>, vector<8x128xf32> -> vector<8x128xf32>
    %c3_184 = arith.constant 3 : index
    %c0_185 = arith.constant 0 : index
    %c0_186 = arith.constant 0 : index
    %356 = vector.load %arg8[%c3_184, %c0_185, %c0_186] : memref<4x1x128xf32, #tpu.memory_space<vmem>>, vector<1x1x128xf32>
    %357 = vector.shape_cast %356 : vector<1x1x128xf32> to vector<1x128xf32>
    %358 = vector.broadcast %357 : vector<1x128xf32> to vector<8x128xf32>
    %359 = arith.addf %355, %358 : vector<8x128xf32>
    %cst_187 = arith.constant 0.000000e+00 : f32
    %360 = vector.broadcast %cst_187 : f32 to vector<8x128xf32>
    %361 = arith.cmpf oge, %359, %360 : vector<8x128xf32>
    %cst_188 = arith.constant 0.229166672 : f32
    %362 = vector.broadcast %cst_188 : f32 to vector<8x128xf32>
    %363 = arith.mulf %359, %362 : vector<8x128xf32>
    %364 = arith.select %361, %359, %363 : vector<8x128xi1>, vector<8x128xf32>
    %365 = arith.truncf %364 : vector<8x128xf32> to vector<8x128xbf16>
    %c3_189 = arith.constant 3 : index
    %c0_190 = arith.constant 0 : index
    %c0_191 = arith.constant 0 : index
    %366 = vector.load %arg9[%c3_189, %c0_190, %c0_191] : memref<4x128x128xbf16, #tpu.memory_space<vmem>>, vector<1x128x128xbf16>
    %367 = vector.shape_cast %366 : vector<1x128x128xbf16> to vector<128x128xbf16>
    %cst_192 = arith.constant dense<0.000000e+00> : vector<8x128xf32>
    %368 = tpu.matmul %365, %367, %cst_192 {dimension_numbers = #tpu.dot_dimension_numbers<[1], [0], [0], [1], [0, 0, 1, 1], [], []>} : vector<8x128xbf16>, vector<128x128xbf16>, vector<8x128xf32> -> vector<8x128xf32>
    %c3_193 = arith.constant 3 : index
    %c0_194 = arith.constant 0 : index
    %c0_195 = arith.constant 0 : index
    %369 = vector.load %arg10[%c3_193, %c0_194, %c0_195] : memref<4x1x128xf32, #tpu.memory_space<vmem>>, vector<1x1x128xf32>
    %370 = vector.shape_cast %369 : vector<1x1x128xf32> to vector<1x128xf32>
    %371 = vector.broadcast %370 : vector<1x128xf32> to vector<8x128xf32>
    %372 = arith.addf %368, %371 : vector<8x128xf32>
    %cst_196 = arith.constant 0.000000e+00 : f32
    %373 = vector.broadcast %cst_196 : f32 to vector<8x128xf32>
    %374 = arith.cmpf oge, %372, %373 : vector<8x128xf32>
    %cst_197 = arith.constant 0.229166672 : f32
    %375 = vector.broadcast %cst_197 : f32 to vector<8x128xf32>
    %376 = arith.mulf %372, %375 : vector<8x128xf32>
    %377 = arith.select %374, %372, %376 : vector<8x128xi1>, vector<8x128xf32>
    %cst_198 = arith.constant dense<0xFF800000> : vector<8xf32>
    %378 = vector.multi_reduction <maximumf>, %377, %cst_198 [1] : vector<8x128xf32> to vector<8xf32>
    %379 = vector.shape_cast %378 : vector<8xf32> to vector<8x1xf32>
    %380 = vector.broadcast %379 : vector<8x1xf32> to vector<8x128xf32>
    %381 = arith.subf %377, %380 : vector<8x128xf32>
    %382 = math.exp %381 : vector<8x128xf32>
    %cst_199 = arith.constant dense<0.000000e+00> : vector<8xf32>
    %383 = vector.multi_reduction <add>, %382, %cst_199 [1] : vector<8x128xf32> to vector<8xf32>
    %384 = vector.shape_cast %383 : vector<8xf32> to vector<8x1xf32>
    %385 = tpu.reciprocal %384 {approx = true} : vector<8x1xf32> -> vector<8x1xf32>
    %386 = vector.broadcast %385 : vector<8x1xf32> to vector<8x128xf32>
    %387 = arith.mulf %382, %386 : vector<8x128xf32>
    %c0_200 = arith.constant 0 : index
    %c384_201 = arith.constant 384 : index
    %388 = vector.load %arg11[%c0_200, %c384_201] : memref<8x512xf32, #tpu.memory_space<vmem>>, vector<8x128xf32>
    tpu.vector_store %arg11[%c0_200, %c384_201], %387 {strides = array<i32>} : memref<8x512xf32, #tpu.memory_space<vmem>>, vector<8x128xf32>,
    %cst_202 = arith.constant 0xFF800000 : f32
    %389 = vector.broadcast %cst_202 : f32 to vector<8x128xf32>
    %390 = arith.select %2, %387, %389 : vector<8x128xi1>, vector<8x128xf32>
    %cst_203 = arith.constant dense<0xFF800000> : vector<8xf32>
    %391 = vector.multi_reduction <maximumf>, %390, %cst_203 [1] : vector<8x128xf32> to vector<8xf32>
    %392 = vector.shape_cast %391 : vector<8xf32> to vector<8x1xf32>
    %393 = vector.broadcast %392 : vector<8x1xf32> to vector<8x128xf32>
    %394 = arith.cmpf oeq, %390, %393 : vector<8x128xf32>
    %395 = arith.andi %394, %2 : vector<8x128xi1>
    %c128_i32_204 = arith.constant 128 : i32
    %396 = vector.broadcast %c128_i32_204 : i32 to vector<8x128xi32>
    %397 = arith.select %395, %0, %396 : vector<8x128xi1>, vector<8x128xi32>
    %cst_205 = arith.constant dense<2147483647> : vector<8xi32>
    %398 = vector.multi_reduction <minsi>, %397, %cst_205 [1] : vector<8x128xi32> to vector<8xi32>
    %399 = vector.shape_cast %398 : vector<8xi32> to vector<8x1xi32>
    %400 = vector.broadcast %399 : vector<8x1xi32> to vector<8x128xi32>
    %401 = arith.cmpi eq, %0, %400 : vector<8x128xi32>
    %cst_206 = arith.constant 0.000000e+00 : f32
    %402 = vector.broadcast %cst_206 : f32 to vector<8x128xf32>
    %403 = arith.select %401, %5, %402 : vector<8x128xi1>, vector<8x128xf32>
    %cst_207 = arith.constant dense<0.000000e+00> : vector<8xf32>
    %404 = vector.multi_reduction <add>, %403, %cst_207 [1] : vector<8x128xf32> to vector<8xf32>
    %405 = vector.shape_cast %404 : vector<8xf32> to vector<8x1xf32>
    %c4_i32 = arith.constant 4 : i32
    %406 = vector.broadcast %c4_i32 : i32 to vector<8x128xi32>
    %407 = arith.cmpi eq, %0, %406 : vector<8x128xi32>
    %408 = vector.shape_cast %399 : vector<8x1xi32> to vector<8x1xi32>
    %409 = vector.broadcast %408 : vector<8x1xi32> to vector<8x128xi32>
    %410 = arith.select %407, %409, %315 : vector<8x128xi1>, vector<8x128xi32>
    %c4_i32_208 = arith.constant 4 : i32
    %411 = vector.broadcast %c4_i32_208 : i32 to vector<8x128xi32>
    %412 = arith.cmpi eq, %0, %411 : vector<8x128xi32>
    %413 = vector.shape_cast %405 : vector<8x1xf32> to vector<8x1xf32>
    %414 = vector.broadcast %413 : vector<8x1xf32> to vector<8x128xf32>
    %415 = arith.select %412, %414, %320 : vector<8x128xi1>, vector<8x128xf32>
    %c0_209 = arith.constant 0 : index
    %c0_210 = arith.constant 0 : index
    %416 = vector.load %arg12[%c0_209, %c0_210] : memref<8x128xi32, #tpu.memory_space<vmem>>, vector<8x128xi32>
    tpu.vector_store %arg12[%c0_209, %c0_210], %410 {strides = array<i32>} : memref<8x128xi32, #tpu.memory_space<vmem>>, vector<8x128xi32>,
    %c0_211 = arith.constant 0 : index
    %c0_212 = arith.constant 0 : index
    %417 = vector.load %arg13[%c0_211, %c0_212] : memref<8x128xf32, #tpu.memory_space<vmem>>, vector<8x128xf32>
    tpu.vector_store %arg13[%c0_211, %c0_212], %415 {strides = array<i32>} : memref<8x128xf32, #tpu.memory_space<vmem>>, vector<8x128xf32>,
    return
  }
  func.func @transform_0(%arg0: i32) -> (i32, i32) {
    %c0_i32 = arith.constant 0 : i32
    %c0_i32_0 = arith.constant 0 : i32
    return %arg0, %c0_i32 : i32, i32
  }
  func.func @transform_1(%arg0: i32) -> (i32, i32) {
    %c0_i32 = arith.constant 0 : i32
    %c0_i32_0 = arith.constant 0 : i32
    return %arg0, %c0_i32 : i32, i32
  }
  func.func @transform_2(%arg0: i32) -> (i32, i32, i32) {
    %c0_i32 = arith.constant 0 : i32
    %c0_i32_0 = arith.constant 0 : i32
    %c0_i32_1 = arith.constant 0 : i32
    %c0_i32_2 = arith.constant 0 : i32
    return %c0_i32, %c0_i32_0, %c0_i32_1 : i32, i32, i32
  }
  func.func @transform_3(%arg0: i32) -> (i32, i32, i32) {
    %c0_i32 = arith.constant 0 : i32
    %c0_i32_0 = arith.constant 0 : i32
    %c0_i32_1 = arith.constant 0 : i32
    %c0_i32_2 = arith.constant 0 : i32
    return %c0_i32, %c0_i32_0, %c0_i32_1 : i32, i32, i32
  }
  func.func @transform_4(%arg0: i32) -> (i32, i32, i32) {
    %c0_i32 = arith.constant 0 : i32
    %c0_i32_0 = arith.constant 0 : i32
    %c0_i32_1 = arith.constant 0 : i32
    %c0_i32_2 = arith.constant 0 : i32
    return %c0_i32, %c0_i32_0, %c0_i32_1 : i32, i32, i32
  }
  func.func @transform_5(%arg0: i32) -> (i32, i32, i32) {
    %c0_i32 = arith.constant 0 : i32
    %c0_i32_0 = arith.constant 0 : i32
    %c0_i32_1 = arith.constant 0 : i32
    %c0_i32_2 = arith.constant 0 : i32
    return %c0_i32, %c0_i32_0, %c0_i32_1 : i32, i32, i32
  }
  func.func @transform_6(%arg0: i32) -> (i32, i32, i32) {
    %c0_i32 = arith.constant 0 : i32
    %c0_i32_0 = arith.constant 0 : i32
    %c0_i32_1 = arith.constant 0 : i32
    %c0_i32_2 = arith.constant 0 : i32
    return %c0_i32, %c0_i32_0, %c0_i32_1 : i32, i32, i32
  }
  func.func @transform_7(%arg0: i32) -> (i32, i32, i32) {
    %c0_i32 = arith.constant 0 : i32
    %c0_i32_0 = arith.constant 0 : i32
    %c0_i32_1 = arith.constant 0 : i32
    %c0_i32_2 = arith.constant 0 : i32
    return %c0_i32, %c0_i32_0, %c0_i32_1 : i32, i32, i32
  }
  func.func @transform_8(%arg0: i32) -> (i32, i32, i32) {
    %c0_i32 = arith.constant 0 : i32
    %c0_i32_0 = arith.constant 0 : i32
    %c0_i32_1 = arith.constant 0 : i32
    %c0_i32_2 = arith.constant 0 : i32
    return %c0_i32, %c0_i32_0, %c0_i32_1 : i32, i32, i32
  }
  func.func @transform_9(%arg0: i32) -> (i32, i32, i32) {
    %c0_i32 = arith.constant 0 : i32
    %c0_i32_0 = arith.constant 0 : i32
    %c0_i32_1 = arith.constant 0 : i32
    %c0_i32_2 = arith.constant 0 : i32
    return %c0_i32, %c0_i32_0, %c0_i32_1 : i32, i32, i32
  }
  func.func @transform_10(%arg0: i32) -> (i32, i32) {
    %c0_i32 = arith.constant 0 : i32
    %c0_i32_0 = arith.constant 0 : i32
    return %arg0, %c0_i32 : i32, i32
  }
  func.func @transform_11(%arg0: i32) -> (i32, i32) {
    %c0_i32 = arith.constant 0 : i32
    %c0_i32_0 = arith.constant 0 : i32
    return %arg0, %c0_i32 : i32, i32
  }
  func.func @transform_12(%arg0: i32) -> (i32, i32) {
    %c0_i32 = arith.constant 0 : i32
    %c0_i32_0 = arith.constant 0 : i32
    return %arg0, %c0_i32 : i32, i32
  }
}

</mosaic_0001>

<llo_original>
// kernel: tpu_custom_call.1
$region0: #{tpu_custom_call.1}
  #allocation0 [shape = 'u32[]', space=smem, size = 0x4, offset = 0x4, fixed_abs, tag = 'smem constant byte address 0x4 - core index']
  #allocation1 [shape = 'u32[144,128]{1,0:T(1,128)}', space=vmem, size = 0x12000, scoped, tag = 'internal scratch']
  #allocation2 [shape = 'bf16[8,512]{1,0:T(8,128)(2,1)}', space=vmem, size = 0x2000, scoped, tag = 'scratch operand']
  %s0 = inlined_call_operand.hbm [shape: f32[8,128], index: 0, kind: input, shape index: {}]
  %s1 = inlined_call_operand.hbm [shape: f32[8,128], index: 1, kind: input, shape index: {}]
  %s2 = inlined_call_operand.hbm [shape: bf16[4,512,128], index: 2, kind: input, shape index: {}]
  %s3 = inlined_call_operand.vmem [shape: f32[4,1,128], index: 3, kind: input, shape index: {}]
  %s4 = inlined_call_operand.hbm [shape: bf16[4,128,128], index: 4, kind: input, shape index: {}]
  %s5 = inlined_call_operand.vmem [shape: f32[4,1,128], index: 5, kind: input, shape index: {}]
  %s6 = inlined_call_operand.hbm [shape: bf16[4,128,128], index: 6, kind: input, shape index: {}]
  %s7 = inlined_call_operand.vmem [shape: f32[4,1,128], index: 7, kind: input, shape index: {}]
  %s8 = inlined_call_operand.hbm [shape: bf16[4,128,128], index: 8, kind: input, shape index: {}]
  %s9 = inlined_call_operand.vmem [shape: f32[4,1,128], index: 9, kind: input, shape index: {}]
  %s10 = inlined_call_operand.hbm [shape: f32[8,512], index: 10, kind: output, shape index: {0}]
  %s11 = inlined_call_operand.hbm [shape: s32[8,128], index: 11, kind: output, shape index: {1}]
  %s12 = inlined_call_operand.hbm [shape: f32[8,128], index: 12, kind: output, shape index: {2}]
  %13 = xla_tuple %s10, %s11, %s12
  %s14 = sld [smem:[#allocation0]]
  $region90: #{tpu_custom_call.1} parent=0
    _
  %s16 = ssub.s32 1, %s14
  %s17 = scalar_select 0, %s16, %s14
  $region1: #{tpu_custom_call.1} parent=0
    #allocation3 [shape = 'u8[4096]{0}', space=vmem, size = 0x1000, scoped, tag = 'input window, operand 0, single buffered']
    #allocation4 [shape = 's32[1]{0}', space=sflag, size = 0x4, scoped, tag = 'scoped memory for tpu_custom_call.1']
    #allocation5 [shape = 's32[1]{0}', space=sflag, size = 0x4, scoped, tag = 'scoped memory for tpu_custom_call.1']
    #allocation6 [shape = 'u8[4096]{0}', space=vmem, size = 0x1000, scoped, tag = 'input window, operand 1, single buffered']
    #allocation7 [shape = 's32[1]{0}', space=sflag, size = 0x4, scoped, tag = 'scoped memory for tpu_custom_call.1']
    #allocation8 [shape = 'u8[524288]{0}', space=vmem, size = 0x80000, scoped, tag = 'input window, operand 2, single buffered']
    #allocation9 [shape = 'u8[131072]{0}', space=vmem, size = 0x20000, scoped, tag = 'input window, operand 4, single buffered']
    #allocation10 [shape = 's32[1]{0}', space=sflag, size = 0x4, scoped, tag = 'scoped memory for tpu_custom_call.1']
    #allocation11 [shape = 'u8[131072]{0}', space=vmem, size = 0x20000, scoped, tag = 'input window, operand 6, single buffered']
    #allocation12 [shape = 'u8[131072]{0}', space=vmem, size = 0x20000, scoped, tag = 'input window, operand 8, single buffered']
    #allocation13 [shape = 's32[1]{0}', space=sflag, size = 0x4, scoped, tag = 'scoped memory for tpu_custom_call.1']
    #allocation14 [shape = 'u8[16384]{0}', space=vmem, size = 0x4000, scoped, tag = 'output window, operand 0, single buffered']
    #allocation15 [shape = 'u8[4096]{0}', space=vmem, size = 0x1000, scoped, tag = 'output window, operand 1, single buffered']
    #allocation16 [shape = 's32[1]{0}', space=sflag, size = 0x4, scoped, tag = 'scoped memory for tpu_custom_call.1']
    #allocation17 [shape = 'u8[4096]{0}', space=vmem, size = 0x1000, scoped, tag = 'output window, operand 2, single buffered']
    %18 = vsyncpa [#allocation4], 0
    %19 = vsyncpa [#allocation7], 0
    %20 = vsyncpa [#allocation10], 0
    %21 = vsyncpa [#allocation13], 0
    %22 = vsyncpa [#allocation5], 0
    %23 = vsyncpa [#allocation16], 0
    // Predicated region
    $region2: #{tpu_custom_call.1} parent=1 // pred_check
      _
    $region3: #{tpu_custom_call.1} parent=1 // pred_check_branch
      %25 = sbr.rel (0) target = $region5
    $region4: #{tpu_custom_call.1} parent=1 // pred_region
      %s27 = ssub.s32 128, 128
      %28 = vsyncadd [#allocation4], %s27
      %s30 = sshll.u32 [#allocation3], 4
      %s31 = int_to_ptr.vmem [resolvable:$true] %s30
      %33 = dma.hbm_to_vmem [thread:$0]  %s0, 128, %s31, [#allocation4]
    $region5: #{tpu_custom_call.1} parent=1 // pred_fallthru
      _
    // Predicated region
    $region6: #{tpu_custom_call.1} parent=1 // pred_check
      _
    $region7: #{tpu_custom_call.1} parent=1 // pred_check_branch
      %35 = sbr.rel (0) target = $region9
    $region8: #{tpu_custom_call.1} parent=1 // pred_region
      %s37 = ssub.s32 128, 128
      %38 = vsyncadd [#allocation7], %s37
      %s40 = sshll.u32 [#allocation6], 4
      %s41 = int_to_ptr.vmem [resolvable:$true] %s40
      %43 = dma.hbm_to_vmem [thread:$0]  %s1, 128, %s41, [#allocation7]
    $region9: #{tpu_custom_call.1} parent=1 // pred_fallthru
      _
    // Predicated region
    $region10: #{tpu_custom_call.1} parent=1 // pred_check
      _
    $region11: #{tpu_custom_call.1} parent=1 // pred_check_branch
      %45 = sbr.rel (0) target = $region13
    $region12: #{tpu_custom_call.1} parent=1 // pred_region
      %s47 = ssub.s32 16384, 16384
      %48 = vsyncadd [#allocation7], %s47
      %s49 = sshll.u32 [#allocation8], 4
      %s50 = int_to_ptr.vmem [resolvable:$true] %s49
      %55 = dma.hbm_to_vmem [thread:$0]  %s2, 16384, %s50, [#allocation7], 64, 64, 4
    $region13: #{tpu_custom_call.1} parent=1 // pred_fallthru
      _
    // Predicated region
    $region14: #{tpu_custom_call.1} parent=1 // pred_check
      _
    $region15: #{tpu_custom_call.1} parent=1 // pred_check_branch
      %57 = sbr.rel (0) target = $region17
    $region16: #{tpu_custom_call.1} parent=1 // pred_region
      _
    $region17: #{tpu_custom_call.1} parent=1 // pred_fallthru
      _
    // Predicated region
    $region18: #{tpu_custom_call.1} parent=1 // pred_check
      _
    $region19: #{tpu_custom_call.1} parent=1 // pred_check_branch
      %59 = sbr.rel (0) target = $region21
    $region20: #{tpu_custom_call.1} parent=1 // pred_region
      %s61 = ssub.s32 4096, 4096
      %62 = vsyncadd [#allocation10], %s61
      %s63 = sshll.u32 [#allocation9], 4
      %s64 = int_to_ptr.vmem [resolvable:$true] %s63
      %69 = dma.hbm_to_vmem [thread:$0]  %s4, 4096, %s64, [#allocation10], 64, 64, 4
    $region21: #{tpu_custom_call.1} parent=1 // pred_fallthru
      _
    // Predicated region
    $region22: #{tpu_custom_call.1} parent=1 // pred_check
      _
    $region23: #{tpu_custom_call.1} parent=1 // pred_check_branch
      %71 = sbr.rel (0) target = $region25
    $region24: #{tpu_custom_call.1} parent=1 // pred_region
      _
    $region25: #{tpu_custom_call.1} parent=1 // pred_fallthru
      _
    // Predicated region
    $region26: #{tpu_custom_call.1} parent=1 // pred_check
      _
    $region27: #{tpu_custom_call.1} parent=1 // pred_check_branch
      %73 = sbr.rel (0) target = $region29
    $region28: #{tpu_custom_call.1} parent=1 // pred_region
      %s75 = ssub.s32 4096, 4096
      %76 = vsyncadd [#allocation10], %s75
      %s77 = sshll.u32 [#allocation11], 4
      %s78 = int_to_ptr.vmem [resolvable:$true] %s77
      %83 = dma.hbm_to_vmem [thread:$0]  %s6, 4096, %s78, [#allocation10], 64, 64, 4
    $region29: #{tpu_custom_call.1} parent=1 // pred_fallthru
      _
    // Predicated region
    $region30: #{tpu_custom_call.1} parent=1 // pred_check
      _
    $region31: #{tpu_custom_call.1} parent=1 // pred_check_branch
      %85 = sbr.rel (0) target = $region33
    $region32: #{tpu_custom_call.1} parent=1 // pred_region
      _
    $region33: #{tpu_custom_call.1} parent=1 // pred_fallthru
      _
    // Predicated region
    $region34: #{tpu_custom_call.1} parent=1 // pred_check
      _
    $region35: #{tpu_custom_call.1} parent=1 // pred_check_branch
      %87 = sbr.rel (0) target = $region37
    $region36: #{tpu_custom_call.1} parent=1 // pred_region
      %s89 = ssub.s32 4096, 4096
      %90 = vsyncadd [#allocation13], %s89
      %s91 = sshll.u32 [#allocation12], 4
      %s92 = int_to_ptr.vmem [resolvable:$true] %s91
      %97 = dma.hbm_to_vmem [thread:$0]  %s8, 4096, %s92, [#allocation13], 64, 64, 4
    $region37: #{tpu_custom_call.1} parent=1 // pred_fallthru
      _
    // Predicated region
    $region38: #{tpu_custom_call.1} parent=1 // pred_check
      _
    $region39: #{tpu_custom_call.1} parent=1 // pred_check_branch
      %99 = sbr.rel (0) target = $region41
    $region40: #{tpu_custom_call.1} parent=1 // pred_region
      _
    $region41: #{tpu_custom_call.1} parent=1 // pred_fallthru
      _
    // Predicated region
    $region42: #{tpu_custom_call.1} parent=1 // pred_check
      _
    $region43: #{tpu_custom_call.1} parent=1 // pred_check_branch
      %101 = sbr.rel (0) target = $region45
    $region44: #{tpu_custom_call.1} parent=1 // pred_region
      %102 = dma.done [#allocation4], 128
    $region45: #{tpu_custom_call.1} parent=1 // pred_fallthru
      _
    // Predicated region
    $region46: #{tpu_custom_call.1} parent=1 // pred_check
      _
    $region47: #{tpu_custom_call.1} parent=1 // pred_check_branch
      %104 = sbr.rel (0) target = $region49
    $region48: #{tpu_custom_call.1} parent=1 // pred_region
      %105 = dma.done [#allocation7], 128
    $region49: #{tpu_custom_call.1} parent=1 // pred_fallthru
      _
    // Predicated region
    $region50: #{tpu_custom_call.1} parent=1 // pred_check
      _
    $region51: #{tpu_custom_call.1} parent=1 // pred_check_branch
      %107 = sbr.rel (0) target = $region53
    $region52: #{tpu_custom_call.1} parent=1 // pred_region
      %108 = dma.done [#allocation7], 16384
    $region53: #{tpu_custom_call.1} parent=1 // pred_fallthru
      _
    // Predicated region
    $region54: #{tpu_custom_call.1} parent=1 // pred_check
      _
    $region55: #{tpu_custom_call.1} parent=1 // pred_check_branch
      %110 = sbr.rel (0) target = $region57
    $region56: #{tpu_custom_call.1} parent=1 // pred_region
      %111 = dma.done [#allocation10], 4096
    $region57: #{tpu_custom_call.1} parent=1 // pred_fallthru
      _
    // Predicated region
    $region58: #{tpu_custom_call.1} parent=1 // pred_check
      _
    $region59: #{tpu_custom_call.1} parent=1 // pred_check_branch
      %113 = sbr.rel (0) target = $region61
    $region60: #{tpu_custom_call.1} parent=1 // pred_region
      %114 = dma.done [#allocation10], 4096
    $region61: #{tpu_custom_call.1} parent=1 // pred_fallthru
      _
    // Predicated region
    $region62: #{tpu_custom_call.1} parent=1 // pred_check
      _
    $region63: #{tpu_custom_call.1} parent=1 // pred_check_branch
      %116 = sbr.rel (0) target = $region65
    $region64: #{tpu_custom_call.1} parent=1 // pred_region
      %117 = dma.done [#allocation13], 4096
    $region65: #{tpu_custom_call.1} parent=1 // pred_fallthru
      _
    %v119 = vlaneseq
    %v120 = vand.u32 %v119, 127
    %vm121 = vcmp.lt.s32.totalorder %v120, 7
    %vm122 = vcmp.eq.s32.totalorder %v120, 7
    %v123 = vld [vmem:[#allocation6] sm:$0xff]
    %v124 = vld [vmem:[#allocation3] sm:$0xff]
    %v125 = vsel %vm121, %v124, -inf
    %126 = vmax.xlane.f32.xlu0 %v125
    %v127 = vpop.xlane.xlu0 %126
    %vm128 = vcmp.eq.f32.partialorder %v125, %v127
    %vm129 = vmand %vm128, %vm121
    %v130 = vsel %vm129, %v120, 128
    %v131 = vand.u32 %v130, 65535
    %v132 = vshra.s32 %v130, 16
    %v133 = vcvt.s32.f32 %v131
    %v134 = vcvt.s32.f32 %v132
    %135 = vmin.xlane.f32.xlu0 %v134
    %v136 = vpop.xlane.xlu0 %135
    %vm137 = vcmp.eq.f32.partialorder %v134, %v136
    %v138 = vsel %vm137, %v133, inf
    %139 = vmin.xlane.f32.xlu0 %v138
    %v140 = vpop.xlane.xlu0 %139
    %v141 = vcvt.f32.s32 %v140
    %v142 = vcvt.f32.s32 %v136
    %v143 = vshll.u32 %v142, 16
    %v144 = vadd.s32 %v143, %v141
    %vm145 = vcmp.eq.s32.totalorder %v120, %v144
    %v146 = vsel %vm145, %v123, 0.0
    %147 = vadd.xlane.f32.xlu0 %v146
    %v148 = vpop.xlane.xlu0 %147
    %v149 = vsel %vm122, %v148, %v124
    %v150 = vpack.c.bf16 %v149, %v149
    %151 = vst [vmem:[#allocation2] sm:$0xf] %v150
    %vm152 = vcmp.eq.s32.totalorder %v120, 0
    %v153 = vsel %vm152, %v144, 0
    %v154 = vsel %vm152, %v148, 0.0
    %v155 = vld [vmem:[#allocation2] sm:$0xf]
    %v156 = vld [vmem:[#allocation8] sm:$0xf]
    %v157 = vld [vmem:[#allocation8 + $0x4] sm:$0xf]
    %v158 = vld [vmem:[#allocation8 + $0x8] sm:$0xf]
    %v159 = vld [vmem:[#allocation8 + $0xc] sm:$0xf]
    %v160 = vld [vmem:[#allocation8 + $0x10] sm:$0xf]
    %v161 = vld [vmem:[#allocation8 + $0x14] sm:$0xf]
    %v162 = vld [vmem:[#allocation8 + $0x18] sm:$0xf]
    %v163 = vld [vmem:[#allocation8 + $0x1c] sm:$0xf]
    %v164 = vld [vmem:[#allocation8 + $0x20] sm:$0xf]
    %v165 = vld [vmem:[#allocation8 + $0x24] sm:$0xf]
    %v166 = vld [vmem:[#allocation8 + $0x28] sm:$0xf]
    %v167 = vld [vmem:[#allocation8 + $0x2c] sm:$0xf]
    %v168 = vld [vmem:[#allocation8 + $0x30] sm:$0xf]
    %v169 = vld [vmem:[#allocation8 + $0x34] sm:$0xf]
    %v170 = vld [vmem:[#allocation8 + $0x38] sm:$0xf]
    %v171 = vld [vmem:[#allocation8 + $0x3c] sm:$0xf]
    %v172 = vld [vmem:[%s3] sm:$0x1]
    %v174 = vlaneseq
    %v175 = vshrl.u32 %v174, 7
    %v176 = vsub.s32 0, %v175
    %v177 = vrot.slane %v172, %v176
    %v195 = vunpack.c.l.b16 %v156
    %v196 = vunpack.c.l.b16 %v157
    %v197 = vunpack.c.l.b16 %v158
    %v198 = vunpack.c.l.b16 %v159
    %v199 = vunpack.c.l.b16 %v160
    %v200 = vunpack.c.l.b16 %v161
    %v201 = vunpack.c.l.b16 %v162
    %v202 = vunpack.c.l.b16 %v163
    %v203 = vunpack.c.l.b16 %v164
    %v204 = vunpack.c.l.b16 %v165
    %v205 = vunpack.c.l.b16 %v166
    %v206 = vunpack.c.l.b16 %v167
    %v207 = vunpack.c.l.b16 %v168
    %v208 = vunpack.c.l.b16 %v169
    %v209 = vunpack.c.l.b16 %v170
    %v210 = vunpack.c.l.b16 %v171
    %v211 = vpack.c.b16 %v196, %v195
    %v212 = vpack.c.b16 %v198, %v197
    %v213 = vpack.c.b16 %v200, %v199
    %v214 = vpack.c.b16 %v202, %v201
    %v215 = vpack.c.b16 %v204, %v203
    %v216 = vpack.c.b16 %v206, %v205
    %v217 = vpack.c.b16 %v208, %v207
    %v218 = vpack.c.b16 %v210, %v209
    %227 = vmatprep.subr.bf16.mxu0 0
    %228 = vmatpush1.bf16.msra.mxu0 %v211
    %229 = vmatprep.subr.bf16.mxu0 0
    %230 = vmatpush1.bf16.msra.mxu0 %v212
    %231 = vmatprep.subr.bf16.mxu0 0
    %232 = vmatpush1.bf16.msra.mxu0 %v213
    %233 = vmatprep.subr.bf16.mxu0 0
    %234 = vmatpush1.bf16.msra.mxu0 %v214
    %235 = vmatprep.subr.bf16.mxu0 0
    %236 = vmatpush1.bf16.msra.mxu0 %v215
    %237 = vmatprep.subr.bf16.mxu0 0
    %238 = vmatpush1.bf16.msra.mxu0 %v216
    %239 = vmatprep.subr.bf16.mxu0 0
    %240 = vmatpush1.bf16.msra.mxu0 %v217
    %241 = vmatprep.subr.bf16.mxu0 0
    %242 = vmatpush1.bf16.msra.mxu0 %v218
    %243 = vmatprep.subr.bf16.mxu0 0
    %244 = vmatpush1.bf16.msra.mxu0 0
    %245 = vmatprep.subr.bf16.mxu0 0
    %246 = vmatpush1.bf16.msra.mxu0 0
    %247 = vmatprep.subr.bf16.mxu0 0
    %248 = vmatpush1.bf16.msra.mxu0 0
    %249 = vmatprep.subr.bf16.mxu0 0
    %250 = vmatpush1.bf16.msra.mxu0 0
    %251 = vmatprep.subr.bf16.mxu0 0
    %252 = vmatpush1.bf16.msra.mxu0 0
    %253 = vmatprep.subr.bf16.mxu0 0
    %254 = vmatpush1.bf16.msra.mxu0 0
    %255 = vmatprep.subr.bf16.mxu0 0
    %256 = vmatpush1.bf16.msra.mxu0 0
    %257 = vmatprep.subr.bf16.mxu0 0
    %258 = vmatpush1.bf16.msra.mxu0 0
    %259 = vmatprep.mubr.bf16.mxu0 0
    %260 = vmatmul.mubr.bf16.gmra.mrb[0].mxu0 %v155
    %v261 = vpop.f32.mrb[0].mxu0
    %v262 = vadd.f32 %v177, %v261
    %v263 = vpop.f32.mrb[0].mxu0
    %v264 = vpop.f32.mrb[0].mxu0
    %v265 = vpop.f32.mrb[0].mxu0
    %266 = vdwg.mxu0
    %vm267 = vcmp.ge.f32.partialorder %v262, 0.0
    %v268 = vmul.f32 %v262, 0.22916667
    %v269 = vsel %vm267, %v262, %v268
    %v270 = vpack.c.bf16 %v269, %v269
    %v271 = vld [vmem:[#allocation9] sm:$0xf]
    %v272 = vld [vmem:[#allocation9 + $0x4] sm:$0xf]
    %v273 = vld [vmem:[#allocation9 + $0x8] sm:$0xf]
    %v274 = vld [vmem:[#allocation9 + $0xc] sm:$0xf]
    %v275 = vld [vmem:[#allocation9 + $0x10] sm:$0xf]
    %v276 = vld [vmem:[#allocation9 + $0x14] sm:$0xf]
    %v277 = vld [vmem:[#allocation9 + $0x18] sm:$0xf]
    %v278 = vld [vmem:[#allocation9 + $0x1c] sm:$0xf]
    %v279 = vld [vmem:[#allocation9 + $0x20] sm:$0xf]
    %v280 = vld [vmem:[#allocation9 + $0x24] sm:$0xf]
    %v281 = vld [vmem:[#allocation9 + $0x28] sm:$0xf]
    %v282 = vld [vmem:[#allocation9 + $0x2c] sm:$0xf]
    %v283 = vld [vmem:[#allocation9 + $0x30] sm:$0xf]
    %v284 = vld [vmem:[#allocation9 + $0x34] sm:$0xf]
    %v285 = vld [vmem:[#allocation9 + $0x38] sm:$0xf]
    %v286 = vld [vmem:[#allocation9 + $0x3c] sm:$0xf]
    %v287 = vld [vmem:[%s5] sm:$0x1]
    %v289 = vlaneseq
    %v290 = vshrl.u32 %v289, 7
    %v291 = vsub.s32 0, %v290
    %v292 = vrot.slane %v287, %v291
    %v310 = vunpack.c.l.b16 %v271
    %v311 = vunpack.c.l.b16 %v272
    %v312 = vunpack.c.l.b16 %v273
    %v313 = vunpack.c.l.b16 %v274
    %v314 = vunpack.c.l.b16 %v275
    %v315 = vunpack.c.l.b16 %v276
    %v316 = vunpack.c.l.b16 %v277
    %v317 = vunpack.c.l.b16 %v278
    %v318 = vunpack.c.l.b16 %v279
    %v319 = vunpack.c.l.b16 %v280
    %v320 = vunpack.c.l.b16 %v281
    %v321 = vunpack.c.l.b16 %v282
    %v322 = vunpack.c.l.b16 %v283
    %v323 = vunpack.c.l.b16 %v284
    %v324 = vunpack.c.l.b16 %v285
    %v325 = vunpack.c.l.b16 %v286
    %v326 = vpack.c.b16 %v311, %v310
    %v327 = vpack.c.b16 %v313, %v312
    %v328 = vpack.c.b16 %v315, %v314
    %v329 = vpack.c.b16 %v317, %v316
    %v330 = vpack.c.b16 %v319, %v318
    %v331 = vpack.c.b16 %v321, %v320
    %v332 = vpack.c.b16 %v323, %v322
    %v333 = vpack.c.b16 %v325, %v324
    %342 = vmatprep.subr.bf16.mxu0 0
    %343 = vmatpush1.bf16.msra.mxu0 %v326
    %344 = vmatprep.subr.bf16.mxu0 0
    %345 = vmatpush1.bf16.msra.mxu0 %v327
    %346 = vmatprep.subr.bf16.mxu0 0
    %347 = vmatpush1.bf16.msra.mxu0 %v328
    %348 = vmatprep.subr.bf16.mxu0 0
    %349 = vmatpush1.bf16.msra.mxu0 %v329
    %350 = vmatprep.subr.bf16.mxu0 0
    %351 = vmatpush1.bf16.msra.mxu0 %v330
    %352 = vmatprep.subr.bf16.mxu0 0
    %353 = vmatpush1.bf16.msra.mxu0 %v331
    %354 = vmatprep.subr.bf16.mxu0 0
    %355 = vmatpush1.bf16.msra.mxu0 %v332
    %356 = vmatprep.subr.bf16.mxu0 0
    %357 = vmatpush1.bf16.msra.mxu0 %v333
    %358 = vmatprep.subr.bf16.mxu0 0
    %359 = vmatpush1.bf16.msra.mxu0 0
    %360 = vmatprep.subr.bf16.mxu0 0
    %361 = vmatpush1.bf16.msra.mxu0 0
    %362 = vmatprep.subr.bf16.mxu0 0
    %363 = vmatpush1.bf16.msra.mxu0 0
    %364 = vmatprep.subr.bf16.mxu0 0
    %365 = vmatpush1.bf16.msra.mxu0 0
    %366 = vmatprep.subr.bf16.mxu0 0
    %367 = vmatpush1.bf16.msra.mxu0 0
    %368 = vmatprep.subr.bf16.mxu0 0
    %369 = vmatpush1.bf16.msra.mxu0 0
    %370 = vmatprep.subr.bf16.mxu0 0
    %371 = vmatpush1.bf16.msra.mxu0 0
    %372 = vmatprep.subr.bf16.mxu0 0
    %373 = vmatpush1.bf16.msra.mxu0 0
    %374 = vmatprep.mubr.bf16.mxu0 0
    %375 = vmatmul.mubr.bf16.gmra.mrb[0].mxu0 %v270
    %v376 = vpop.f32.mrb[0].mxu0
    %v377 = vadd.f32 %v292, %v376
    %v378 = vpop.f32.mrb[0].mxu0
    %v379 = vpop.f32.mrb[0].mxu0
    %v380 = vpop.f32.mrb[0].mxu0
    %381 = vdwg.mxu0
    %vm382 = vcmp.ge.f32.partialorder %v377, 0.0
    %v383 = vmul.f32 %v377, 0.22916667
    %v384 = vsel %vm382, %v377, %v383
    %v385 = vpack.c.bf16 %v384, %v384
    %v386 = vld [vmem:[#allocation11] sm:$0xf]
    %v387 = vld [vmem:[#allocation11 + $0x4] sm:$0xf]
    %v388 = vld [vmem:[#allocation11 + $0x8] sm:$0xf]
    %v389 = vld [vmem:[#allocation11 + $0xc] sm:$0xf]
    %v390 = vld [vmem:[#allocation11 + $0x10] sm:$0xf]
    %v391 = vld [vmem:[#allocation11 + $0x14] sm:$0xf]
    %v392 = vld [vmem:[#allocation11 + $0x18] sm:$0xf]
    %v393 = vld [vmem:[#allocation11 + $0x1c] sm:$0xf]
    %v394 = vld [vmem:[#allocation11 + $0x20] sm:$0xf]
    %v395 = vld [vmem:[#allocation11 + $0x24] sm:$0xf]
    %v396 = vld [vmem:[#allocation11 + $0x28] sm:$0xf]
    %v397 = vld [vmem:[#allocation11 + $0x2c] sm:$0xf]
    %v398 = vld [vmem:[#allocation11 + $0x30] sm:$0xf]
    %v399 = vld [vmem:[#allocation11 + $0x34] sm:$0xf]
    %v400 = vld [vmem:[#allocation11 + $0x38] sm:$0xf]
    %v401 = vld [vmem:[#allocation11 + $0x3c] sm:$0xf]
    %v402 = vld [vmem:[%s7] sm:$0x1]
    %v404 = vlaneseq
    %v405 = vshrl.u32 %v404, 7
    %v406 = vsub.s32 0, %v405
    %v407 = vrot.slane %v402, %v406
    %v425 = vunpack.c.l.b16 %v386
    %v426 = vunpack.c.l.b16 %v387
    %v427 = vunpack.c.l.b16 %v388
    %v428 = vunpack.c.l.b16 %v389
    %v429 = vunpack.c.l.b16 %v390
    %v430 = vunpack.c.l.b16 %v391
    %v431 = vunpack.c.l.b16 %v392
    %v432 = vunpack.c.l.b16 %v393
    %v433 = vunpack.c.l.b16 %v394
    %v434 = vunpack.c.l.b16 %v395
    %v435 = vunpack.c.l.b16 %v396
    %v436 = vunpack.c.l.b16 %v397
    %v437 = vunpack.c.l.b16 %v398
    %v438 = vunpack.c.l.b16 %v399
    %v439 = vunpack.c.l.b16 %v400
    %v440 = vunpack.c.l.b16 %v401
    %v441 = vpack.c.b16 %v426, %v425
    %v442 = vpack.c.b16 %v428, %v427
    %v443 = vpack.c.b16 %v430, %v429
    %v444 = vpack.c.b16 %v432, %v431
    %v445 = vpack.c.b16 %v434, %v433
    %v446 = vpack.c.b16 %v436, %v435
    %v447 = vpack.c.b16 %v438, %v437
    %v448 = vpack.c.b16 %v440, %v439
    %457 = vmatprep.subr.bf16.mxu0 0
    %458 = vmatpush1.bf16.msra.mxu0 %v441
    %459 = vmatprep.subr.bf16.mxu0 0
    %460 = vmatpush1.bf16.msra.mxu0 %v442
    %461 = vmatprep.subr.bf16.mxu0 0
    %462 = vmatpush1.bf16.msra.mxu0 %v443
    %463 = vmatprep.subr.bf16.mxu0 0
    %464 = vmatpush1.bf16.msra.mxu0 %v444
    %465 = vmatprep.subr.bf16.mxu0 0
    %466 = vmatpush1.bf16.msra.mxu0 %v445
    %467 = vmatprep.subr.bf16.mxu0 0
    %468 = vmatpush1.bf16.msra.mxu0 %v446
    %469 = vmatprep.subr.bf16.mxu0 0
    %470 = vmatpush1.bf16.msra.mxu0 %v447
    %471 = vmatprep.subr.bf16.mxu0 0
    %472 = vmatpush1.bf16.msra.mxu0 %v448
    %473 = vmatprep.subr.bf16.mxu0 0
    %474 = vmatpush1.bf16.msra.mxu0 0
    %475 = vmatprep.subr.bf16.mxu0 0
    %476 = vmatpush1.bf16.msra.mxu0 0
    %477 = vmatprep.subr.bf16.mxu0 0
    %478 = vmatpush1.bf16.msra.mxu0 0
    %479 = vmatprep.subr.bf16.mxu0 0
    %480 = vmatpush1.bf16.msra.mxu0 0
    %481 = vmatprep.subr.bf16.mxu0 0
    %482 = vmatpush1.bf16.msra.mxu0 0
    %483 = vmatprep.subr.bf16.mxu0 0
    %484 = vmatpush1.bf16.msra.mxu0 0
    %485 = vmatprep.subr.bf16.mxu0 0
    %486 = vmatpush1.bf16.msra.mxu0 0
    %487 = vmatprep.subr.bf16.mxu0 0
    %488 = vmatpush1.bf16.msra.mxu0 0
    %489 = vmatprep.mubr.bf16.mxu0 0
    %490 = vmatmul.mubr.bf16.gmra.mrb[0].mxu0 %v385
    %v491 = vpop.f32.mrb[0].mxu0
    %v492 = vadd.f32 %v407, %v491
    %v493 = vpop.f32.mrb[0].mxu0
    %v494 = vpop.f32.mrb[0].mxu0
    %v495 = vpop.f32.mrb[0].mxu0
    %496 = vdwg.mxu0
    %vm497 = vcmp.ge.f32.partialorder %v492, 0.0
    %v498 = vmul.f32 %v492, 0.22916667
    %v499 = vsel %vm497, %v492, %v498
    %v500 = vpack.c.bf16 %v499, %v499
    %v501 = vld [vmem:[#allocation12] sm:$0xf]
    %v502 = vld [vmem:[#allocation12 + $0x4] sm:$0xf]
    %v503 = vld [vmem:[#allocation12 + $0x8] sm:$0xf]
    %v504 = vld [vmem:[#allocation12 + $0xc] sm:$0xf]
    %v505 = vld [vmem:[#allocation12 + $0x10] sm:$0xf]
    %v506 = vld [vmem:[#allocation12 + $0x14] sm:$0xf]
    %v507 = vld [vmem:[#allocation12 + $0x18] sm:$0xf]
    %v508 = vld [vmem:[#allocation12 + $0x1c] sm:$0xf]
    %v509 = vld [vmem:[#allocation12 + $0x20] sm:$0xf]
    %v510 = vld [vmem:[#allocation12 + $0x24] sm:$0xf]
    %v511 = vld [vmem:[#allocation12 + $0x28] sm:$0xf]
    %v512 = vld [vmem:[#allocation12 + $0x2c] sm:$0xf]
    %v513 = vld [vmem:[#allocation12 + $0x30] sm:$0xf]
    %v514 = vld [vmem:[#allocation12 + $0x34] sm:$0xf]
    %v515 = vld [vmem:[#allocation12 + $0x38] sm:$0xf]
    %v516 = vld [vmem:[#allocation12 + $0x3c] sm:$0xf]
    %v517 = vld [vmem:[%s9] sm:$0x1]
    %v519 = vlaneseq
    %v520 = vshrl.u32 %v519, 7
    %v521 = vsub.s32 0, %v520
    %v522 = vrot.slane %v517, %v521
    %v540 = vunpack.c.l.b16 %v501
    %v541 = vunpack.c.l.b16 %v502
    %v542 = vunpack.c.l.b16 %v503
    %v543 = vunpack.c.l.b16 %v504
    %v544 = vunpack.c.l.b16 %v505
    %v545 = vunpack.c.l.b16 %v506
    %v546 = vunpack.c.l.b16 %v507
    %v547 = vunpack.c.l.b16 %v508
    %v548 = vunpack.c.l.b16 %v509
    %v549 = vunpack.c.l.b16 %v510
    %v550 = vunpack.c.l.b16 %v511
    %v551 = vunpack.c.l.b16 %v512
    %v552 = vunpack.c.l.b16 %v513
    %v553 = vunpack.c.l.b16 %v514
    %v554 = vunpack.c.l.b16 %v515
    %v555 = vunpack.c.l.b16 %v516
    %v556 = vpack.c.b16 %v541, %v540
    %v557 = vpack.c.b16 %v543, %v542
    %v558 = vpack.c.b16 %v545, %v544
    %v559 = vpack.c.b16 %v547, %v546
    %v560 = vpack.c.b16 %v549, %v548
    %v561 = vpack.c.b16 %v551, %v550
    %v562 = vpack.c.b16 %v553, %v552
    %v563 = vpack.c.b16 %v555, %v554
    %572 = vmatprep.subr.bf16.mxu0 0
    %573 = vmatpush1.bf16.msra.mxu0 %v556
    %574 = vmatprep.subr.bf16.mxu0 0
    %575 = vmatpush1.bf16.msra.mxu0 %v557
    %576 = vmatprep.subr.bf16.mxu0 0
    %577 = vmatpush1.bf16.msra.mxu0 %v558
    %578 = vmatprep.subr.bf16.mxu0 0
    %579 = vmatpush1.bf16.msra.mxu0 %v559
    %580 = vmatprep.subr.bf16.mxu0 0
    %581 = vmatpush1.bf16.msra.mxu0 %v560
    %582 = vmatprep.subr.bf16.mxu0 0
    %583 = vmatpush1.bf16.msra.mxu0 %v561
    %584 = vmatprep.subr.bf16.mxu0 0
    %585 = vmatpush1.bf16.msra.mxu0 %v562
    %586 = vmatprep.subr.bf16.mxu0 0
    %587 = vmatpush1.bf16.msra.mxu0 %v563
    %588 = vmatprep.subr.bf16.mxu0 0
    %589 = vmatpush1.bf16.msra.mxu0 0
    %590 = vmatprep.subr.bf16.mxu0 0
    %591 = vmatpush1.bf16.msra.mxu0 0
    %592 = vmatprep.subr.bf16.mxu0 0
    %593 = vmatpush1.bf16.msra.mxu0 0
    %594 = vmatprep.subr.bf16.mxu0 0
    %595 = vmatpush1.bf16.msra.mxu0 0
    %596 = vmatprep.subr.bf16.mxu0 0
    %597 = vmatpush1.bf16.msra.mxu0 0
    %598 = vmatprep.subr.bf16.mxu0 0
    %599 = vmatpush1.bf16.msra.mxu0 0
    %600 = vmatprep.subr.bf16.mxu0 0
    %601 = vmatpush1.bf16.msra.mxu0 0
    %602 = vmatprep.subr.bf16.mxu0 0
    %603 = vmatpush1.bf16.msra.mxu0 0
    %604 = vmatprep.mubr.bf16.mxu0 0
    %605 = vmatmul.mubr.bf16.gmra.mrb[0].mxu0 %v500
    %v606 = vpop.f32.mrb[0].mxu0
    %v607 = vadd.f32 %v522, %v606
    %v608 = vpop.f32.mrb[0].mxu0
    %v609 = vpop.f32.mrb[0].mxu0
    %v610 = vpop.f32.mrb[0].mxu0
    %611 = vdwg.mxu0
    %vm612 = vcmp.ge.f32.partialorder %v607, 0.0
    %v613 = vmul.f32 %v607, 0.22916667
    %v614 = vsel %vm612, %v607, %v613
    %615 = vmax.xlane.f32.xlu0 %v614
    %v616 = vpop.xlane.xlu0 %615
    %v617 = vsub.f32 %v614, %v616
    %v618 = vmul.f32 %v617, 1.442695
    %v619 = vpow.pop %v618
    %620 = vadd.xlane.f32.xlu0 %v619
    %v621 = vpop.xlane.xlu0 %620
    %v622 = vrcp.pop %v621
    %v623 = vmul.f32 %v619, %v622
    %624 = vst [vmem:[#allocation14] sm:$0xff] %v623
    %v625 = vsel %vm121, %v623, -inf
    %626 = vmax.xlane.f32.xlu0 %v625
    %v627 = vpop.xlane.xlu0 %626
    %vm628 = vcmp.eq.f32.partialorder %v625, %v627
    %vm629 = vmand %vm628, %vm121
    %v630 = vsel %vm629, %v120, 128
    %v631 = vand.u32 %v630, 65535
    %v632 = vshra.s32 %v630, 16
    %v633 = vcvt.s32.f32 %v631
    %v634 = vcvt.s32.f32 %v632
    %635 = vmin.xlane.f32.xlu0 %v634
    %v636 = vpop.xlane.xlu0 %635
    %vm637 = vcmp.eq.f32.partialorder %v634, %v636
    %v638 = vsel %vm637, %v633, inf
    %639 = vmin.xlane.f32.xlu0 %v638
    %v640 = vpop.xlane.xlu0 %639
    %v641 = vcvt.f32.s32 %v640
    %v642 = vcvt.f32.s32 %v636
    %v643 = vshll.u32 %v642, 16
    %v644 = vadd.s32 %v643, %v641
    %vm645 = vcmp.eq.s32.totalorder %v120, %v644
    %v646 = vsel %vm645, %v123, 0.0
    %647 = vadd.xlane.f32.xlu0 %v646
    %v648 = vpop.xlane.xlu0 %647
    %vm649 = vcmp.eq.s32.totalorder %v120, 1
    %v650 = vsel %vm649, %v644, %v153
    %v651 = vsel %vm649, %v648, %v154
    %v652 = vsel %vm122, %v648, %v623
    %v653 = vpack.c.bf16 %v652, %v652
    %654 = vst [vmem:[#allocation2 + $0x4] sm:$0xf] %v653
    %v655 = vld [vmem:[#allocation2] sm:$0xff]
    %s656 = scalar_lea.vmem [#allocation8], 256
    %v657 = vld [vmem:[%s656] sm:$0xf]
    %v658 = vld [vmem:[%s656 + $0x4] sm:$0xf]
    %v659 = vld [vmem:[%s656 + $0x8] sm:$0xf]
    %v660 = vld [vmem:[%s656 + $0xc] sm:$0xf]
    %v661 = vld [vmem:[%s656 + $0x10] sm:$0xf]
    %v662 = vld [vmem:[%s656 + $0x14] sm:$0xf]
    %v663 = vld [vmem:[%s656 + $0x18] sm:$0xf]
    %v664 = vld [vmem:[%s656 + $0x1c] sm:$0xf]
    %v665 = vld [vmem:[%s656 + $0x20] sm:$0xf]
    %v666 = vld [vmem:[%s656 + $0x24] sm:$0xf]
    %v667 = vld [vmem:[%s656 + $0x28] sm:$0xf]
    %v668 = vld [vmem:[%s656 + $0x2c] sm:$0xf]
    %v669 = vld [vmem:[%s656 + $0x30] sm:$0xf]
    %v670 = vld [vmem:[%s656 + $0x34] sm:$0xf]
    %v671 = vld [vmem:[%s656 + $0x38] sm:$0xf]
    %v672 = vld [vmem:[%s656 + $0x3c] sm:$0xf]
    %v673 = vld [vmem:[%s656 + $0x40] sm:$0xf]
    %v674 = vld [vmem:[%s656 + $0x44] sm:$0xf]
    %v675 = vld [vmem:[%s656 + $0x48] sm:$0xf]
    %v676 = vld [vmem:[%s656 + $0x4c] sm:$0xf]
    %v677 = vld [vmem:[%s656 + $0x50] sm:$0xf]
    %v678 = vld [vmem:[%s656 + $0x54] sm:$0xf]
    %v679 = vld [vmem:[%s656 + $0x58] sm:$0xf]
    %v680 = vld [vmem:[%s656 + $0x5c] sm:$0xf]
    %v681 = vld [vmem:[%s656 + $0x60] sm:$0xf]
    %v682 = vld [vmem:[%s656 + $0x64] sm:$0xf]
    %v683 = vld [vmem:[%s656 + $0x68] sm:$0xf]
    %v684 = vld [vmem:[%s656 + $0x6c] sm:$0xf]
    %v685 = vld [vmem:[%s656 + $0x70] sm:$0xf]
    %v686 = vld [vmem:[%s656 + $0x74] sm:$0xf]
    %v687 = vld [vmem:[%s656 + $0x78] sm:$0xf]
    %v688 = vld [vmem:[%s656 + $0x7c] sm:$0xf]
    %s689 = scalar_lea.vmem %s3, 1
    %v690 = vld [vmem:[%s689] sm:$0x1]
    %v692 = vlaneseq
    %v693 = vshrl.u32 %v692, 7
    %v694 = vsub.s32 0, %v693
    %v695 = vrot.slane %v690, %v694
    %v698 = vunpack.c.l.b16 %v655
    %v699 = vunpack.c.h.b16 %v655
    %v700 = vpack.c.b16 %v698, %v698
    %v701 = vpack.c.b16 %v699, %v699
    %v736 = vunpack.c.l.b16 %v657
    %v737 = vunpack.c.l.b16 %v658
    %v738 = vunpack.c.l.b16 %v659
    %v739 = vunpack.c.l.b16 %v660
    %v740 = vunpack.c.l.b16 %v661
    %v741 = vunpack.c.l.b16 %v662
    %v742 = vunpack.c.l.b16 %v663
    %v743 = vunpack.c.l.b16 %v664
    %v744 = vunpack.c.l.b16 %v665
    %v745 = vunpack.c.l.b16 %v666
    %v746 = vunpack.c.l.b16 %v667
    %v747 = vunpack.c.l.b16 %v668
    %v748 = vunpack.c.l.b16 %v669
    %v749 = vunpack.c.l.b16 %v670
    %v750 = vunpack.c.l.b16 %v671
    %v751 = vunpack.c.l.b16 %v672
    %v752 = vunpack.c.l.b16 %v673
    %v753 = vunpack.c.l.b16 %v674
    %v754 = vunpack.c.l.b16 %v675
    %v755 = vunpack.c.l.b16 %v676
    %v756 = vunpack.c.l.b16 %v677
    %v757 = vunpack.c.l.b16 %v678
    %v758 = vunpack.c.l.b16 %v679
    %v759 = vunpack.c.l.b16 %v680
    %v760 = vunpack.c.l.b16 %v681
    %v761 = vunpack.c.l.b16 %v682
    %v762 = vunpack.c.l.b16 %v683
    %v763 = vunpack.c.l.b16 %v684
    %v764 = vunpack.c.l.b16 %v685
    %v765 = vunpack.c.l.b16 %v686
    %v766 = vunpack.c.l.b16 %v687
    %v767 = vunpack.c.l.b16 %v688
    %v768 = vpack.c.b16 %v737, %v736
    %v769 = vpack.c.b16 %v739, %v738
    %v770 = vpack.c.b16 %v741, %v740
    %v771 = vpack.c.b16 %v743, %v742
    %v772 = vpack.c.b16 %v745, %v744
    %v773 = vpack.c.b16 %v747, %v746
    %v774 = vpack.c.b16 %v749, %v748
    %v775 = vpack.c.b16 %v751, %v750
    %v776 = vpack.c.b16 %v753, %v752
    %v777 = vpack.c.b16 %v755, %v754
    %v778 = vpack.c.b16 %v757, %v756
    %v779 = vpack.c.b16 %v759, %v758
    %v780 = vpack.c.b16 %v761, %v760
    %v781 = vpack.c.b16 %v763, %v762
    %v782 = vpack.c.b16 %v765, %v764
    %v783 = vpack.c.b16 %v767, %v766
    %800 = vmatprep.subr.bf16.mxu0 0
    %801 = vmatpush1.bf16.msra.mxu0 %v768
    %802 = vmatprep.subr.bf16.mxu0 0
    %803 = vmatpush1.bf16.msra.mxu0 %v769
    %804 = vmatprep.subr.bf16.mxu0 0
    %805 = vmatpush1.bf16.msra.mxu0 %v770
    %806 = vmatprep.subr.bf16.mxu0 0
    %807 = vmatpush1.bf16.msra.mxu0 %v771
    %808 = vmatprep.subr.bf16.mxu0 0
    %809 = vmatpush1.bf16.msra.mxu0 %v772
    %810 = vmatprep.subr.bf16.mxu0 0
    %811 = vmatpush1.bf16.msra.mxu0 %v773
    %812 = vmatprep.subr.bf16.mxu0 0
    %813 = vmatpush1.bf16.msra.mxu0 %v774
    %814 = vmatprep.subr.bf16.mxu0 0
    %815 = vmatpush1.bf16.msra.mxu0 %v775
    %816 = vmatprep.subr.bf16.mxu0 0
    %817 = vmatpush1.bf16.msra.mxu0 %v776
    %818 = vmatprep.subr.bf16.mxu0 0
    %819 = vmatpush1.bf16.msra.mxu0 %v777
    %820 = vmatprep.subr.bf16.mxu0 0
    %821 = vmatpush1.bf16.msra.mxu0 %v778
    %822 = vmatprep.subr.bf16.mxu0 0
    %823 = vmatpush1.bf16.msra.mxu0 %v779
    %824 = vmatprep.subr.bf16.mxu0 0
    %825 = vmatpush1.bf16.msra.mxu0 %v780
    %826 = vmatprep.subr.bf16.mxu0 0
    %827 = vmatpush1.bf16.msra.mxu0 %v781
    %828 = vmatprep.subr.bf16.mxu0 0
    %829 = vmatpush1.bf16.msra.mxu0 %v782
    %830 = vmatprep.subr.bf16.mxu0 0
    %831 = vmatpush1.bf16.msra.mxu0 %v783
    %832 = vmatprep.mubr.bf16.mxu0 %v701
    %833 = vmatmul.mubr.bf16.gmra.mrb[0].mxu0 %v700
    %v834 = vpop.f32.mrb[0].mxu0
    %v835 = vadd.f32 %v695, %v834
    %v836 = vpop.f32.mrb[0].mxu0
    %v837 = vpop.f32.mrb[0].mxu0
    %v838 = vpop.f32.mrb[0].mxu0
    %839 = vdwg.mxu0
    %vm840 = vcmp.ge.f32.partialorder %v835, 0.0
    %v841 = vmul.f32 %v835, 0.22916667
    %v842 = vsel %vm840, %v835, %v841
    %v843 = vpack.c.bf16 %v842, %v842
    %s844 = scalar_lea.vmem [#allocation9], 64
    %v845 = vld [vmem:[%s844] sm:$0xf]
    %v846 = vld [vmem:[%s844 + $0x4] sm:$0xf]
    %v847 = vld [vmem:[%s844 + $0x8] sm:$0xf]
    %v848 = vld [vmem:[%s844 + $0xc] sm:$0xf]
    %v849 = vld [vmem:[%s844 + $0x10] sm:$0xf]
    %v850 = vld [vmem:[%s844 + $0x14] sm:$0xf]
    %v851 = vld [vmem:[%s844 + $0x18] sm:$0xf]
    %v852 = vld [vmem:[%s844 + $0x1c] sm:$0xf]
    %v853 = vld [vmem:[%s844 + $0x20] sm:$0xf]
    %v854 = vld [vmem:[%s844 + $0x24] sm:$0xf]
    %v855 = vld [vmem:[%s844 + $0x28] sm:$0xf]
    %v856 = vld [vmem:[%s844 + $0x2c] sm:$0xf]
    %v857 = vld [vmem:[%s844 + $0x30] sm:$0xf]
    %v858 = vld [vmem:[%s844 + $0x34] sm:$0xf]
    %v859 = vld [vmem:[%s844 + $0x38] sm:$0xf]
    %v860 = vld [vmem:[%s844 + $0x3c] sm:$0xf]
    %s861 = scalar_lea.vmem %s5, 1
    %v862 = vld [vmem:[%s861] sm:$0x1]
    %v864 = vlaneseq
    %v865 = vshrl.u32 %v864, 7
    %v866 = vsub.s32 0, %v865
    %v867 = vrot.slane %v862, %v866
    %v885 = vunpack.c.l.b16 %v845
    %v886 = vunpack.c.l.b16 %v846
    %v887 = vunpack.c.l.b16 %v847
    %v888 = vunpack.c.l.b16 %v848
    %v889 = vunpack.c.l.b16 %v849
    %v890 = vunpack.c.l.b16 %v850
    %v891 = vunpack.c.l.b16 %v851
    %v892 = vunpack.c.l.b16 %v852
    %v893 = vunpack.c.l.b16 %v853
    %v894 = vunpack.c.l.b16 %v854
    %v895 = vunpack.c.l.b16 %v855
    %v896 = vunpack.c.l.b16 %v856
    %v897 = vunpack.c.l.b16 %v857
    %v898 = vunpack.c.l.b16 %v858
    %v899 = vunpack.c.l.b16 %v859
    %v900 = vunpack.c.l.b16 %v860
    %v901 = vpack.c.b16 %v886, %v885
    %v902 = vpack.c.b16 %v888, %v887
    %v903 = vpack.c.b16 %v890, %v889
    %v904 = vpack.c.b16 %v892, %v891
    %v905 = vpack.c.b16 %v894, %v893
    %v906 = vpack.c.b16 %v896, %v895
    %v907 = vpack.c.b16 %v898, %v897
    %v908 = vpack.c.b16 %v900, %v899
    %917 = vmatprep.subr.bf16.mxu0 0
    %918 = vmatpush1.bf16.msra.mxu0 %v901
    %919 = vmatprep.subr.bf16.mxu0 0
    %920 = vmatpush1.bf16.msra.mxu0 %v902
    %921 = vmatprep.subr.bf16.mxu0 0
    %922 = vmatpush1.bf16.msra.mxu0 %v903
    %923 = vmatprep.subr.bf16.mxu0 0
    %924 = vmatpush1.bf16.msra.mxu0 %v904
    %925 = vmatprep.subr.bf16.mxu0 0
    %926 = vmatpush1.bf16.msra.mxu0 %v905
    %927 = vmatprep.subr.bf16.mxu0 0
    %928 = vmatpush1.bf16.msra.mxu0 %v906
    %929 = vmatprep.subr.bf16.mxu0 0
    %930 = vmatpush1.bf16.msra.mxu0 %v907
    %931 = vmatprep.subr.bf16.mxu0 0
    %932 = vmatpush1.bf16.msra.mxu0 %v908
    %933 = vmatprep.subr.bf16.mxu0 0
    %934 = vmatpush1.bf16.msra.mxu0 0
    %935 = vmatprep.subr.bf16.mxu0 0
    %936 = vmatpush1.bf16.msra.mxu0 0
    %937 = vmatprep.subr.bf16.mxu0 0
    %938 = vmatpush1.bf16.msra.mxu0 0
    %939 = vmatprep.subr.bf16.mxu0 0
    %940 = vmatpush1.bf16.msra.mxu0 0
    %941 = vmatprep.subr.bf16.mxu0 0
    %942 = vmatpush1.bf16.msra.mxu0 0
    %943 = vmatprep.subr.bf16.mxu0 0
    %944 = vmatpush1.bf16.msra.mxu0 0
    %945 = vmatprep.subr.bf16.mxu0 0
    %946 = vmatpush1.bf16.msra.mxu0 0
    %947 = vmatprep.subr.bf16.mxu0 0
    %948 = vmatpush1.bf16.msra.mxu0 0
    %949 = vmatprep.mubr.bf16.mxu0 0
    %950 = vmatmul.mubr.bf16.gmra.mrb[0].mxu0 %v843
    %v951 = vpop.f32.mrb[0].mxu0
    %v952 = vadd.f32 %v867, %v951
    %v953 = vpop.f32.mrb[0].mxu0
    %v954 = vpop.f32.mrb[0].mxu0
    %v955 = vpop.f32.mrb[0].mxu0
    %956 = vdwg.mxu0
    %vm957 = vcmp.ge.f32.partialorder %v952, 0.0
    %v958 = vmul.f32 %v952, 0.22916667
    %v959 = vsel %vm957, %v952, %v958
    %v960 = vpack.c.bf16 %v959, %v959
    %s961 = scalar_lea.vmem [#allocation11], 64
    %v962 = vld [vmem:[%s961] sm:$0xf]
    %v963 = vld [vmem:[%s961 + $0x4] sm:$0xf]
    %v964 = vld [vmem:[%s961 + $0x8] sm:$0xf]
    %v965 = vld [vmem:[%s961 + $0xc] sm:$0xf]
    %v966 = vld [vmem:[%s961 + $0x10] sm:$0xf]
    %v967 = vld [vmem:[%s961 + $0x14] sm:$0xf]
    %v968 = vld [vmem:[%s961 + $0x18] sm:$0xf]
    %v969 = vld [vmem:[%s961 + $0x1c] sm:$0xf]
    %v970 = vld [vmem:[%s961 + $0x20] sm:$0xf]
    %v971 = vld [vmem:[%s961 + $0x24] sm:$0xf]
    %v972 = vld [vmem:[%s961 + $0x28] sm:$0xf]
    %v973 = vld [vmem:[%s961 + $0x2c] sm:$0xf]
    %v974 = vld [vmem:[%s961 + $0x30] sm:$0xf]
    %v975 = vld [vmem:[%s961 + $0x34] sm:$0xf]
    %v976 = vld [vmem:[%s961 + $0x38] sm:$0xf]
    %v977 = vld [vmem:[%s961 + $0x3c] sm:$0xf]
    %s978 = scalar_lea.vmem %s7, 1
    %v979 = vld [vmem:[%s978] sm:$0x1]
    %v981 = vlaneseq
    %v982 = vshrl.u32 %v981, 7
    %v983 = vsub.s32 0, %v982
    %v984 = vrot.slane %v979, %v983
    %v1002 = vunpack.c.l.b16 %v962
    %v1003 = vunpack.c.l.b16 %v963
    %v1004 = vunpack.c.l.b16 %v964
    %v1005 = vunpack.c.l.b16 %v965
    %v1006 = vunpack.c.l.b16 %v966
    %v1007 = vunpack.c.l.b16 %v967
    %v1008 = vunpack.c.l.b16 %v968
    %v1009 = vunpack.c.l.b16 %v969
    %v1010 = vunpack.c.l.b16 %v970
    %v1011 = vunpack.c.l.b16 %v971
    %v1012 = vunpack.c.l.b16 %v972
    %v1013 = vunpack.c.l.b16 %v973
    %v1014 = vunpack.c.l.b16 %v974
    %v1015 = vunpack.c.l.b16 %v975
    %v1016 = vunpack.c.l.b16 %v976
    %v1017 = vunpack.c.l.b16 %v977
    %v1018 = vpack.c.b16 %v1003, %v1002
    %v1019 = vpack.c.b16 %v1005, %v1004
    %v1020 = vpack.c.b16 %v1007, %v1006
    %v1021 = vpack.c.b16 %v1009, %v1008
    %v1022 = vpack.c.b16 %v1011, %v1010
    %v1023 = vpack.c.b16 %v1013, %v1012
    %v1024 = vpack.c.b16 %v1015, %v1014
    %v1025 = vpack.c.b16 %v1017, %v1016
    %1034 = vmatprep.subr.bf16.mxu0 0
    %1035 = vmatpush1.bf16.msra.mxu0 %v1018
    %1036 = vmatprep.subr.bf16.mxu0 0
    %1037 = vmatpush1.bf16.msra.mxu0 %v1019
    %1038 = vmatprep.subr.bf16.mxu0 0
    %1039 = vmatpush1.bf16.msra.mxu0 %v1020
    %1040 = vmatprep.subr.bf16.mxu0 0
    %1041 = vmatpush1.bf16.msra.mxu0 %v1021
    %1042 = vmatprep.subr.bf16.mxu0 0
    %1043 = vmatpush1.bf16.msra.mxu0 %v1022
    %1044 = vmatprep.subr.bf16.mxu0 0
    %1045 = vmatpush1.bf16.msra.mxu0 %v1023
    %1046 = vmatprep.subr.bf16.mxu0 0
    %1047 = vmatpush1.bf16.msra.mxu0 %v1024
    %1048 = vmatprep.subr.bf16.mxu0 0
    %1049 = vmatpush1.bf16.msra.mxu0 %v1025
    %1050 = vmatprep.subr.bf16.mxu0 0
    %1051 = vmatpush1.bf16.msra.mxu0 0
    %1052 = vmatprep.subr.bf16.mxu0 0
    %1053 = vmatpush1.bf16.msra.mxu0 0
    %1054 = vmatprep.subr.bf16.mxu0 0
    %1055 = vmatpush1.bf16.msra.mxu0 0
    %1056 = vmatprep.subr.bf16.mxu0 0
    %1057 = vmatpush1.bf16.msra.mxu0 0
    %1058 = vmatprep.subr.bf16.mxu0 0
    %1059 = vmatpush1.bf16.msra.mxu0 0
    %1060 = vmatprep.subr.bf16.mxu0 0
    %1061 = vmatpush1.bf16.msra.mxu0 0
    %1062 = vmatprep.subr.bf16.mxu0 0
    %1063 = vmatpush1.bf16.msra.mxu0 0
    %1064 = vmatprep.subr.bf16.mxu0 0
    %1065 = vmatpush1.bf16.msra.mxu0 0
    %1066 = vmatprep.mubr.bf16.mxu0 0
    %1067 = vmatmul.mubr.bf16.gmra.mrb[0].mxu0 %v960
    %v1068 = vpop.f32.mrb[0].mxu0
    %v1069 = vadd.f32 %v984, %v1068
    %v1070 = vpop.f32.mrb[0].mxu0
    %v1071 = vpop.f32.mrb[0].mxu0
    %v1072 = vpop.f32.mrb[0].mxu0
    %1073 = vdwg.mxu0
    %vm1074 = vcmp.ge.f32.partialorder %v1069, 0.0
    %v1075 = vmul.f32 %v1069, 0.22916667
    %v1076 = vsel %vm1074, %v1069, %v1075
    %v1077 = vpack.c.bf16 %v1076, %v1076
    %s1078 = scalar_lea.vmem [#allocation12], 64
    %v1079 = vld [vmem:[%s1078] sm:$0xf]
    %v1080 = vld [vmem:[%s1078 + $0x4] sm:$0xf]
    %v1081 = vld [vmem:[%s1078 + $0x8] sm:$0xf]
    %v1082 = vld [vmem:[%s1078 + $0xc] sm:$0xf]
    %v1083 = vld [vmem:[%s1078 + $0x10] sm:$0xf]
    %v1084 = vld [vmem:[%s1078 + $0x14] sm:$0xf]
    %v1085 = vld [vmem:[%s1078 + $0x18] sm:$0xf]
    %v1086 = vld [vmem:[%s1078 + $0x1c] sm:$0xf]
    %v1087 = vld [vmem:[%s1078 + $0x20] sm:$0xf]
    %v1088 = vld [vmem:[%s1078 + $0x24] sm:$0xf]
    %v1089 = vld [vmem:[%s1078 + $0x28] sm:$0xf]
    %v1090 = vld [vmem:[%s1078 + $0x2c] sm:$0xf]
    %v1091 = vld [vmem:[%s1078 + $0x30] sm:$0xf]
    %v1092 = vld [vmem:[%s1078 + $0x34] sm:$0xf]
    %v1093 = vld [vmem:[%s1078 + $0x38] sm:$0xf]
    %v1094 = vld [vmem:[%s1078 + $0x3c] sm:$0xf]
    %s1095 = scalar_lea.vmem %s9, 1
    %v1096 = vld [vmem:[%s1095] sm:$0x1]
    %v1098 = vlaneseq
    %v1099 = vshrl.u32 %v1098, 7
    %v1100 = vsub.s32 0, %v1099
    %v1101 = vrot.slane %v1096, %v1100
    %v1119 = vunpack.c.l.b16 %v1079
    %v1120 = vunpack.c.l.b16 %v1080
    %v1121 = vunpack.c.l.b16 %v1081
    %v1122 = vunpack.c.l.b16 %v1082
    %v1123 = vunpack.c.l.b16 %v1083
    %v1124 = vunpack.c.l.b16 %v1084
    %v1125 = vunpack.c.l.b16 %v1085
    %v1126 = vunpack.c.l.b16 %v1086
    %v1127 = vunpack.c.l.b16 %v1087
    %v1128 = vunpack.c.l.b16 %v1088
    %v1129 = vunpack.c.l.b16 %v1089
    %v1130 = vunpack.c.l.b16 %v1090
    %v1131 = vunpack.c.l.b16 %v1091
    %v1132 = vunpack.c.l.b16 %v1092
    %v1133 = vunpack.c.l.b16 %v1093
    %v1134 = vunpack.c.l.b16 %v1094
    %v1135 = vpack.c.b16 %v1120, %v1119
    %v1136 = vpack.c.b16 %v1122, %v1121
    %v1137 = vpack.c.b16 %v1124, %v1123
    %v1138 = vpack.c.b16 %v1126, %v1125
    %v1139 = vpack.c.b16 %v1128, %v1127
    %v1140 = vpack.c.b16 %v1130, %v1129
    %v1141 = vpack.c.b16 %v1132, %v1131
    %v1142 = vpack.c.b16 %v1134, %v1133
    %1151 = vmatprep.subr.bf16.mxu0 0
    %1152 = vmatpush1.bf16.msra.mxu0 %v1135
    %1153 = vmatprep.subr.bf16.mxu0 0
    %1154 = vmatpush1.bf16.msra.mxu0 %v1136
    %1155 = vmatprep.subr.bf16.mxu0 0
    %1156 = vmatpush1.bf16.msra.mxu0 %v1137
    %1157 = vmatprep.subr.bf16.mxu0 0
    %1158 = vmatpush1.bf16.msra.mxu0 %v1138
    %1159 = vmatprep.subr.bf16.mxu0 0
    %1160 = vmatpush1.bf16.msra.mxu0 %v1139
    %1161 = vmatprep.subr.bf16.mxu0 0
    %1162 = vmatpush1.bf16.msra.mxu0 %v1140
    %1163 = vmatprep.subr.bf16.mxu0 0
    %1164 = vmatpush1.bf16.msra.mxu0 %v1141
    %1165 = vmatprep.subr.bf16.mxu0 0
    %1166 = vmatpush1.bf16.msra.mxu0 %v1142
    %1167 = vmatprep.subr.bf16.mxu0 0
    %1168 = vmatpush1.bf16.msra.mxu0 0
    %1169 = vmatprep.subr.bf16.mxu0 0
    %1170 = vmatpush1.bf16.msra.mxu0 0
    %1171 = vmatprep.subr.bf16.mxu0 0
    %1172 = vmatpush1.bf16.msra.mxu0 0
    %1173 = vmatprep.subr.bf16.mxu0 0
    %1174 = vmatpush1.bf16.msra.mxu0 0
    %1175 = vmatprep.subr.bf16.mxu0 0
    %1176 = vmatpush1.bf16.msra.mxu0 0
    %1177 = vmatprep.subr.bf16.mxu0 0
    %1178 = vmatpush1.bf16.msra.mxu0 0
    %1179 = vmatprep.subr.bf16.mxu0 0
    %1180 = vmatpush1.bf16.msra.mxu0 0
    %1181 = vmatprep.subr.bf16.mxu0 0
    %1182 = vmatpush1.bf16.msra.mxu0 0
    %1183 = vmatprep.mubr.bf16.mxu0 0
    %1184 = vmatmul.mubr.bf16.gmra.mrb[0].mxu0 %v1077
    %v1185 = vpop.f32.mrb[0].mxu0
    %v1186 = vadd.f32 %v1101, %v1185
    %v1187 = vpop.f32.mrb[0].mxu0
    %v1188 = vpop.f32.mrb[0].mxu0
    %v1189 = vpop.f32.mrb[0].mxu0
    %1190 = vdwg.mxu0
    %vm1191 = vcmp.ge.f32.partialorder %v1186, 0.0
    %v1192 = vmul.f32 %v1186, 0.22916667
    %v1193 = vsel %vm1191, %v1186, %v1192
    %1194 = vmax.xlane.f32.xlu0 %v1193
    %v1195 = vpop.xlane.xlu0 %1194
    %v1196 = vsub.f32 %v1193, %v1195
    %v1197 = vmul.f32 %v1196, 1.442695
    %v1198 = vpow.pop %v1197
    %1199 = vadd.xlane.f32.xlu0 %v1198
    %v1200 = vpop.xlane.xlu0 %1199
    %v1201 = vrcp.pop %v1200
    %v1202 = vmul.f32 %v1198, %v1201
    %1203 = vst [vmem:[#allocation14 + $0x8] sm:$0xff] %v1202
    %v1204 = vsel %vm121, %v1202, -inf
    %1205 = vmax.xlane.f32.xlu0 %v1204
    %v1206 = vpop.xlane.xlu0 %1205
    %vm1207 = vcmp.eq.f32.partialorder %v1204, %v1206
    %vm1208 = vmand %vm1207, %vm121
    %v1209 = vsel %vm1208, %v120, 128
    %v1210 = vand.u32 %v1209, 65535
    %v1211 = vshra.s32 %v1209, 16
    %v1212 = vcvt.s32.f32 %v1210
    %v1213 = vcvt.s32.f32 %v1211
    %1214 = vmin.xlane.f32.xlu0 %v1213
    %v1215 = vpop.xlane.xlu0 %1214
    %vm1216 = vcmp.eq.f32.partialorder %v1213, %v1215
    %v1217 = vsel %vm1216, %v1212, inf
    %1218 = vmin.xlane.f32.xlu0 %v1217
    %v1219 = vpop.xlane.xlu0 %1218
    %v1220 = vcvt.f32.s32 %v1219
    %v1221 = vcvt.f32.s32 %v1215
    %v1222 = vshll.u32 %v1221, 16
    %v1223 = vadd.s32 %v1222, %v1220
    %vm1224 = vcmp.eq.s32.totalorder %v120, %v1223
    %v1225 = vsel %vm1224, %v123, 0.0
    %1226 = vadd.xlane.f32.xlu0 %v1225
    %v1227 = vpop.xlane.xlu0 %1226
    %vm1228 = vcmp.eq.s32.totalorder %v120, 2
    %v1229 = vsel %vm1228, %v1223, %v650
    %v1230 = vsel %vm1228, %v1227, %v651
    %v1231 = vsel %vm122, %v1227, %v1202
    %v1232 = vpack.c.bf16 %v1231, %v1231
    %1233 = vst [vmem:[#allocation2 + $0x8] sm:$0xf] %v1232
    %v1234 = vld [vmem:[#allocation2] sm:$0xff]
    %v1235 = vld [vmem:[#allocation2 + $0x8] sm:$0xf]
    %s1236 = scalar_lea.vmem [#allocation8], 512
    %v1237 = vld [vmem:[%s1236] sm:$0xf]
    %v1238 = vld [vmem:[%s1236 + $0x4] sm:$0xf]
    %v1239 = vld [vmem:[%s1236 + $0x8] sm:$0xf]
    %v1240 = vld [vmem:[%s1236 + $0xc] sm:$0xf]
    %v1241 = vld [vmem:[%s1236 + $0x10] sm:$0xf]
    %v1242 = vld [vmem:[%s1236 + $0x14] sm:$0xf]
    %v1243 = vld [vmem:[%s1236 + $0x18] sm:$0xf]
    %v1244 = vld [vmem:[%s1236 + $0x1c] sm:$0xf]
    %v1245 = vld [vmem:[%s1236 + $0x20] sm:$0xf]
    %v1246 = vld [vmem:[%s1236 + $0x24] sm:$0xf]
    %v1247 = vld [vmem:[%s1236 + $0x28] sm:$0xf]
    %v1248 = vld [vmem:[%s1236 + $0x2c] sm:$0xf]
    %v1249 = vld [vmem:[%s1236 + $0x30] sm:$0xf]
    %v1250 = vld [vmem:[%s1236 + $0x34] sm:$0xf]
    %v1251 = vld [vmem:[%s1236 + $0x38] sm:$0xf]
    %v1252 = vld [vmem:[%s1236 + $0x3c] sm:$0xf]
    %v1253 = vld [vmem:[%s1236 + $0x40] sm:$0xf]
    %v1254 = vld [vmem:[%s1236 + $0x44] sm:$0xf]
    %v1255 = vld [vmem:[%s1236 + $0x48] sm:$0xf]
    %v1256 = vld [vmem:[%s1236 + $0x4c] sm:$0xf]
    %v1257 = vld [vmem:[%s1236 + $0x50] sm:$0xf]
    %v1258 = vld [vmem:[%s1236 + $0x54] sm:$0xf]
    %v1259 = vld [vmem:[%s1236 + $0x58] sm:$0xf]
    %v1260 = vld [vmem:[%s1236 + $0x5c] sm:$0xf]
    %v1261 = vld [vmem:[%s1236 + $0x60] sm:$0xf]
    %v1262 = vld [vmem:[%s1236 + $0x64] sm:$0xf]
    %v1263 = vld [vmem:[%s1236 + $0x68] sm:$0xf]
    %v1264 = vld [vmem:[%s1236 + $0x6c] sm:$0xf]
    %v1265 = vld [vmem:[%s1236 + $0x70] sm:$0xf]
    %v1266 = vld [vmem:[%s1236 + $0x74] sm:$0xf]
    %v1267 = vld [vmem:[%s1236 + $0x78] sm:$0xf]
    %v1268 = vld [vmem:[%s1236 + $0x7c] sm:$0xf]
    %v1269 = vld [vmem:[%s1236 + $0x80] sm:$0xf]
    %v1270 = vld [vmem:[%s1236 + $0x84] sm:$0xf]
    %v1271 = vld [vmem:[%s1236 + $0x88] sm:$0xf]
    %v1272 = vld [vmem:[%s1236 + $0x8c] sm:$0xf]
    %v1273 = vld [vmem:[%s1236 + $0x90] sm:$0xf]
    %v1274 = vld [vmem:[%s1236 + $0x94] sm:$0xf]
    %v1275 = vld [vmem:[%s1236 + $0x98] sm:$0xf]
    %v1276 = vld [vmem:[%s1236 + $0x9c] sm:$0xf]
    %v1277 = vld [vmem:[%s1236 + $0xa0] sm:$0xf]
    %v1278 = vld [vmem:[%s1236 + $0xa4] sm:$0xf]
    %v1279 = vld [vmem:[%s1236 + $0xa8] sm:$0xf]
    %v1280 = vld [vmem:[%s1236 + $0xac] sm:$0xf]
    %v1281 = vld [vmem:[%s1236 + $0xb0] sm:$0xf]
    %v1282 = vld [vmem:[%s1236 + $0xb4] sm:$0xf]
    %v1283 = vld [vmem:[%s1236 + $0xb8] sm:$0xf]
    %v1284 = vld [vmem:[%s1236 + $0xbc] sm:$0xf]
    %s1285 = scalar_lea.vmem %s3, 2
    %v1286 = vld [vmem:[%s1285] sm:$0x1]
    %v1288 = vlaneseq
    %v1289 = vshrl.u32 %v1288, 7
    %v1290 = vsub.s32 0, %v1289
    %v1291 = vrot.slane %v1286, %v1290
    %v1295 = vunpack.c.l.b16 %v1234
    %v1296 = vunpack.c.h.b16 %v1234
    %v1297 = vunpack.c.l.b16 %v1235
    %v1298 = vpack.c.b16 %v1295, %v1295
    %v1299 = vpack.c.b16 %v1296, %v1296
    %v1300 = vpack.c.b16 %v1297, %v1297
    %v1352 = vunpack.c.l.b16 %v1237
    %v1353 = vunpack.c.l.b16 %v1238
    %v1354 = vunpack.c.l.b16 %v1239
    %v1355 = vunpack.c.l.b16 %v1240
    %v1356 = vunpack.c.l.b16 %v1241
    %v1357 = vunpack.c.l.b16 %v1242
    %v1358 = vunpack.c.l.b16 %v1243
    %v1359 = vunpack.c.l.b16 %v1244
    %v1360 = vunpack.c.l.b16 %v1245
    %v1361 = vunpack.c.l.b16 %v1246
    %v1362 = vunpack.c.l.b16 %v1247
    %v1363 = vunpack.c.l.b16 %v1248
    %v1364 = vunpack.c.l.b16 %v1249
    %v1365 = vunpack.c.l.b16 %v1250
    %v1366 = vunpack.c.l.b16 %v1251
    %v1367 = vunpack.c.l.b16 %v1252
    %v1368 = vunpack.c.l.b16 %v1253
    %v1369 = vunpack.c.l.b16 %v1254
    %v1370 = vunpack.c.l.b16 %v1255
    %v1371 = vunpack.c.l.b16 %v1256
    %v1372 = vunpack.c.l.b16 %v1257
    %v1373 = vunpack.c.l.b16 %v1258
    %v1374 = vunpack.c.l.b16 %v1259
    %v1375 = vunpack.c.l.b16 %v1260
    %v1376 = vunpack.c.l.b16 %v1261
    %v1377 = vunpack.c.l.b16 %v1262
    %v1378 = vunpack.c.l.b16 %v1263
    %v1379 = vunpack.c.l.b16 %v1264
    %v1380 = vunpack.c.l.b16 %v1265
    %v1381 = vunpack.c.l.b16 %v1266
    %v1382 = vunpack.c.l.b16 %v1267
    %v1383 = vunpack.c.l.b16 %v1268
    %v1384 = vunpack.c.l.b16 %v1269
    %v1385 = vunpack.c.l.b16 %v1270
    %v1386 = vunpack.c.l.b16 %v1271
    %v1387 = vunpack.c.l.b16 %v1272
    %v1388 = vunpack.c.l.b16 %v1273
    %v1389 = vunpack.c.l.b16 %v1274
    %v1390 = vunpack.c.l.b16 %v1275
    %v1391 = vunpack.c.l.b16 %v1276
    %v1392 = vunpack.c.l.b16 %v1277
    %v1393 = vunpack.c.l.b16 %v1278
    %v1394 = vunpack.c.l.b16 %v1279
    %v1395 = vunpack.c.l.b16 %v1280
    %v1396 = vunpack.c.l.b16 %v1281
    %v1397 = vunpack.c.l.b16 %v1282
    %v1398 = vunpack.c.l.b16 %v1283
    %v1399 = vunpack.c.l.b16 %v1284
    %v1400 = vpack.c.b16 %v1353, %v1352
    %v1401 = vpack.c.b16 %v1355, %v1354
    %v1402 = vpack.c.b16 %v1357, %v1356
    %v1403 = vpack.c.b16 %v1359, %v1358
    %v1404 = vpack.c.b16 %v1361, %v1360
    %v1405 = vpack.c.b16 %v1363, %v1362
    %v1406 = vpack.c.b16 %v1365, %v1364
    %v1407 = vpack.c.b16 %v1367, %v1366
    %v1408 = vpack.c.b16 %v1369, %v1368
    %v1409 = vpack.c.b16 %v1371, %v1370
    %v1410 = vpack.c.b16 %v1373, %v1372
    %v1411 = vpack.c.b16 %v1375, %v1374
    %v1412 = vpack.c.b16 %v1377, %v1376
    %v1413 = vpack.c.b16 %v1379, %v1378
    %v1414 = vpack.c.b16 %v1381, %v1380
    %v1415 = vpack.c.b16 %v1383, %v1382
    %v1416 = vpack.c.b16 %v1385, %v1384
    %v1417 = vpack.c.b16 %v1387, %v1386
    %v1418 = vpack.c.b16 %v1389, %v1388
    %v1419 = vpack.c.b16 %v1391, %v1390
    %v1420 = vpack.c.b16 %v1393, %v1392
    %v1421 = vpack.c.b16 %v1395, %v1394
    %v1422 = vpack.c.b16 %v1397, %v1396
    %v1423 = vpack.c.b16 %v1399, %v1398
    %1448 = vmatprep.subr.bf16.mxu0 0
    %1449 = vmatpush1.bf16.msra.mxu0 %v1400
    %1450 = vmatprep.subr.bf16.mxu0 0
    %1451 = vmatpush1.bf16.msra.mxu0 %v1401
    %1452 = vmatprep.subr.bf16.mxu0 0
    %1453 = vmatpush1.bf16.msra.mxu0 %v1402
    %1454 = vmatprep.subr.bf16.mxu0 0
    %1455 = vmatpush1.bf16.msra.mxu0 %v1403
    %1456 = vmatprep.subr.bf16.mxu0 0
    %1457 = vmatpush1.bf16.msra.mxu0 %v1404
    %1458 = vmatprep.subr.bf16.mxu0 0
    %1459 = vmatpush1.bf16.msra.mxu0 %v1405
    %1460 = vmatprep.subr.bf16.mxu0 0
    %1461 = vmatpush1.bf16.msra.mxu0 %v1406
    %1462 = vmatprep.subr.bf16.mxu0 0
    %1463 = vmatpush1.bf16.msra.mxu0 %v1407
    %1464 = vmatprep.subr.bf16.mxu0 0
    %1465 = vmatpush1.bf16.msra.mxu0 %v1408
    %1466 = vmatprep.subr.bf16.mxu0 0
    %1467 = vmatpush1.bf16.msra.mxu0 %v1409
    %1468 = vmatprep.subr.bf16.mxu0 0
    %1469 = vmatpush1.bf16.msra.mxu0 %v1410
    %1470 = vmatprep.subr.bf16.mxu0 0
    %1471 = vmatpush1.bf16.msra.mxu0 %v1411
    %1472 = vmatprep.subr.bf16.mxu0 0
    %1473 = vmatpush1.bf16.msra.mxu0 %v1412
    %1474 = vmatprep.subr.bf16.mxu0 0
    %1475 = vmatpush1.bf16.msra.mxu0 %v1413
    %1476 = vmatprep.subr.bf16.mxu0 0
    %1477 = vmatpush1.bf16.msra.mxu0 %v1414
    %1478 = vmatprep.subr.bf16.mxu0 0
    %1479 = vmatpush1.bf16.msra.mxu0 %v1415
    %1480 = vmatprep.mubr.bf16.mxu0 %v1299
    %1481 = vmatmul.mubr.bf16.gmra.mrb[0].mxu0 %v1298
    %v1482 = vpop.f32.mrb[0].mxu0
    %v1483 = vadd.f32 %v1291, %v1482
    %v1484 = vpop.f32.mrb[0].mxu0
    %v1485 = vpop.f32.mrb[0].mxu0
    %v1486 = vpop.f32.mrb[0].mxu0
    %1487 = vdwg.mxu0
    %1488 = vmatprep.subr.bf16.mxu0 0
    %1489 = vmatpush1.bf16.msra.mxu0 %v1416
    %1490 = vmatprep.subr.bf16.mxu0 0
    %1491 = vmatpush1.bf16.msra.mxu0 %v1417
    %1492 = vmatprep.subr.bf16.mxu0 0
    %1493 = vmatpush1.bf16.msra.mxu0 %v1418
    %1494 = vmatprep.subr.bf16.mxu0 0
    %1495 = vmatpush1.bf16.msra.mxu0 %v1419
    %1496 = vmatprep.subr.bf16.mxu0 0
    %1497 = vmatpush1.bf16.msra.mxu0 %v1420
    %1498 = vmatprep.subr.bf16.mxu0 0
    %1499 = vmatpush1.bf16.msra.mxu0 %v1421
    %1500 = vmatprep.subr.bf16.mxu0 0
    %1501 = vmatpush1.bf16.msra.mxu0 %v1422
    %1502 = vmatprep.subr.bf16.mxu0 0
    %1503 = vmatpush1.bf16.msra.mxu0 %v1423
    %1504 = vmatprep.subr.bf16.mxu0 0
    %1505 = vmatpush1.bf16.msra.mxu0 0
    %1506 = vmatprep.subr.bf16.mxu0 0
    %1507 = vmatpush1.bf16.msra.mxu0 0
    %1508 = vmatprep.subr.bf16.mxu0 0
    %1509 = vmatpush1.bf16.msra.mxu0 0
    %1510 = vmatprep.subr.bf16.mxu0 0
    %1511 = vmatpush1.bf16.msra.mxu0 0
    %1512 = vmatprep.subr.bf16.mxu0 0
    %1513 = vmatpush1.bf16.msra.mxu0 0
    %1514 = vmatprep.subr.bf16.mxu0 0
    %1515 = vmatpush1.bf16.msra.mxu0 0
    %1516 = vmatprep.subr.bf16.mxu0 0
    %1517 = vmatpush1.bf16.msra.mxu0 0
    %1518 = vmatprep.subr.bf16.mxu0 0
    %1519 = vmatpush1.bf16.msra.mxu0 0
    %1520 = vmatprep.mubr.bf16.mxu0 0
    %1521 = vmatmul.mubr.bf16.gmra.mrb[0].mxu0 %v1300
    %v1522 = vpop.f32.mrb[0].mxu0
    %v1523 = vadd.f32 %v1483, %v1522
    %v1524 = vpop.f32.mrb[0].mxu0
    %v1525 = vpop.f32.mrb[0].mxu0
    %v1526 = vpop.f32.mrb[0].mxu0
    %1527 = vdwg.mxu0
    %vm1528 = vcmp.ge.f32.partialorder %v1523, 0.0
    %v1529 = vmul.f32 %v1523, 0.22916667
    %v1530 = vsel %vm1528, %v1523, %v1529
    %v1531 = vpack.c.bf16 %v1530, %v1530
    %s1532 = scalar_lea.vmem [#allocation9], 128
    %v1533 = vld [vmem:[%s1532] sm:$0xf]
    %v1534 = vld [vmem:[%s1532 + $0x4] sm:$0xf]
    %v1535 = vld [vmem:[%s1532 + $0x8] sm:$0xf]
    %v1536 = vld [vmem:[%s1532 + $0xc] sm:$0xf]
    %v1537 = vld [vmem:[%s1532 + $0x10] sm:$0xf]
    %v1538 = vld [vmem:[%s1532 + $0x14] sm:$0xf]
    %v1539 = vld [vmem:[%s1532 + $0x18] sm:$0xf]
    %v1540 = vld [vmem:[%s1532 + $0x1c] sm:$0xf]
    %v1541 = vld [vmem:[%s1532 + $0x20] sm:$0xf]
    %v1542 = vld [vmem:[%s1532 + $0x24] sm:$0xf]
    %v1543 = vld [vmem:[%s1532 + $0x28] sm:$0xf]
    %v1544 = vld [vmem:[%s1532 + $0x2c] sm:$0xf]
    %v1545 = vld [vmem:[%s1532 + $0x30] sm:$0xf]
    %v1546 = vld [vmem:[%s1532 + $0x34] sm:$0xf]
    %v1547 = vld [vmem:[%s1532 + $0x38] sm:$0xf]
    %v1548 = vld [vmem:[%s1532 + $0x3c] sm:$0xf]
    %s1549 = scalar_lea.vmem %s5, 2
    %v1550 = vld [vmem:[%s1549] sm:$0x1]
    %v1552 = vlaneseq
    %v1553 = vshrl.u32 %v1552, 7
    %v1554 = vsub.s32 0, %v1553
    %v1555 = vrot.slane %v1550, %v1554
    %v1573 = vunpack.c.l.b16 %v1533
    %v1574 = vunpack.c.l.b16 %v1534
    %v1575 = vunpack.c.l.b16 %v1535
    %v1576 = vunpack.c.l.b16 %v1536
    %v1577 = vunpack.c.l.b16 %v1537
    %v1578 = vunpack.c.l.b16 %v1538
    %v1579 = vunpack.c.l.b16 %v1539
    %v1580 = vunpack.c.l.b16 %v1540
    %v1581 = vunpack.c.l.b16 %v1541
    %v1582 = vunpack.c.l.b16 %v1542
    %v1583 = vunpack.c.l.b16 %v1543
    %v1584 = vunpack.c.l.b16 %v1544
    %v1585 = vunpack.c.l.b16 %v1545
    %v1586 = vunpack.c.l.b16 %v1546
    %v1587 = vunpack.c.l.b16 %v1547
    %v1588 = vunpack.c.l.b16 %v1548
    %v1589 = vpack.c.b16 %v1574, %v1573
    %v1590 = vpack.c.b16 %v1576, %v1575
    %v1591 = vpack.c.b16 %v1578, %v1577
    %v1592 = vpack.c.b16 %v1580, %v1579
    %v1593 = vpack.c.b16 %v1582, %v1581
    %v1594 = vpack.c.b16 %v1584, %v1583
    %v1595 = vpack.c.b16 %v1586, %v1585
    %v1596 = vpack.c.b16 %v1588, %v1587
    %1605 = vmatprep.subr.bf16.mxu0 0
    %1606 = vmatpush1.bf16.msra.mxu0 %v1589
    %1607 = vmatprep.subr.bf16.mxu0 0
    %1608 = vmatpush1.bf16.msra.mxu0 %v1590
    %1609 = vmatprep.subr.bf16.mxu0 0
    %1610 = vmatpush1.bf16.msra.mxu0 %v1591
    %1611 = vmatprep.subr.bf16.mxu0 0
    %1612 = vmatpush1.bf16.msra.mxu0 %v1592
    %1613 = vmatprep.subr.bf16.mxu0 0
    %1614 = vmatpush1.bf16.msra.mxu0 %v1593
    %1615 = vmatprep.subr.bf16.mxu0 0
    %1616 = vmatpush1.bf16.msra.mxu0 %v1594
    %1617 = vmatprep.subr.bf16.mxu0 0
    %1618 = vmatpush1.bf16.msra.mxu0 %v1595
    %1619 = vmatprep.subr.bf16.mxu0 0
    %1620 = vmatpush1.bf16.msra.mxu0 %v1596
    %1621 = vmatprep.subr.bf16.mxu0 0
    %1622 = vmatpush1.bf16.msra.mxu0 0
    %1623 = vmatprep.subr.bf16.mxu0 0
    %1624 = vmatpush1.bf16.msra.mxu0 0
    %1625 = vmatprep.subr.bf16.mxu0 0
    %1626 = vmatpush1.bf16.msra.mxu0 0
    %1627 = vmatprep.subr.bf16.mxu0 0
    %1628 = vmatpush1.bf16.msra.mxu0 0
    %1629 = vmatprep.subr.bf16.mxu0 0
    %1630 = vmatpush1.bf16.msra.mxu0 0
    %1631 = vmatprep.subr.bf16.mxu0 0
    %1632 = vmatpush1.bf16.msra.mxu0 0
    %1633 = vmatprep.subr.bf16.mxu0 0
    %1634 = vmatpush1.bf16.msra.mxu0 0
    %1635 = vmatprep.subr.bf16.mxu0 0
    %1636 = vmatpush1.bf16.msra.mxu0 0
    %1637 = vmatprep.mubr.bf16.mxu0 0
    %1638 = vmatmul.mubr.bf16.gmra.mrb[0].mxu0 %v1531
    %v1639 = vpop.f32.mrb[0].mxu0
    %v1640 = vadd.f32 %v1555, %v1639
    %v1641 = vpop.f32.mrb[0].mxu0
    %v1642 = vpop.f32.mrb[0].mxu0
    %v1643 = vpop.f32.mrb[0].mxu0
    %1644 = vdwg.mxu0
    %vm1645 = vcmp.ge.f32.partialorder %v1640, 0.0
    %v1646 = vmul.f32 %v1640, 0.22916667
    %v1647 = vsel %vm1645, %v1640, %v1646
    %v1648 = vpack.c.bf16 %v1647, %v1647
    %s1649 = scalar_lea.vmem [#allocation11], 128
    %v1650 = vld [vmem:[%s1649] sm:$0xf]
    %v1651 = vld [vmem:[%s1649 + $0x4] sm:$0xf]
    %v1652 = vld [vmem:[%s1649 + $0x8] sm:$0xf]
    %v1653 = vld [vmem:[%s1649 + $0xc] sm:$0xf]
    %v1654 = vld [vmem:[%s1649 + $0x10] sm:$0xf]
    %v1655 = vld [vmem:[%s1649 + $0x14] sm:$0xf]
    %v1656 = vld [vmem:[%s1649 + $0x18] sm:$0xf]
    %v1657 = vld [vmem:[%s1649 + $0x1c] sm:$0xf]
    %v1658 = vld [vmem:[%s1649 + $0x20] sm:$0xf]
    %v1659 = vld [vmem:[%s1649 + $0x24] sm:$0xf]
    %v1660 = vld [vmem:[%s1649 + $0x28] sm:$0xf]
    %v1661 = vld [vmem:[%s1649 + $0x2c] sm:$0xf]
    %v1662 = vld [vmem:[%s1649 + $0x30] sm:$0xf]
    %v1663 = vld [vmem:[%s1649 + $0x34] sm:$0xf]
    %v1664 = vld [vmem:[%s1649 + $0x38] sm:$0xf]
    %v1665 = vld [vmem:[%s1649 + $0x3c] sm:$0xf]
    %s1666 = scalar_lea.vmem %s7, 2
    %v1667 = vld [vmem:[%s1666] sm:$0x1]
    %v1669 = vlaneseq
    %v1670 = vshrl.u32 %v1669, 7
    %v1671 = vsub.s32 0, %v1670
    %v1672 = vrot.slane %v1667, %v1671
    %v1690 = vunpack.c.l.b16 %v1650
    %v1691 = vunpack.c.l.b16 %v1651
    %v1692 = vunpack.c.l.b16 %v1652
    %v1693 = vunpack.c.l.b16 %v1653
    %v1694 = vunpack.c.l.b16 %v1654
    %v1695 = vunpack.c.l.b16 %v1655
    %v1696 = vunpack.c.l.b16 %v1656
    %v1697 = vunpack.c.l.b16 %v1657
    %v1698 = vunpack.c.l.b16 %v1658
    %v1699 = vunpack.c.l.b16 %v1659
    %v1700 = vunpack.c.l.b16 %v1660
    %v1701 = vunpack.c.l.b16 %v1661
    %v1702 = vunpack.c.l.b16 %v1662
    %v1703 = vunpack.c.l.b16 %v1663
    %v1704 = vunpack.c.l.b16 %v1664
    %v1705 = vunpack.c.l.b16 %v1665
    %v1706 = vpack.c.b16 %v1691, %v1690
    %v1707 = vpack.c.b16 %v1693, %v1692
    %v1708 = vpack.c.b16 %v1695, %v1694
    %v1709 = vpack.c.b16 %v1697, %v1696
    %v1710 = vpack.c.b16 %v1699, %v1698
    %v1711 = vpack.c.b16 %v1701, %v1700
    %v1712 = vpack.c.b16 %v1703, %v1702
    %v1713 = vpack.c.b16 %v1705, %v1704
    %1722 = vmatprep.subr.bf16.mxu0 0
    %1723 = vmatpush1.bf16.msra.mxu0 %v1706
    %1724 = vmatprep.subr.bf16.mxu0 0
    %1725 = vmatpush1.bf16.msra.mxu0 %v1707
    %1726 = vmatprep.subr.bf16.mxu0 0
    %1727 = vmatpush1.bf16.msra.mxu0 %v1708
    %1728 = vmatprep.subr.bf16.mxu0 0
    %1729 = vmatpush1.bf16.msra.mxu0 %v1709
    %1730 = vmatprep.subr.bf16.mxu0 0
    %1731 = vmatpush1.bf16.msra.mxu0 %v1710
    %1732 = vmatprep.subr.bf16.mxu0 0
    %1733 = vmatpush1.bf16.msra.mxu0 %v1711
    %1734 = vmatprep.subr.bf16.mxu0 0
    %1735 = vmatpush1.bf16.msra.mxu0 %v1712
    %1736 = vmatprep.subr.bf16.mxu0 0
    %1737 = vmatpush1.bf16.msra.mxu0 %v1713
    %1738 = vmatprep.subr.bf16.mxu0 0
    %1739 = vmatpush1.bf16.msra.mxu0 0
    %1740 = vmatprep.subr.bf16.mxu0 0
    %1741 = vmatpush1.bf16.msra.mxu0 0
    %1742 = vmatprep.subr.bf16.mxu0 0
    %1743 = vmatpush1.bf16.msra.mxu0 0
    %1744 = vmatprep.subr.bf16.mxu0 0
    %1745 = vmatpush1.bf16.msra.mxu0 0
    %1746 = vmatprep.subr.bf16.mxu0 0
    %1747 = vmatpush1.bf16.msra.mxu0 0
    %1748 = vmatprep.subr.bf16.mxu0 0
    %1749 = vmatpush1.bf16.msra.mxu0 0
    %1750 = vmatprep.subr.bf16.mxu0 0
    %1751 = vmatpush1.bf16.msra.mxu0 0
    %1752 = vmatprep.subr.bf16.mxu0 0
    %1753 = vmatpush1.bf16.msra.mxu0 0
    %1754 = vmatprep.mubr.bf16.mxu0 0
    %1755 = vmatmul.mubr.bf16.gmra.mrb[0].mxu0 %v1648
    %v1756 = vpop.f32.mrb[0].mxu0
    %v1757 = vadd.f32 %v1672, %v1756
    %v1758 = vpop.f32.mrb[0].mxu0
    %v1759 = vpop.f32.mrb[0].mxu0
    %v1760 = vpop.f32.mrb[0].mxu0
    %1761 = vdwg.mxu0
    %vm1762 = vcmp.ge.f32.partialorder %v1757, 0.0
    %v1763 = vmul.f32 %v1757, 0.22916667
    %v1764 = vsel %vm1762, %v1757, %v1763
    %v1765 = vpack.c.bf16 %v1764, %v1764
    %s1766 = scalar_lea.vmem [#allocation12], 128
    %v1767 = vld [vmem:[%s1766] sm:$0xf]
    %v1768 = vld [vmem:[%s1766 + $0x4] sm:$0xf]
    %v1769 = vld [vmem:[%s1766 + $0x8] sm:$0xf]
    %v1770 = vld [vmem:[%s1766 + $0xc] sm:$0xf]
    %v1771 = vld [vmem:[%s1766 + $0x10] sm:$0xf]
    %v1772 = vld [vmem:[%s1766 + $0x14] sm:$0xf]
    %v1773 = vld [vmem:[%s1766 + $0x18] sm:$0xf]
    %v1774 = vld [vmem:[%s1766 + $0x1c] sm:$0xf]
    %v1775 = vld [vmem:[%s1766 + $0x20] sm:$0xf]
    %v1776 = vld [vmem:[%s1766 + $0x24] sm:$0xf]
    %v1777 = vld [vmem:[%s1766 + $0x28] sm:$0xf]
    %v1778 = vld [vmem:[%s1766 + $0x2c] sm:$0xf]
    %v1779 = vld [vmem:[%s1766 + $0x30] sm:$0xf]
    %v1780 = vld [vmem:[%s1766 + $0x34] sm:$0xf]
    %v1781 = vld [vmem:[%s1766 + $0x38] sm:$0xf]
    %v1782 = vld [vmem:[%s1766 + $0x3c] sm:$0xf]
    %s1783 = scalar_lea.vmem %s9, 2
    %v1784 = vld [vmem:[%s1783] sm:$0x1]
    %v1786 = vlaneseq
    %v1787 = vshrl.u32 %v1786, 7
    %v1788 = vsub.s32 0, %v1787
    %v1789 = vrot.slane %v1784, %v1788
    %v1807 = vunpack.c.l.b16 %v1767
    %v1808 = vunpack.c.l.b16 %v1768
    %v1809 = vunpack.c.l.b16 %v1769
    %v1810 = vunpack.c.l.b16 %v1770
    %v1811 = vunpack.c.l.b16 %v1771
    %v1812 = vunpack.c.l.b16 %v1772
    %v1813 = vunpack.c.l.b16 %v1773
    %v1814 = vunpack.c.l.b16 %v1774
    %v1815 = vunpack.c.l.b16 %v1775
    %v1816 = vunpack.c.l.b16 %v1776
    %v1817 = vunpack.c.l.b16 %v1777
    %v1818 = vunpack.c.l.b16 %v1778
    %v1819 = vunpack.c.l.b16 %v1779
    %v1820 = vunpack.c.l.b16 %v1780
    %v1821 = vunpack.c.l.b16 %v1781
    %v1822 = vunpack.c.l.b16 %v1782
    %v1823 = vpack.c.b16 %v1808, %v1807
    %v1824 = vpack.c.b16 %v1810, %v1809
    %v1825 = vpack.c.b16 %v1812, %v1811
    %v1826 = vpack.c.b16 %v1814, %v1813
    %v1827 = vpack.c.b16 %v1816, %v1815
    %v1828 = vpack.c.b16 %v1818, %v1817
    %v1829 = vpack.c.b16 %v1820, %v1819
    %v1830 = vpack.c.b16 %v1822, %v1821
    %1839 = vmatprep.subr.bf16.mxu0 0
    %1840 = vmatpush1.bf16.msra.mxu0 %v1823
    %1841 = vmatprep.subr.bf16.mxu0 0
    %1842 = vmatpush1.bf16.msra.mxu0 %v1824
    %1843 = vmatprep.subr.bf16.mxu0 0
    %1844 = vmatpush1.bf16.msra.mxu0 %v1825
    %1845 = vmatprep.subr.bf16.mxu0 0
    %1846 = vmatpush1.bf16.msra.mxu0 %v1826
    %1847 = vmatprep.subr.bf16.mxu0 0
    %1848 = vmatpush1.bf16.msra.mxu0 %v1827
    %1849 = vmatprep.subr.bf16.mxu0 0
    %1850 = vmatpush1.bf16.msra.mxu0 %v1828
    %1851 = vmatprep.subr.bf16.mxu0 0
    %1852 = vmatpush1.bf16.msra.mxu0 %v1829
    %1853 = vmatprep.subr.bf16.mxu0 0
    %1854 = vmatpush1.bf16.msra.mxu0 %v1830
    %1855 = vmatprep.subr.bf16.mxu0 0
    %1856 = vmatpush1.bf16.msra.mxu0 0
    %1857 = vmatprep.subr.bf16.mxu0 0
    %1858 = vmatpush1.bf16.msra.mxu0 0
    %1859 = vmatprep.subr.bf16.mxu0 0
    %1860 = vmatpush1.bf16.msra.mxu0 0
    %1861 = vmatprep.subr.bf16.mxu0 0
    %1862 = vmatpush1.bf16.msra.mxu0 0
    %1863 = vmatprep.subr.bf16.mxu0 0
    %1864 = vmatpush1.bf16.msra.mxu0 0
    %1865 = vmatprep.subr.bf16.mxu0 0
    %1866 = vmatpush1.bf16.msra.mxu0 0
    %1867 = vmatprep.subr.bf16.mxu0 0
    %1868 = vmatpush1.bf16.msra.mxu0 0
    %1869 = vmatprep.subr.bf16.mxu0 0
    %1870 = vmatpush1.bf16.msra.mxu0 0
    %1871 = vmatprep.mubr.bf16.mxu0 0
    %1872 = vmatmul.mubr.bf16.gmra.mrb[0].mxu0 %v1765
    %v1873 = vpop.f32.mrb[0].mxu0
    %v1874 = vadd.f32 %v1789, %v1873
    %v1875 = vpop.f32.mrb[0].mxu0
    %v1876 = vpop.f32.mrb[0].mxu0
    %v1877 = vpop.f32.mrb[0].mxu0
    %1878 = vdwg.mxu0
    %vm1879 = vcmp.ge.f32.partialorder %v1874, 0.0
    %v1880 = vmul.f32 %v1874, 0.22916667
    %v1881 = vsel %vm1879, %v1874, %v1880
    %1882 = vmax.xlane.f32.xlu0 %v1881
    %v1883 = vpop.xlane.xlu0 %1882
    %v1884 = vsub.f32 %v1881, %v1883
    %v1885 = vmul.f32 %v1884, 1.442695
    %v1886 = vpow.pop %v1885
    %1887 = vadd.xlane.f32.xlu0 %v1886
    %v1888 = vpop.xlane.xlu0 %1887
    %v1889 = vrcp.pop %v1888
    %v1890 = vmul.f32 %v1886, %v1889
    %1891 = vst [vmem:[#allocation14 + $0x10] sm:$0xff] %v1890
    %v1892 = vsel %vm121, %v1890, -inf
    %1893 = vmax.xlane.f32.xlu0 %v1892
    %v1894 = vpop.xlane.xlu0 %1893
    %vm1895 = vcmp.eq.f32.partialorder %v1892, %v1894
    %vm1896 = vmand %vm1895, %vm121
    %v1897 = vsel %vm1896, %v120, 128
    %v1898 = vand.u32 %v1897, 65535
    %v1899 = vshra.s32 %v1897, 16
    %v1900 = vcvt.s32.f32 %v1898
    %v1901 = vcvt.s32.f32 %v1899
    %1902 = vmin.xlane.f32.xlu0 %v1901
    %v1903 = vpop.xlane.xlu0 %1902
    %vm1904 = vcmp.eq.f32.partialorder %v1901, %v1903
    %v1905 = vsel %vm1904, %v1900, inf
    %1906 = vmin.xlane.f32.xlu0 %v1905
    %v1907 = vpop.xlane.xlu0 %1906
    %v1908 = vcvt.f32.s32 %v1907
    %v1909 = vcvt.f32.s32 %v1903
    %v1910 = vshll.u32 %v1909, 16
    %v1911 = vadd.s32 %v1910, %v1908
    %vm1912 = vcmp.eq.s32.totalorder %v120, %v1911
    %v1913 = vsel %vm1912, %v123, 0.0
    %1914 = vadd.xlane.f32.xlu0 %v1913
    %v1915 = vpop.xlane.xlu0 %1914
    %vm1916 = vcmp.eq.s32.totalorder %v120, 3
    %v1917 = vsel %vm1916, %v1911, %v1229
    %v1918 = vsel %vm1916, %v1915, %v1230
    %v1919 = vsel %vm122, %v1915, %v1890
    %v1920 = vpack.c.bf16 %v1919, %v1919
    %1921 = vst [vmem:[#allocation2 + $0xc] sm:$0xf] %v1920
    %v1922 = vld [vmem:[#allocation2] sm:$0xff]
    %v1923 = vld [vmem:[#allocation2 + $0x8] sm:$0xff]
    %s1924 = scalar_lea.vmem [#allocation8], 768
    %v1925 = vld [vmem:[%s1924] sm:$0xf]
    %v1926 = vld [vmem:[%s1924 + $0x4] sm:$0xf]
    %v1927 = vld [vmem:[%s1924 + $0x8] sm:$0xf]
    %v1928 = vld [vmem:[%s1924 + $0xc] sm:$0xf]
    %v1929 = vld [vmem:[%s1924 + $0x10] sm:$0xf]
    %v1930 = vld [vmem:[%s1924 + $0x14] sm:$0xf]
    %v1931 = vld [vmem:[%s1924 + $0x18] sm:$0xf]
    %v1932 = vld [vmem:[%s1924 + $0x1c] sm:$0xf]
    %v1933 = vld [vmem:[%s1924 + $0x20] sm:$0xf]
    %v1934 = vld [vmem:[%s1924 + $0x24] sm:$0xf]
    %v1935 = vld [vmem:[%s1924 + $0x28] sm:$0xf]
    %v1936 = vld [vmem:[%s1924 + $0x2c] sm:$0xf]
    %v1937 = vld [vmem:[%s1924 + $0x30] sm:$0xf]
    %v1938 = vld [vmem:[%s1924 + $0x34] sm:$0xf]
    %v1939 = vld [vmem:[%s1924 + $0x38] sm:$0xf]
    %v1940 = vld [vmem:[%s1924 + $0x3c] sm:$0xf]
    %v1941 = vld [vmem:[%s1924 + $0x40] sm:$0xf]
    %v1942 = vld [vmem:[%s1924 + $0x44] sm:$0xf]
    %v1943 = vld [vmem:[%s1924 + $0x48] sm:$0xf]
    %v1944 = vld [vmem:[%s1924 + $0x4c] sm:$0xf]
    %v1945 = vld [vmem:[%s1924 + $0x50] sm:$0xf]
    %v1946 = vld [vmem:[%s1924 + $0x54] sm:$0xf]
    %v1947 = vld [vmem:[%s1924 + $0x58] sm:$0xf]
    %v1948 = vld [vmem:[%s1924 + $0x5c] sm:$0xf]
    %v1949 = vld [vmem:[%s1924 + $0x60] sm:$0xf]
    %v1950 = vld [vmem:[%s1924 + $0x64] sm:$0xf]
    %v1951 = vld [vmem:[%s1924 + $0x68] sm:$0xf]
    %v1952 = vld [vmem:[%s1924 + $0x6c] sm:$0xf]
    %v1953 = vld [vmem:[%s1924 + $0x70] sm:$0xf]
    %v1954 = vld [vmem:[%s1924 + $0x74] sm:$0xf]
    %v1955 = vld [vmem:[%s1924 + $0x78] sm:$0xf]
    %v1956 = vld [vmem:[%s1924 + $0x7c] sm:$0xf]
    %v1957 = vld [vmem:[%s1924 + $0x80] sm:$0xf]
    %v1958 = vld [vmem:[%s1924 + $0x84] sm:$0xf]
    %v1959 = vld [vmem:[%s1924 + $0x88] sm:$0xf]
    %v1960 = vld [vmem:[%s1924 + $0x8c] sm:$0xf]
    %v1961 = vld [vmem:[%s1924 + $0x90] sm:$0xf]
    %v1962 = vld [vmem:[%s1924 + $0x94] sm:$0xf]
    %v1963 = vld [vmem:[%s1924 + $0x98] sm:$0xf]
    %v1964 = vld [vmem:[%s1924 + $0x9c] sm:$0xf]
    %v1965 = vld [vmem:[%s1924 + $0xa0] sm:$0xf]
    %v1966 = vld [vmem:[%s1924 + $0xa4] sm:$0xf]
    %v1967 = vld [vmem:[%s1924 + $0xa8] sm:$0xf]
    %v1968 = vld [vmem:[%s1924 + $0xac] sm:$0xf]
    %v1969 = vld [vmem:[%s1924 + $0xb0] sm:$0xf]
    %v1970 = vld [vmem:[%s1924 + $0xb4] sm:$0xf]
    %v1971 = vld [vmem:[%s1924 + $0xb8] sm:$0xf]
    %v1972 = vld [vmem:[%s1924 + $0xbc] sm:$0xf]
    %v1973 = vld [vmem:[%s1924 + $0xc0] sm:$0xf]
    %v1974 = vld [vmem:[%s1924 + $0xc4] sm:$0xf]
    %v1975 = vld [vmem:[%s1924 + $0xc8] sm:$0xf]
    %v1976 = vld [vmem:[%s1924 + $0xcc] sm:$0xf]
    %v1977 = vld [vmem:[%s1924 + $0xd0] sm:$0xf]
    %v1978 = vld [vmem:[%s1924 + $0xd4] sm:$0xf]
    %v1979 = vld [vmem:[%s1924 + $0xd8] sm:$0xf]
    %v1980 = vld [vmem:[%s1924 + $0xdc] sm:$0xf]
    %v1981 = vld [vmem:[%s1924 + $0xe0] sm:$0xf]
    %v1982 = vld [vmem:[%s1924 + $0xe4] sm:$0xf]
    %v1983 = vld [vmem:[%s1924 + $0xe8] sm:$0xf]
    %v1984 = vld [vmem:[%s1924 + $0xec] sm:$0xf]
    %v1985 = vld [vmem:[%s1924 + $0xf0] sm:$0xf]
    %v1986 = vld [vmem:[%s1924 + $0xf4] sm:$0xf]
    %v1987 = vld [vmem:[%s1924 + $0xf8] sm:$0xf]
    %v1988 = vld [vmem:[%s1924 + $0xfc] sm:$0xf]
    %s1989 = scalar_lea.vmem %s3, 3
    %v1990 = vld [vmem:[%s1989] sm:$0x1]
    %v1992 = vlaneseq
    %v1993 = vshrl.u32 %v1992, 7
    %v1994 = vsub.s32 0, %v1993
    %v1995 = vrot.slane %v1990, %v1994
    %v1999 = vunpack.c.l.b16 %v1922
    %v2000 = vunpack.c.h.b16 %v1922
    %v2001 = vunpack.c.l.b16 %v1923
    %v2002 = vunpack.c.h.b16 %v1923
    %v2003 = vpack.c.b16 %v1999, %v1999
    %v2004 = vpack.c.b16 %v2000, %v2000
    %v2005 = vpack.c.b16 %v2001, %v2001
    %v2006 = vpack.c.b16 %v2002, %v2002
    %v2075 = vunpack.c.l.b16 %v1925
    %v2076 = vunpack.c.l.b16 %v1926
    %v2077 = vunpack.c.l.b16 %v1927
    %v2078 = vunpack.c.l.b16 %v1928
    %v2079 = vunpack.c.l.b16 %v1929
    %v2080 = vunpack.c.l.b16 %v1930
    %v2081 = vunpack.c.l.b16 %v1931
    %v2082 = vunpack.c.l.b16 %v1932
    %v2083 = vunpack.c.l.b16 %v1933
    %v2084 = vunpack.c.l.b16 %v1934
    %v2085 = vunpack.c.l.b16 %v1935
    %v2086 = vunpack.c.l.b16 %v1936
    %v2087 = vunpack.c.l.b16 %v1937
    %v2088 = vunpack.c.l.b16 %v1938
    %v2089 = vunpack.c.l.b16 %v1939
    %v2090 = vunpack.c.l.b16 %v1940
    %v2091 = vunpack.c.l.b16 %v1941
    %v2092 = vunpack.c.l.b16 %v1942
    %v2093 = vunpack.c.l.b16 %v1943
    %v2094 = vunpack.c.l.b16 %v1944
    %v2095 = vunpack.c.l.b16 %v1945
    %v2096 = vunpack.c.l.b16 %v1946
    %v2097 = vunpack.c.l.b16 %v1947
    %v2098 = vunpack.c.l.b16 %v1948
    %v2099 = vunpack.c.l.b16 %v1949
    %v2100 = vunpack.c.l.b16 %v1950
    %v2101 = vunpack.c.l.b16 %v1951
    %v2102 = vunpack.c.l.b16 %v1952
    %v2103 = vunpack.c.l.b16 %v1953
    %v2104 = vunpack.c.l.b16 %v1954
    %v2105 = vunpack.c.l.b16 %v1955
    %v2106 = vunpack.c.l.b16 %v1956
    %v2107 = vunpack.c.l.b16 %v1957
    %v2108 = vunpack.c.l.b16 %v1958
    %v2109 = vunpack.c.l.b16 %v1959
    %v2110 = vunpack.c.l.b16 %v1960
    %v2111 = vunpack.c.l.b16 %v1961
    %v2112 = vunpack.c.l.b16 %v1962
    %v2113 = vunpack.c.l.b16 %v1963
    %v2114 = vunpack.c.l.b16 %v1964
    %v2115 = vunpack.c.l.b16 %v1965
    %v2116 = vunpack.c.l.b16 %v1966
    %v2117 = vunpack.c.l.b16 %v1967
    %v2118 = vunpack.c.l.b16 %v1968
    %v2119 = vunpack.c.l.b16 %v1969
    %v2120 = vunpack.c.l.b16 %v1970
    %v2121 = vunpack.c.l.b16 %v1971
    %v2122 = vunpack.c.l.b16 %v1972
    %v2123 = vunpack.c.l.b16 %v1973
    %v2124 = vunpack.c.l.b16 %v1974
    %v2125 = vunpack.c.l.b16 %v1975
    %v2126 = vunpack.c.l.b16 %v1976
    %v2127 = vunpack.c.l.b16 %v1977
    %v2128 = vunpack.c.l.b16 %v1978
    %v2129 = vunpack.c.l.b16 %v1979
    %v2130 = vunpack.c.l.b16 %v1980
    %v2131 = vunpack.c.l.b16 %v1981
    %v2132 = vunpack.c.l.b16 %v1982
    %v2133 = vunpack.c.l.b16 %v1983
    %v2134 = vunpack.c.l.b16 %v1984
    %v2135 = vunpack.c.l.b16 %v1985
    %v2136 = vunpack.c.l.b16 %v1986
    %v2137 = vunpack.c.l.b16 %v1987
    %v2138 = vunpack.c.l.b16 %v1988
    %v2139 = vpack.c.b16 %v2076, %v2075
    %v2140 = vpack.c.b16 %v2078, %v2077
    %v2141 = vpack.c.b16 %v2080, %v2079
    %v2142 = vpack.c.b16 %v2082, %v2081
    %v2143 = vpack.c.b16 %v2084, %v2083
    %v2144 = vpack.c.b16 %v2086, %v2085
    %v2145 = vpack.c.b16 %v2088, %v2087
    %v2146 = vpack.c.b16 %v2090, %v2089
    %v2147 = vpack.c.b16 %v2092, %v2091
    %v2148 = vpack.c.b16 %v2094, %v2093
    %v2149 = vpack.c.b16 %v2096, %v2095
    %v2150 = vpack.c.b16 %v2098, %v2097
    %v2151 = vpack.c.b16 %v2100, %v2099
    %v2152 = vpack.c.b16 %v2102, %v2101
    %v2153 = vpack.c.b16 %v2104, %v2103
    %v2154 = vpack.c.b16 %v2106, %v2105
    %v2155 = vpack.c.b16 %v2108, %v2107
    %v2156 = vpack.c.b16 %v2110, %v2109
    %v2157 = vpack.c.b16 %v2112, %v2111
    %v2158 = vpack.c.b16 %v2114, %v2113
    %v2159 = vpack.c.b16 %v2116, %v2115
    %v2160 = vpack.c.b16 %v2118, %v2117
    %v2161 = vpack.c.b16 %v2120, %v2119
    %v2162 = vpack.c.b16 %v2122, %v2121
    %v2163 = vpack.c.b16 %v2124, %v2123
    %v2164 = vpack.c.b16 %v2126, %v2125
    %v2165 = vpack.c.b16 %v2128, %v2127
    %v2166 = vpack.c.b16 %v2130, %v2129
    %v2167 = vpack.c.b16 %v2132, %v2131
    %v2168 = vpack.c.b16 %v2134, %v2133
    %v2169 = vpack.c.b16 %v2136, %v2135
    %v2170 = vpack.c.b16 %v2138, %v2137
    %2203 = vmatprep.subr.bf16.mxu0 0
    %2204 = vmatpush1.bf16.msra.mxu0 %v2139
    %2205 = vmatprep.subr.bf16.mxu0 0
    %2206 = vmatpush1.bf16.msra.mxu0 %v2140
    %2207 = vmatprep.subr.bf16.mxu0 0
    %2208 = vmatpush1.bf16.msra.mxu0 %v2141
    %2209 = vmatprep.subr.bf16.mxu0 0
    %2210 = vmatpush1.bf16.msra.mxu0 %v2142
    %2211 = vmatprep.subr.bf16.mxu0 0
    %2212 = vmatpush1.bf16.msra.mxu0 %v2143
    %2213 = vmatprep.subr.bf16.mxu0 0
    %2214 = vmatpush1.bf16.msra.mxu0 %v2144
    %2215 = vmatprep.subr.bf16.mxu0 0
    %2216 = vmatpush1.bf16.msra.mxu0 %v2145
    %2217 = vmatprep.subr.bf16.mxu0 0
    %2218 = vmatpush1.bf16.msra.mxu0 %v2146
    %2219 = vmatprep.subr.bf16.mxu0 0
    %2220 = vmatpush1.bf16.msra.mxu0 %v2147
    %2221 = vmatprep.subr.bf16.mxu0 0
    %2222 = vmatpush1.bf16.msra.mxu0 %v2148
    %2223 = vmatprep.subr.bf16.mxu0 0
    %2224 = vmatpush1.bf16.msra.mxu0 %v2149
    %2225 = vmatprep.subr.bf16.mxu0 0
    %2226 = vmatpush1.bf16.msra.mxu0 %v2150
    %2227 = vmatprep.subr.bf16.mxu0 0
    %2228 = vmatpush1.bf16.msra.mxu0 %v2151
    %2229 = vmatprep.subr.bf16.mxu0 0
    %2230 = vmatpush1.bf16.msra.mxu0 %v2152
    %2231 = vmatprep.subr.bf16.mxu0 0
    %2232 = vmatpush1.bf16.msra.mxu0 %v2153
    %2233 = vmatprep.subr.bf16.mxu0 0
    %2234 = vmatpush1.bf16.msra.mxu0 %v2154
    %2235 = vmatprep.mubr.bf16.mxu0 %v2004
    %2236 = vmatmul.mubr.bf16.gmra.mrb[0].mxu0 %v2003
    %v2237 = vpop.f32.mrb[0].mxu0
    %v2238 = vadd.f32 %v1995, %v2237
    %v2239 = vpop.f32.mrb[0].mxu0
    %v2240 = vpop.f32.mrb[0].mxu0
    %v2241 = vpop.f32.mrb[0].mxu0
    %2242 = vdwg.mxu0
    %2243 = vmatprep.subr.bf16.mxu0 0
    %2244 = vmatpush1.bf16.msra.mxu0 %v2155
    %2245 = vmatprep.subr.bf16.mxu0 0
    %2246 = vmatpush1.bf16.msra.mxu0 %v2156
    %2247 = vmatprep.subr.bf16.mxu0 0
    %2248 = vmatpush1.bf16.msra.mxu0 %v2157
    %2249 = vmatprep.subr.bf16.mxu0 0
    %2250 = vmatpush1.bf16.msra.mxu0 %v2158
    %2251 = vmatprep.subr.bf16.mxu0 0
    %2252 = vmatpush1.bf16.msra.mxu0 %v2159
    %2253 = vmatprep.subr.bf16.mxu0 0
    %2254 = vmatpush1.bf16.msra.mxu0 %v2160
    %2255 = vmatprep.subr.bf16.mxu0 0
    %2256 = vmatpush1.bf16.msra.mxu0 %v2161
    %2257 = vmatprep.subr.bf16.mxu0 0
    %2258 = vmatpush1.bf16.msra.mxu0 %v2162
    %2259 = vmatprep.subr.bf16.mxu0 0
    %2260 = vmatpush1.bf16.msra.mxu0 %v2163
    %2261 = vmatprep.subr.bf16.mxu0 0
    %2262 = vmatpush1.bf16.msra.mxu0 %v2164
    %2263 = vmatprep.subr.bf16.mxu0 0
    %2264 = vmatpush1.bf16.msra.mxu0 %v2165
    %2265 = vmatprep.subr.bf16.mxu0 0
    %2266 = vmatpush1.bf16.msra.mxu0 %v2166
    %2267 = vmatprep.subr.bf16.mxu0 0
    %2268 = vmatpush1.bf16.msra.mxu0 %v2167
    %2269 = vmatprep.subr.bf16.mxu0 0
    %2270 = vmatpush1.bf16.msra.mxu0 %v2168
    %2271 = vmatprep.subr.bf16.mxu0 0
    %2272 = vmatpush1.bf16.msra.mxu0 %v2169
    %2273 = vmatprep.subr.bf16.mxu0 0
    %2274 = vmatpush1.bf16.msra.mxu0 %v2170
    %2275 = vmatprep.mubr.bf16.mxu0 %v2006
    %2276 = vmatmul.mubr.bf16.gmra.mrb[0].mxu0 %v2005
    %v2277 = vpop.f32.mrb[0].mxu0
    %v2278 = vadd.f32 %v2238, %v2277
    %v2279 = vpop.f32.mrb[0].mxu0
    %v2280 = vpop.f32.mrb[0].mxu0
    %v2281 = vpop.f32.mrb[0].mxu0
    %2282 = vdwg.mxu0
    %vm2283 = vcmp.ge.f32.partialorder %v2278, 0.0
    %v2284 = vmul.f32 %v2278, 0.22916667
    %v2285 = vsel %vm2283, %v2278, %v2284
    %v2286 = vpack.c.bf16 %v2285, %v2285
    %s2287 = scalar_lea.vmem [#allocation9], 192
    %v2288 = vld [vmem:[%s2287] sm:$0xf]
    %v2289 = vld [vmem:[%s2287 + $0x4] sm:$0xf]
    %v2290 = vld [vmem:[%s2287 + $0x8] sm:$0xf]
    %v2291 = vld [vmem:[%s2287 + $0xc] sm:$0xf]
    %v2292 = vld [vmem:[%s2287 + $0x10] sm:$0xf]
    %v2293 = vld [vmem:[%s2287 + $0x14] sm:$0xf]
    %v2294 = vld [vmem:[%s2287 + $0x18] sm:$0xf]
    %v2295 = vld [vmem:[%s2287 + $0x1c] sm:$0xf]
    %v2296 = vld [vmem:[%s2287 + $0x20] sm:$0xf]
    %v2297 = vld [vmem:[%s2287 + $0x24] sm:$0xf]
    %v2298 = vld [vmem:[%s2287 + $0x28] sm:$0xf]
    %v2299 = vld [vmem:[%s2287 + $0x2c] sm:$0xf]
    %v2300 = vld [vmem:[%s2287 + $0x30] sm:$0xf]
    %v2301 = vld [vmem:[%s2287 + $0x34] sm:$0xf]
    %v2302 = vld [vmem:[%s2287 + $0x38] sm:$0xf]
    %v2303 = vld [vmem:[%s2287 + $0x3c] sm:$0xf]
    %s2304 = scalar_lea.vmem %s5, 3
    %v2305 = vld [vmem:[%s2304] sm:$0x1]
    %v2307 = vlaneseq
    %v2308 = vshrl.u32 %v2307, 7
    %v2309 = vsub.s32 0, %v2308
    %v2310 = vrot.slane %v2305, %v2309
    %v2328 = vunpack.c.l.b16 %v2288
    %v2329 = vunpack.c.l.b16 %v2289
    %v2330 = vunpack.c.l.b16 %v2290
    %v2331 = vunpack.c.l.b16 %v2291
    %v2332 = vunpack.c.l.b16 %v2292
    %v2333 = vunpack.c.l.b16 %v2293
    %v2334 = vunpack.c.l.b16 %v2294
    %v2335 = vunpack.c.l.b16 %v2295
    %v2336 = vunpack.c.l.b16 %v2296
    %v2337 = vunpack.c.l.b16 %v2297
    %v2338 = vunpack.c.l.b16 %v2298
    %v2339 = vunpack.c.l.b16 %v2299
    %v2340 = vunpack.c.l.b16 %v2300
    %v2341 = vunpack.c.l.b16 %v2301
    %v2342 = vunpack.c.l.b16 %v2302
    %v2343 = vunpack.c.l.b16 %v2303
    %v2344 = vpack.c.b16 %v2329, %v2328
    %v2345 = vpack.c.b16 %v2331, %v2330
    %v2346 = vpack.c.b16 %v2333, %v2332
    %v2347 = vpack.c.b16 %v2335, %v2334
    %v2348 = vpack.c.b16 %v2337, %v2336
    %v2349 = vpack.c.b16 %v2339, %v2338
    %v2350 = vpack.c.b16 %v2341, %v2340
    %v2351 = vpack.c.b16 %v2343, %v2342
    %2360 = vmatprep.subr.bf16.mxu0 0
    %2361 = vmatpush1.bf16.msra.mxu0 %v2344
    %2362 = vmatprep.subr.bf16.mxu0 0
    %2363 = vmatpush1.bf16.msra.mxu0 %v2345
    %2364 = vmatprep.subr.bf16.mxu0 0
    %2365 = vmatpush1.bf16.msra.mxu0 %v2346
    %2366 = vmatprep.subr.bf16.mxu0 0
    %2367 = vmatpush1.bf16.msra.mxu0 %v2347
    %2368 = vmatprep.subr.bf16.mxu0 0
    %2369 = vmatpush1.bf16.msra.mxu0 %v2348
    %2370 = vmatprep.subr.bf16.mxu0 0
    %2371 = vmatpush1.bf16.msra.mxu0 %v2349
    %2372 = vmatprep.subr.bf16.mxu0 0
    %2373 = vmatpush1.bf16.msra.mxu0 %v2350
    %2374 = vmatprep.subr.bf16.mxu0 0
    %2375 = vmatpush1.bf16.msra.mxu0 %v2351
    %2376 = vmatprep.subr.bf16.mxu0 0
    %2377 = vmatpush1.bf16.msra.mxu0 0
    %2378 = vmatprep.subr.bf16.mxu0 0
    %2379 = vmatpush1.bf16.msra.mxu0 0
    %2380 = vmatprep.subr.bf16.mxu0 0
    %2381 = vmatpush1.bf16.msra.mxu0 0
    %2382 = vmatprep.subr.bf16.mxu0 0
    %2383 = vmatpush1.bf16.msra.mxu0 0
    %2384 = vmatprep.subr.bf16.mxu0 0
    %2385 = vmatpush1.bf16.msra.mxu0 0
    %2386 = vmatprep.subr.bf16.mxu0 0
    %2387 = vmatpush1.bf16.msra.mxu0 0
    %2388 = vmatprep.subr.bf16.mxu0 0
    %2389 = vmatpush1.bf16.msra.mxu0 0
    %2390 = vmatprep.subr.bf16.mxu0 0
    %2391 = vmatpush1.bf16.msra.mxu0 0
    %2392 = vmatprep.mubr.bf16.mxu0 0
    %2393 = vmatmul.mubr.bf16.gmra.mrb[0].mxu0 %v2286
    %v2394 = vpop.f32.mrb[0].mxu0
    %v2395 = vadd.f32 %v2310, %v2394
    %v2396 = vpop.f32.mrb[0].mxu0
    %v2397 = vpop.f32.mrb[0].mxu0
    %v2398 = vpop.f32.mrb[0].mxu0
    %2399 = vdwg.mxu0
    %vm2400 = vcmp.ge.f32.partialorder %v2395, 0.0
    %v2401 = vmul.f32 %v2395, 0.22916667
    %v2402 = vsel %vm2400, %v2395, %v2401
    %v2403 = vpack.c.bf16 %v2402, %v2402
    %s2404 = scalar_lea.vmem [#allocation11], 192
    %v2405 = vld [vmem:[%s2404] sm:$0xf]
    %v2406 = vld [vmem:[%s2404 + $0x4] sm:$0xf]
    %v2407 = vld [vmem:[%s2404 + $0x8] sm:$0xf]
    %v2408 = vld [vmem:[%s2404 + $0xc] sm:$0xf]
    %v2409 = vld [vmem:[%s2404 + $0x10] sm:$0xf]
    %v2410 = vld [vmem:[%s2404 + $0x14] sm:$0xf]
    %v2411 = vld [vmem:[%s2404 + $0x18] sm:$0xf]
    %v2412 = vld [vmem:[%s2404 + $0x1c] sm:$0xf]
    %v2413 = vld [vmem:[%s2404 + $0x20] sm:$0xf]
    %v2414 = vld [vmem:[%s2404 + $0x24] sm:$0xf]
    %v2415 = vld [vmem:[%s2404 + $0x28] sm:$0xf]
    %v2416 = vld [vmem:[%s2404 + $0x2c] sm:$0xf]
    %v2417 = vld [vmem:[%s2404 + $0x30] sm:$0xf]
    %v2418 = vld [vmem:[%s2404 + $0x34] sm:$0xf]
    %v2419 = vld [vmem:[%s2404 + $0x38] sm:$0xf]
    %v2420 = vld [vmem:[%s2404 + $0x3c] sm:$0xf]
    %s2421 = scalar_lea.vmem %s7, 3
    %v2422 = vld [vmem:[%s2421] sm:$0x1]
    %v2424 = vlaneseq
    %v2425 = vshrl.u32 %v2424, 7
    %v2426 = vsub.s32 0, %v2425
    %v2427 = vrot.slane %v2422, %v2426
    %v2445 = vunpack.c.l.b16 %v2405
    %v2446 = vunpack.c.l.b16 %v2406
    %v2447 = vunpack.c.l.b16 %v2407
    %v2448 = vunpack.c.l.b16 %v2408
    %v2449 = vunpack.c.l.b16 %v2409
    %v2450 = vunpack.c.l.b16 %v2410
    %v2451 = vunpack.c.l.b16 %v2411
    %v2452 = vunpack.c.l.b16 %v2412
    %v2453 = vunpack.c.l.b16 %v2413
    %v2454 = vunpack.c.l.b16 %v2414
    %v2455 = vunpack.c.l.b16 %v2415
    %v2456 = vunpack.c.l.b16 %v2416
    %v2457 = vunpack.c.l.b16 %v2417
    %v2458 = vunpack.c.l.b16 %v2418
    %v2459 = vunpack.c.l.b16 %v2419
    %v2460 = vunpack.c.l.b16 %v2420
    %v2461 = vpack.c.b16 %v2446, %v2445
    %v2462 = vpack.c.b16 %v2448, %v2447
    %v2463 = vpack.c.b16 %v2450, %v2449
    %v2464 = vpack.c.b16 %v2452, %v2451
    %v2465 = vpack.c.b16 %v2454, %v2453
    %v2466 = vpack.c.b16 %v2456, %v2455
    %v2467 = vpack.c.b16 %v2458, %v2457
    %v2468 = vpack.c.b16 %v2460, %v2459
    %2477 = vmatprep.subr.bf16.mxu0 0
    %2478 = vmatpush1.bf16.msra.mxu0 %v2461
    %2479 = vmatprep.subr.bf16.mxu0 0
    %2480 = vmatpush1.bf16.msra.mxu0 %v2462
    %2481 = vmatprep.subr.bf16.mxu0 0
    %2482 = vmatpush1.bf16.msra.mxu0 %v2463
    %2483 = vmatprep.subr.bf16.mxu0 0
    %2484 = vmatpush1.bf16.msra.mxu0 %v2464
    %2485 = vmatprep.subr.bf16.mxu0 0
    %2486 = vmatpush1.bf16.msra.mxu0 %v2465
    %2487 = vmatprep.subr.bf16.mxu0 0
    %2488 = vmatpush1.bf16.msra.mxu0 %v2466
    %2489 = vmatprep.subr.bf16.mxu0 0
    %2490 = vmatpush1.bf16.msra.mxu0 %v2467
    %2491 = vmatprep.subr.bf16.mxu0 0
    %2492 = vmatpush1.bf16.msra.mxu0 %v2468
    %2493 = vmatprep.subr.bf16.mxu0 0
    %2494 = vmatpush1.bf16.msra.mxu0 0
    %2495 = vmatprep.subr.bf16.mxu0 0
    %2496 = vmatpush1.bf16.msra.mxu0 0
    %2497 = vmatprep.subr.bf16.mxu0 0
    %2498 = vmatpush1.bf16.msra.mxu0 0
    %2499 = vmatprep.subr.bf16.mxu0 0
    %2500 = vmatpush1.bf16.msra.mxu0 0
    %2501 = vmatprep.subr.bf16.mxu0 0
    %2502 = vmatpush1.bf16.msra.mxu0 0
    %2503 = vmatprep.subr.bf16.mxu0 0
    %2504 = vmatpush1.bf16.msra.mxu0 0
    %2505 = vmatprep.subr.bf16.mxu0 0
    %2506 = vmatpush1.bf16.msra.mxu0 0
    %2507 = vmatprep.subr.bf16.mxu0 0
    %2508 = vmatpush1.bf16.msra.mxu0 0
    %2509 = vmatprep.mubr.bf16.mxu0 0
    %2510 = vmatmul.mubr.bf16.gmra.mrb[0].mxu0 %v2403
    %v2511 = vpop.f32.mrb[0].mxu0
    %v2512 = vadd.f32 %v2427, %v2511
    %v2513 = vpop.f32.mrb[0].mxu0
    %v2514 = vpop.f32.mrb[0].mxu0
    %v2515 = vpop.f32.mrb[0].mxu0
    %2516 = vdwg.mxu0
    %vm2517 = vcmp.ge.f32.partialorder %v2512, 0.0
    %v2518 = vmul.f32 %v2512, 0.22916667
    %v2519 = vsel %vm2517, %v2512, %v2518
    %v2520 = vpack.c.bf16 %v2519, %v2519
    %s2521 = scalar_lea.vmem [#allocation12], 192
    %v2522 = vld [vmem:[%s2521] sm:$0xf]
    %v2523 = vld [vmem:[%s2521 + $0x4] sm:$0xf]
    %v2524 = vld [vmem:[%s2521 + $0x8] sm:$0xf]
    %v2525 = vld [vmem:[%s2521 + $0xc] sm:$0xf]
    %v2526 = vld [vmem:[%s2521 + $0x10] sm:$0xf]
    %v2527 = vld [vmem:[%s2521 + $0x14] sm:$0xf]
    %v2528 = vld [vmem:[%s2521 + $0x18] sm:$0xf]
    %v2529 = vld [vmem:[%s2521 + $0x1c] sm:$0xf]
    %v2530 = vld [vmem:[%s2521 + $0x20] sm:$0xf]
    %v2531 = vld [vmem:[%s2521 + $0x24] sm:$0xf]
    %v2532 = vld [vmem:[%s2521 + $0x28] sm:$0xf]
    %v2533 = vld [vmem:[%s2521 + $0x2c] sm:$0xf]
    %v2534 = vld [vmem:[%s2521 + $0x30] sm:$0xf]
    %v2535 = vld [vmem:[%s2521 + $0x34] sm:$0xf]
    %v2536 = vld [vmem:[%s2521 + $0x38] sm:$0xf]
    %v2537 = vld [vmem:[%s2521 + $0x3c] sm:$0xf]
    %s2538 = scalar_lea.vmem %s9, 3
    %v2539 = vld [vmem:[%s2538] sm:$0x1]
    %v2541 = vlaneseq
    %v2542 = vshrl.u32 %v2541, 7
    %v2543 = vsub.s32 0, %v2542
    %v2544 = vrot.slane %v2539, %v2543
    %v2562 = vunpack.c.l.b16 %v2522
    %v2563 = vunpack.c.l.b16 %v2523
    %v2564 = vunpack.c.l.b16 %v2524
    %v2565 = vunpack.c.l.b16 %v2525
    %v2566 = vunpack.c.l.b16 %v2526
    %v2567 = vunpack.c.l.b16 %v2527
    %v2568 = vunpack.c.l.b16 %v2528
    %v2569 = vunpack.c.l.b16 %v2529
    %v2570 = vunpack.c.l.b16 %v2530
    %v2571 = vunpack.c.l.b16 %v2531
    %v2572 = vunpack.c.l.b16 %v2532
    %v2573 = vunpack.c.l.b16 %v2533
    %v2574 = vunpack.c.l.b16 %v2534
    %v2575 = vunpack.c.l.b16 %v2535
    %v2576 = vunpack.c.l.b16 %v2536
    %v2577 = vunpack.c.l.b16 %v2537
    %v2578 = vpack.c.b16 %v2563, %v2562
    %v2579 = vpack.c.b16 %v2565, %v2564
    %v2580 = vpack.c.b16 %v2567, %v2566
    %v2581 = vpack.c.b16 %v2569, %v2568
    %v2582 = vpack.c.b16 %v2571, %v2570
    %v2583 = vpack.c.b16 %v2573, %v2572
    %v2584 = vpack.c.b16 %v2575, %v2574
    %v2585 = vpack.c.b16 %v2577, %v2576
    %2594 = vmatprep.subr.bf16.mxu0 0
    %2595 = vmatpush1.bf16.msra.mxu0 %v2578
    %2596 = vmatprep.subr.bf16.mxu0 0
    %2597 = vmatpush1.bf16.msra.mxu0 %v2579
    %2598 = vmatprep.subr.bf16.mxu0 0
    %2599 = vmatpush1.bf16.msra.mxu0 %v2580
    %2600 = vmatprep.subr.bf16.mxu0 0
    %2601 = vmatpush1.bf16.msra.mxu0 %v2581
    %2602 = vmatprep.subr.bf16.mxu0 0
    %2603 = vmatpush1.bf16.msra.mxu0 %v2582
    %2604 = vmatprep.subr.bf16.mxu0 0
    %2605 = vmatpush1.bf16.msra.mxu0 %v2583
    %2606 = vmatprep.subr.bf16.mxu0 0
    %2607 = vmatpush1.bf16.msra.mxu0 %v2584
    %2608 = vmatprep.subr.bf16.mxu0 0
    %2609 = vmatpush1.bf16.msra.mxu0 %v2585
    %2610 = vmatprep.subr.bf16.mxu0 0
    %2611 = vmatpush1.bf16.msra.mxu0 0
    %2612 = vmatprep.subr.bf16.mxu0 0
    %2613 = vmatpush1.bf16.msra.mxu0 0
    %2614 = vmatprep.subr.bf16.mxu0 0
    %2615 = vmatpush1.bf16.msra.mxu0 0
    %2616 = vmatprep.subr.bf16.mxu0 0
    %2617 = vmatpush1.bf16.msra.mxu0 0
    %2618 = vmatprep.subr.bf16.mxu0 0
    %2619 = vmatpush1.bf16.msra.mxu0 0
    %2620 = vmatprep.subr.bf16.mxu0 0
    %2621 = vmatpush1.bf16.msra.mxu0 0
    %2622 = vmatprep.subr.bf16.mxu0 0
    %2623 = vmatpush1.bf16.msra.mxu0 0
    %2624 = vmatprep.subr.bf16.mxu0 0
    %2625 = vmatpush1.bf16.msra.mxu0 0
    %2626 = vmatprep.mubr.bf16.mxu0 0
    %2627 = vmatmul.mubr.bf16.gmra.mrb[0].mxu0 %v2520
    %v2628 = vpop.f32.mrb[0].mxu0
    %v2629 = vadd.f32 %v2544, %v2628
    %v2630 = vpop.f32.mrb[0].mxu0
    %v2631 = vpop.f32.mrb[0].mxu0
    %v2632 = vpop.f32.mrb[0].mxu0
    %2633 = vdwg.mxu0
    %vm2634 = vcmp.ge.f32.partialorder %v2629, 0.0
    %v2635 = vmul.f32 %v2629, 0.22916667
    %v2636 = vsel %vm2634, %v2629, %v2635
    %2637 = vmax.xlane.f32.xlu0 %v2636
    %v2638 = vpop.xlane.xlu0 %2637
    %v2639 = vsub.f32 %v2636, %v2638
    %v2640 = vmul.f32 %v2639, 1.442695
    %v2641 = vpow.pop %v2640
    %2642 = vadd.xlane.f32.xlu0 %v2641
    %v2643 = vpop.xlane.xlu0 %2642
    %v2644 = vrcp.pop %v2643
    %v2645 = vmul.f32 %v2641, %v2644
    %2646 = vst [vmem:[#allocation14 + $0x18] sm:$0xff] %v2645
    %v2647 = vsel %vm121, %v2645, -inf
    %2648 = vmax.xlane.f32.xlu0 %v2647
    %v2649 = vpop.xlane.xlu0 %2648
    %vm2650 = vcmp.eq.f32.partialorder %v2647, %v2649
    %vm2651 = vmand %vm2650, %vm121
    %v2652 = vsel %vm2651, %v120, 128
    %v2653 = vand.u32 %v2652, 65535
    %v2654 = vshra.s32 %v2652, 16
    %v2655 = vcvt.s32.f32 %v2653
    %v2656 = vcvt.s32.f32 %v2654
    %2657 = vmin.xlane.f32.xlu0 %v2656
    %v2658 = vpop.xlane.xlu0 %2657
    %vm2659 = vcmp.eq.f32.partialorder %v2656, %v2658
    %v2660 = vsel %vm2659, %v2655, inf
    %2661 = vmin.xlane.f32.xlu0 %v2660
    %v2662 = vpop.xlane.xlu0 %2661
    %v2663 = vcvt.f32.s32 %v2662
    %v2664 = vcvt.f32.s32 %v2658
    %v2665 = vshll.u32 %v2664, 16
    %v2666 = vadd.s32 %v2665, %v2663
    %vm2667 = vcmp.eq.s32.totalorder %v120, %v2666
    %v2668 = vsel %vm2667, %v123, 0.0
    %2669 = vadd.xlane.f32.xlu0 %v2668
    %v2670 = vpop.xlane.xlu0 %2669
    %vm2671 = vcmp.eq.s32.totalorder %v120, 4
    %v2672 = vsel %vm2671, %v2666, %v1917
    %v2673 = vsel %vm2671, %v2670, %v1918
    %2674 = vst [vmem:[#allocation15] sm:$0xff] %v2672
    %2675 = vst [vmem:[#allocation17] sm:$0xff] %v2673
    // Predicated region
    $region66: #{tpu_custom_call.1} parent=1 // pred_check
      _
    $region67: #{tpu_custom_call.1} parent=1 // pred_check_branch
      %2677 = sbr.rel (0) target = $region69
    $region68: #{tpu_custom_call.1} parent=1 // pred_region
      %s2679 = ssub.s32 512, 512
      %2680 = vsyncadd [#allocation5], %s2679
      %s2682 = sshll.u32 [#allocation14], 4
      %s2683 = int_to_ptr.vmem [resolvable:$true] %s2682
      %2685 = dma.vmem_to_hbm [thread:$0]  %s2683, 512, %s10, [#allocation5]
    $region69: #{tpu_custom_call.1} parent=1 // pred_fallthru
      _
    // Predicated region
    $region70: #{tpu_custom_call.1} parent=1 // pred_check
      _
    $region71: #{tpu_custom_call.1} parent=1 // pred_check_branch
      %2687 = sbr.rel (0) target = $region73
    $region72: #{tpu_custom_call.1} parent=1 // pred_region
      %s2689 = ssub.s32 128, 128
      %2690 = vsyncadd [#allocation16], %s2689
      %s2692 = sshll.u32 [#allocation15], 4
      %s2693 = int_to_ptr.vmem [resolvable:$true] %s2692
      %2695 = dma.vmem_to_hbm [thread:$0]  %s2693, 128, %s11, [#allocation16]
    $region73: #{tpu_custom_call.1} parent=1 // pred_fallthru
      _
    // Predicated region
    $region74: #{tpu_custom_call.1} parent=1 // pred_check
      _
    $region75: #{tpu_custom_call.1} parent=1 // pred_check_branch
      %2697 = sbr.rel (0) target = $region77
    $region76: #{tpu_custom_call.1} parent=1 // pred_region
      %s2699 = ssub.s32 128, 128
      %2700 = vsyncadd [#allocation16], %s2699
      %s2702 = sshll.u32 [#allocation17], 4
      %s2703 = int_to_ptr.vmem [resolvable:$true] %s2702
      %2705 = dma.vmem_to_hbm [thread:$0]  %s2703, 128, %s12, [#allocation16]
    $region77: #{tpu_custom_call.1} parent=1 // pred_fallthru
      _
    // Predicated region
    $region78: #{tpu_custom_call.1} parent=1 // pred_check
      _
    $region79: #{tpu_custom_call.1} parent=1 // pred_check_branch
      %2707 = sbr.rel (0) target = $region81
    $region80: #{tpu_custom_call.1} parent=1 // pred_region
      %2708 = dma.done [#allocation5], 512
    $region81: #{tpu_custom_call.1} parent=1 // pred_fallthru
      _
    // Predicated region
    $region82: #{tpu_custom_call.1} parent=1 // pred_check
      _
    $region83: #{tpu_custom_call.1} parent=1 // pred_check_branch
      %2710 = sbr.rel (0) target = $region85
    $region84: #{tpu_custom_call.1} parent=1 // pred_region
      %2711 = dma.done [#allocation16], 128
    $region85: #{tpu_custom_call.1} parent=1 // pred_fallthru
      _
    // Predicated region
    $region86: #{tpu_custom_call.1} parent=1 // pred_check
      _
    $region87: #{tpu_custom_call.1} parent=1 // pred_check_branch
      %2713 = sbr.rel (0) target = $region89
    $region88: #{tpu_custom_call.1} parent=1 // pred_region
      %2714 = dma.done [#allocation16], 128
    $region89: #{tpu_custom_call.1} parent=1 // pred_fallthru
      _
    %2715 = vsyncpa [#allocation4], 1
    %2716 = vsyncpa [#allocation7], 1
    %2717 = vsyncpa [#allocation10], 1
    %2718 = vsyncpa [#allocation13], 1
    %2719 = vsyncpa [#allocation5], 1
    %2720 = vsyncpa [#allocation16], 1

</llo_original>
